<compile_context>
chip_gen: v6e
topology: v6e:2x2x1
jax: 0.10.0
libtpu: 0.0.40
codegen_flags: <defaults>
</compile_context>

<pallas_src>
import functools

import jax
import jax.numpy as jnp
from jax import lax
from jax.experimental import pallas as pl
from jax.experimental.pallas import tpu as pltpu


def _round_up(x, m):
    return ((x + m - 1) // m) * m


def _pad_gate_cols(w, d, dp):
    """(d_in, 4*d) gate-blocked weight -> (dp, 4*dp), each gate padded to dp lanes."""
    d_in = w.shape[0]
    w4 = w.reshape(d_in, 4, d)
    w4 = jnp.pad(w4, ((0, dp - d_in), (0, 0), (0, dp - d)))
    return w4.reshape(dp, 4 * dp)


def _fce_kernel(f_ref, g_ref, wh_ref, wif_ref, wir_ref, b_ref, out_ref,
                *, k_steps, kp, dp):
    """Full K-step attention + LSTMCell recurrence in VMEM.

    f_ref   : (TN, DP)        query features (also h_0), matmul dtype
    g_ref   : (KP, DP)        support embeddings G (zero padded)
    wh_ref  : (DP, KP + 4*DP) fused [G^T | W_hh^T] (gate groups padded to DP)
    wif_ref : (DP, 4*DP)      input->gates weights acting on f
    wir_ref : (DP, 4*DP)      input->gates weights acting on r
    b_ref   : (1, 4*DP)       combined bias b_ih + b_hh (f32, gate padded)
    out_ref : (TN, DP)        final h
    """
    f32 = jnp.float32
    f_cd = f_ref[...]                      # matmul (compute) dtype
    G = g_ref[...]
    Wh = wh_ref[...]
    Wif = wif_ref[...]
    Wir = wir_ref[...]
    b = b_ref[...].astype(f32)

    cdt = f_cd.dtype
    tn = f_cd.shape[0]
    f = f_cd.astype(f32)

    # Loop-invariant f-contribution to the gates (hoisted out of the recurrence).
    f_gates = jnp.dot(f_cd, Wif, preferred_element_type=f32) + b     # (TN, 4DP)

    # Additive mask for padded support columns (hoisted, single VPU add per step).
    if k_steps < kp:
        kbias = jnp.where(
            lax.broadcasted_iota(jnp.int32, (tn, kp), 1) < k_steps,
            jnp.float32(0.0), jnp.float32(-1e30))
    else:
        kbias = None

    def step(_, carry):
        h, c = carry
        # Single fused h-matmul: [logit | h-gate contribution], 128-lane slices.
        hw = jnp.dot(h.astype(cdt), Wh, preferred_element_type=f32)  # (TN, KP+4DP)
        logit = hw[:, :kp]
        hg = hw[:, kp:]
        if kbias is not None:
            logit = logit + kbias
        # softmax over the support axis
        m = jnp.max(logit, axis=1, keepdims=True)
        e = jnp.exp(logit - m)
        a = e * pl.reciprocal(jnp.sum(e, axis=1, keepdims=True), approx=True)
        # r = a @ G
        r = jnp.dot(a.astype(cdt), G, preferred_element_type=f32)    # (TN, DP)
        # LSTMCell gates (i, f, g, o), each a full 128-lane slab.
        gates = f_gates + hg + jnp.dot(r.astype(cdt), Wir,
                                       preferred_element_type=f32)
        i_g = jax.nn.sigmoid(gates[:, 0 * dp:1 * dp])
        fg_g = jax.nn.sigmoid(gates[:, 1 * dp:2 * dp])
        g_g = jnp.tanh(gates[:, 2 * dp:3 * dp])
        o_g = jax.nn.sigmoid(gates[:, 3 * dp:4 * dp])
        c_new = fg_g * c + i_g * g_g
        h_new = o_g * jnp.tanh(c_new) + f
        return (h_new, c_new)

    h0 = f
    c0 = jnp.zeros_like(f)
    h_final, _ = lax.fori_loop(0, k_steps, step, (h0, c0), unroll=True)
    out_ref[...] = h_final.astype(out_ref.dtype)


def fully_contextual_embedding(f, G, w_ih, w_hh, b_ih, b_hh,
                               *, matmul_dtype=jnp.bfloat16):
    """JAX wrapper matching FullyContextualEmbedding.forward(f, G).

    f     : (N, D)   query features
    G     : (K, D)   support-set embeddings
    w_ih  : (4D, 2D) PyTorch nn.LSTMCell weight_ih
    w_hh  : (4D, D)  PyTorch nn.LSTMCell weight_hh
    b_ih  : (4D,)
    b_hh  : (4D,)
    matmul_dtype : dtype for MXU operands (bf16 recommended on v6e/v7x);
                   element-wise recurrence math stays f32.
    """
    N, D = f.shape
    K, _ = G.shape
    out_dtype = f.dtype

    DP = _round_up(D, 128)          # lane-pad feature dim
    KP = _round_up(K, 128)          # lane-pad support dim (logit columns)
    if N <= 128:
        TN = _round_up(N, 8)
        NP = TN
    else:
        TN = 128
        NP = _round_up(N, TN)

    # --- weight prep: pre-transpose, split, and pad each gate group to DP ---
    w_ih_t = jnp.transpose(w_ih)                 # (2D, 4D)
    wih_f = w_ih_t[:D, :]                        # acts on f
    wih_r = w_ih_t[D:, :]                        # acts on r
    whh_t = jnp.transpose(w_hh)                  # (D, 4D)
    bias = (b_ih + b_hh).reshape(4, D)

    wif_p = _pad_gate_cols(wih_f, D, DP)                         # (DP, 4*DP)
    wir_p = _pad_gate_cols(wih_r, D, DP)                         # (DP, 4*DP)
    whh_p = _pad_gate_cols(whh_t, D, DP)                         # (DP, 4*DP)
    b_p = jnp.pad(bias, ((0, 0), (0, DP - D))).reshape(1, 4 * DP)
    b_p = b_p.astype(jnp.float32)

    g_t_p = jnp.pad(jnp.transpose(G), ((0, DP - D), (0, KP - K)))  # (DP, KP)
    wh_fused = jnp.concatenate([g_t_p, whh_p], axis=1)             # (DP, KP+4*DP)

    f_p = jnp.pad(f, ((0, NP - N), (0, DP - D)))                   # (NP, DP)
    g_p = jnp.pad(G, ((0, KP - K), (0, DP - D)))                   # (KP, DP)

    cdt = matmul_dtype
    f_p = f_p.astype(cdt)
    g_p = g_p.astype(cdt)
    wh_fused = wh_fused.astype(cdt)
    wif_p = wif_p.astype(cdt)
    wir_p = wir_p.astype(cdt)

    kern = functools.partial(_fce_kernel, k_steps=K, kp=KP, dp=DP)

    out = pl.pallas_call(
        kern,
        out_shape=jax.ShapeDtypeStruct((NP, DP), out_dtype),
        grid=(NP // TN,),
        in_specs=[
            pl.BlockSpec((TN, DP), lambda i: (i, 0)),            # f (tiled over N)
            pl.BlockSpec((KP, DP), lambda i: (0, 0)),            # G
            pl.BlockSpec((DP, KP + 4 * DP), lambda i: (0, 0)),   # fused [G^T | Whh^T]
            pl.BlockSpec((DP, 4 * DP), lambda i: (0, 0)),        # wih_f
            pl.BlockSpec((DP, 4 * DP), lambda i: (0, 0)),        # wih_r
            pl.BlockSpec((1, 4 * DP), lambda i: (0, 0)),         # bias
        ],
        out_specs=pl.BlockSpec((TN, DP), lambda i: (i, 0)),
        compiler_params=pltpu.CompilerParams(
            dimension_semantics=("parallel",)),
    )(f_p, g_p, wh_fused, wif_p, wir_p, b_p)

    return out[:N, :D]


def _reference(f, G, w_ih, w_hh, b_ih, b_hh):
    """Pure-JAX f32 reference mirroring the PyTorch forward exactly."""
    D = f.shape[1]
    h = f
    c = jnp.zeros_like(f)
    for _ in range(G.shape[0]):
        logit = h @ G.T
        a = jax.nn.softmax(logit, axis=1)
        r = a @ G
        x = jnp.concatenate([f, r], axis=1)
        gates = x @ w_ih.T + b_ih + h @ w_hh.T + b_hh
        i_g = jax.nn.sigmoid(gates[:, 0 * D:1 * D])
        f_g = jax.nn.sigmoid(gates[:, 1 * D:2 * D])
        g_g = jnp.tanh(gates[:, 2 * D:3 * D])
        o_g = jax.nn.sigmoid(gates[:, 3 * D:4 * D])
        c = f_g * c + i_g * g_g
        h = o_g * jnp.tanh(c)
        h = h + f
    return h


if __name__ == "__main__":
    feat_dim = 32   # D
    N = 8           # number of query embeddings (rows of f)
    K = 8           # support-set size (rows of G)

    key = jax.random.PRNGKey(0)
    kf, kg, k1, k2, k3, k4 = jax.random.split(key, 6)

    f = jax.random.normal(kf, (N, feat_dim), dtype=jnp.float32)
    G = jax.random.normal(kg, (K, feat_dim), dtype=jnp.float32)

    # Deterministic LSTMCell parameters (PyTorch shapes).
    w_ih = 0.1 * jax.random.normal(k1, (4 * feat_dim, 2 * feat_dim), dtype=jnp.float32)
    w_hh = 0.1 * jax.random.normal(k2, (4 * feat_dim, feat_dim), dtype=jnp.float32)
    b_ih = 0.1 * jax.random.normal(k3, (4 * feat_dim,), dtype=jnp.float32)
    b_hh = 0.1 * jax.random.normal(k4, (4 * feat_dim,), dtype=jnp.float32)

    ref = _reference(f, G, w_ih, w_hh, b_ih, b_hh)

    # f32 MXU operands: tight check (approx reciprocal in softmax -> ~1e-3 level).
    out_f32 = fully_contextual_embedding(f, G, w_ih, w_hh, b_ih, b_hh,
                                         matmul_dtype=jnp.float32)
    out_f32 = jax.block_until_ready(out_f32)
    assert out_f32.shape == (N, feat_dim)
    assert jnp.allclose(out_f32, ref, atol=1e-2, rtol=1e-2), "f32 mismatch vs. reference"

    # bf16 MXU operands (v6e/v7x fast path): loose smoke check, f32 accumulation.
    out_bf16 = fully_contextual_embedding(f, G, w_ih, w_hh, b_ih, b_hh,
                                          matmul_dtype=jnp.bfloat16)
    out_bf16 = jax.block_until_ready(out_bf16)
    assert out_bf16.shape == (N, feat_dim)
    assert jnp.allclose(out_bf16, ref, atol=1e-1, rtol=1e-1), "bf16 mismatch vs. reference"

    print("KERNEL_OK")
</pallas_src>

<mosaic_0001>
module attributes {stable_mosaic.version = 11 : i64} {
  func.func @_fce_kernel(%arg0: i32, %arg1: memref<8x128xf32, #tpu.memory_space<vmem>>, %arg2: memref<128x128xf32, #tpu.memory_space<vmem>>, %arg3: memref<128x640xf32, #tpu.memory_space<vmem>>, %arg4: memref<128x512xf32, #tpu.memory_space<vmem>>, %arg5: memref<128x512xf32, #tpu.memory_space<vmem>>, %arg6: memref<1x512xf32, #tpu.memory_space<vmem>>, %arg7: memref<8x128xf32, #tpu.memory_space<vmem>>) attributes {dimension_semantics = [#tpu.dimension_semantics<parallel>], iteration_bounds = array<i64: 1>, scalar_prefetch = 0 : i64, scratch_operands = 0 : i64, tpu.core_type = #tpu.core_type<tc>, window_params = [{transform_indices = @transform_0, window_bounds = array<i64: 8, 128>}, {pipeline_mode = #tpu.pipeline_mode<synchronous>, transform_indices = @transform_1, window_bounds = array<i64: 128, 128>}, {pipeline_mode = #tpu.pipeline_mode<synchronous>, transform_indices = @transform_2, window_bounds = array<i64: 128, 640>}, {pipeline_mode = #tpu.pipeline_mode<synchronous>, transform_indices = @transform_3, window_bounds = array<i64: 128, 512>}, {pipeline_mode = #tpu.pipeline_mode<synchronous>, transform_indices = @transform_4, window_bounds = array<i64: 128, 512>}, {pipeline_mode = #tpu.pipeline_mode<synchronous>, transform_indices = @transform_5, window_bounds = array<i64: 1, 512>}, {transform_indices = @transform_6, window_bounds = array<i64: 8, 128>}]} {
    %c0 = arith.constant 0 : index
    %c0_0 = arith.constant 0 : index
    %0 = vector.load %arg1[%c0, %c0_0] : memref<8x128xf32, #tpu.memory_space<vmem>>, vector<8x128xf32>
    %c0_1 = arith.constant 0 : index
    %c0_2 = arith.constant 0 : index
    %1 = vector.load %arg2[%c0_1, %c0_2] : memref<128x128xf32, #tpu.memory_space<vmem>>, vector<128x128xf32>
    %c0_3 = arith.constant 0 : index
    %c0_4 = arith.constant 0 : index
    %2 = vector.load %arg3[%c0_3, %c0_4] : memref<128x640xf32, #tpu.memory_space<vmem>>, vector<128x640xf32>
    %c0_5 = arith.constant 0 : index
    %c0_6 = arith.constant 0 : index
    %3 = vector.load %arg4[%c0_5, %c0_6] : memref<128x512xf32, #tpu.memory_space<vmem>>, vector<128x512xf32>
    %c0_7 = arith.constant 0 : index
    %c0_8 = arith.constant 0 : index
    %4 = vector.load %arg5[%c0_7, %c0_8] : memref<128x512xf32, #tpu.memory_space<vmem>>, vector<128x512xf32>
    %c0_9 = arith.constant 0 : index
    %c0_10 = arith.constant 0 : index
    %5 = vector.load %arg6[%c0_9, %c0_10] : memref<1x512xf32, #tpu.memory_space<vmem>>, vector<1x512xf32>
    %cst = arith.constant dense<0.000000e+00> : vector<8x512xf32>
    %6 = tpu.matmul %0, %3, %cst {dimension_numbers = #tpu.dot_dimension_numbers<[1], [0], [0], [1], [0, 0, 1, 1], [], []>} : vector<8x128xf32>, vector<128x512xf32>, vector<8x512xf32> -> vector<8x512xf32>
    %7 = vector.broadcast %5 : vector<1x512xf32> to vector<8x512xf32>
    %8 = arith.addf %6, %7 : vector<8x512xf32>
    %9 = tpu.iota {dimensions = array<i32: 1>} : vector<8x128xi32>
    %c8_i32 = arith.constant 8 : i32
    %10 = vector.broadcast %c8_i32 : i32 to vector<8x128xi32>
    %11 = arith.cmpi slt, %9, %10 : vector<8x128xi32>
    %cst_11 = arith.constant 0.000000e+00 : f32
    %cst_12 = arith.constant -1.000000e+30 : f32
    %12 = vector.broadcast %cst_11 : f32 to vector<8x128xf32>
    %13 = vector.broadcast %cst_12 : f32 to vector<8x128xf32>
    %14 = arith.select %11, %12, %13 : vector<8x128xi1>, vector<8x128xf32>
    %cst_13 = arith.constant 0.000000e+00 : f32
    %15 = vector.broadcast %cst_13 : f32 to vector<8x128xf32>
    %c0_i32 = arith.constant 0 : i32
    %cst_14 = arith.constant dense<0.000000e+00> : vector<8x640xf32>
    %16 = tpu.matmul %0, %2, %cst_14 {dimension_numbers = #tpu.dot_dimension_numbers<[1], [0], [0], [1], [0, 0, 1, 1], [], []>} : vector<8x128xf32>, vector<128x640xf32>, vector<8x640xf32> -> vector<8x640xf32>
    %17 = vector.extract_strided_slice %16 {offsets = [0, 0], sizes = [8, 128], strides = [1, 1]} : vector<8x640xf32> to vector<8x128xf32>
    %18 = vector.extract_strided_slice %16 {offsets = [0, 128], sizes = [8, 512], strides = [1, 1]} : vector<8x640xf32> to vector<8x512xf32>
    %19 = arith.addf %17, %14 : vector<8x128xf32>
    %cst_15 = arith.constant dense<0xFF800000> : vector<8xf32>
    %20 = vector.multi_reduction <maximumf>, %19, %cst_15 [1] : vector<8x128xf32> to vector<8xf32>
    %21 = vector.shape_cast %20 : vector<8xf32> to vector<8x1xf32>
    %22 = vector.broadcast %21 : vector<8x1xf32> to vector<8x128xf32>
    %23 = arith.subf %19, %22 : vector<8x128xf32>
    %24 = math.exp %23 : vector<8x128xf32>
    %cst_16 = arith.constant dense<0.000000e+00> : vector<8xf32>
    %25 = vector.multi_reduction <add>, %24, %cst_16 [1] : vector<8x128xf32> to vector<8xf32>
    %26 = vector.shape_cast %25 : vector<8xf32> to vector<8x1xf32>
    %27 = tpu.reciprocal %26 {approx = true} : vector<8x1xf32> -> vector<8x1xf32>
    %28 = vector.broadcast %27 : vector<8x1xf32> to vector<8x128xf32>
    %29 = arith.mulf %24, %28 : vector<8x128xf32>
    %cst_17 = arith.constant dense<0.000000e+00> : vector<8x128xf32>
    %30 = tpu.matmul %29, %1, %cst_17 {dimension_numbers = #tpu.dot_dimension_numbers<[1], [0], [0], [1], [0, 0, 1, 1], [], []>} : vector<8x128xf32>, vector<128x128xf32>, vector<8x128xf32> -> vector<8x128xf32>
    %31 = arith.addf %8, %18 : vector<8x512xf32>
    %cst_18 = arith.constant dense<0.000000e+00> : vector<8x512xf32>
    %32 = tpu.matmul %30, %4, %cst_18 {dimension_numbers = #tpu.dot_dimension_numbers<[1], [0], [0], [1], [0, 0, 1, 1], [], []>} : vector<8x128xf32>, vector<128x512xf32>, vector<8x512xf32> -> vector<8x512xf32>
    %33 = arith.addf %31, %32 : vector<8x512xf32>
    %34 = vector.extract_strided_slice %33 {offsets = [0, 0], sizes = [8, 128], strides = [1, 1]} : vector<8x512xf32> to vector<8x128xf32>
    %35 = arith.negf %34 : vector<8x128xf32>
    %36 = math.exp %35 : vector<8x128xf32>
    %cst_19 = arith.constant 1.000000e+00 : f32
    %37 = vector.broadcast %cst_19 : f32 to vector<8x128xf32>
    %38 = arith.addf %37, %36 : vector<8x128xf32>
    %39 = arith.divf %37, %38 : vector<8x128xf32>
    %40 = vector.extract_strided_slice %33 {offsets = [0, 128], sizes = [8, 128], strides = [1, 1]} : vector<8x512xf32> to vector<8x128xf32>
    %41 = arith.negf %40 : vector<8x128xf32>
    %42 = math.exp %41 : vector<8x128xf32>
    %cst_20 = arith.constant 1.000000e+00 : f32
    %43 = vector.broadcast %cst_20 : f32 to vector<8x128xf32>
    %44 = arith.addf %43, %42 : vector<8x128xf32>
    %45 = arith.divf %43, %44 : vector<8x128xf32>
    %46 = vector.extract_strided_slice %33 {offsets = [0, 256], sizes = [8, 128], strides = [1, 1]} : vector<8x512xf32> to vector<8x128xf32>
    %47 = math.tanh %46 : vector<8x128xf32>
    %48 = vector.extract_strided_slice %33 {offsets = [0, 384], sizes = [8, 128], strides = [1, 1]} : vector<8x512xf32> to vector<8x128xf32>
    %49 = arith.negf %48 : vector<8x128xf32>
    %50 = math.exp %49 : vector<8x128xf32>
    %cst_21 = arith.constant 1.000000e+00 : f32
    %51 = vector.broadcast %cst_21 : f32 to vector<8x128xf32>
    %52 = arith.addf %51, %50 : vector<8x128xf32>
    %53 = arith.divf %51, %52 : vector<8x128xf32>
    %54 = arith.mulf %45, %15 : vector<8x128xf32>
    %55 = arith.mulf %39, %47 : vector<8x128xf32>
    %56 = arith.addf %54, %55 : vector<8x128xf32>
    %57 = math.tanh %56 : vector<8x128xf32>
    %58 = arith.mulf %53, %57 : vector<8x128xf32>
    %59 = arith.addf %58, %0 : vector<8x128xf32>
    %c1_i32 = arith.constant 1 : i32
    %cst_22 = arith.constant dense<0.000000e+00> : vector<8x640xf32>
    %60 = tpu.matmul %59, %2, %cst_22 {dimension_numbers = #tpu.dot_dimension_numbers<[1], [0], [0], [1], [0, 0, 1, 1], [], []>} : vector<8x128xf32>, vector<128x640xf32>, vector<8x640xf32> -> vector<8x640xf32>
    %61 = vector.extract_strided_slice %60 {offsets = [0, 0], sizes = [8, 128], strides = [1, 1]} : vector<8x640xf32> to vector<8x128xf32>
    %62 = vector.extract_strided_slice %60 {offsets = [0, 128], sizes = [8, 512], strides = [1, 1]} : vector<8x640xf32> to vector<8x512xf32>
    %63 = arith.addf %61, %14 : vector<8x128xf32>
    %cst_23 = arith.constant dense<0xFF800000> : vector<8xf32>
    %64 = vector.multi_reduction <maximumf>, %63, %cst_23 [1] : vector<8x128xf32> to vector<8xf32>
    %65 = vector.shape_cast %64 : vector<8xf32> to vector<8x1xf32>
    %66 = vector.broadcast %65 : vector<8x1xf32> to vector<8x128xf32>
    %67 = arith.subf %63, %66 : vector<8x128xf32>
    %68 = math.exp %67 : vector<8x128xf32>
    %cst_24 = arith.constant dense<0.000000e+00> : vector<8xf32>
    %69 = vector.multi_reduction <add>, %68, %cst_24 [1] : vector<8x128xf32> to vector<8xf32>
    %70 = vector.shape_cast %69 : vector<8xf32> to vector<8x1xf32>
    %71 = tpu.reciprocal %70 {approx = true} : vector<8x1xf32> -> vector<8x1xf32>
    %72 = vector.broadcast %71 : vector<8x1xf32> to vector<8x128xf32>
    %73 = arith.mulf %68, %72 : vector<8x128xf32>
    %cst_25 = arith.constant dense<0.000000e+00> : vector<8x128xf32>
    %74 = tpu.matmul %73, %1, %cst_25 {dimension_numbers = #tpu.dot_dimension_numbers<[1], [0], [0], [1], [0, 0, 1, 1], [], []>} : vector<8x128xf32>, vector<128x128xf32>, vector<8x128xf32> -> vector<8x128xf32>
    %75 = arith.addf %8, %62 : vector<8x512xf32>
    %cst_26 = arith.constant dense<0.000000e+00> : vector<8x512xf32>
    %76 = tpu.matmul %74, %4, %cst_26 {dimension_numbers = #tpu.dot_dimension_numbers<[1], [0], [0], [1], [0, 0, 1, 1], [], []>} : vector<8x128xf32>, vector<128x512xf32>, vector<8x512xf32> -> vector<8x512xf32>
    %77 = arith.addf %75, %76 : vector<8x512xf32>
    %78 = vector.extract_strided_slice %77 {offsets = [0, 0], sizes = [8, 128], strides = [1, 1]} : vector<8x512xf32> to vector<8x128xf32>
    %79 = arith.negf %78 : vector<8x128xf32>
    %80 = math.exp %79 : vector<8x128xf32>
    %cst_27 = arith.constant 1.000000e+00 : f32
    %81 = vector.broadcast %cst_27 : f32 to vector<8x128xf32>
    %82 = arith.addf %81, %80 : vector<8x128xf32>
    %83 = arith.divf %81, %82 : vector<8x128xf32>
    %84 = vector.extract_strided_slice %77 {offsets = [0, 128], sizes = [8, 128], strides = [1, 1]} : vector<8x512xf32> to vector<8x128xf32>
    %85 = arith.negf %84 : vector<8x128xf32>
    %86 = math.exp %85 : vector<8x128xf32>
    %cst_28 = arith.constant 1.000000e+00 : f32
    %87 = vector.broadcast %cst_28 : f32 to vector<8x128xf32>
    %88 = arith.addf %87, %86 : vector<8x128xf32>
    %89 = arith.divf %87, %88 : vector<8x128xf32>
    %90 = vector.extract_strided_slice %77 {offsets = [0, 256], sizes = [8, 128], strides = [1, 1]} : vector<8x512xf32> to vector<8x128xf32>
    %91 = math.tanh %90 : vector<8x128xf32>
    %92 = vector.extract_strided_slice %77 {offsets = [0, 384], sizes = [8, 128], strides = [1, 1]} : vector<8x512xf32> to vector<8x128xf32>
    %93 = arith.negf %92 : vector<8x128xf32>
    %94 = math.exp %93 : vector<8x128xf32>
    %cst_29 = arith.constant 1.000000e+00 : f32
    %95 = vector.broadcast %cst_29 : f32 to vector<8x128xf32>
    %96 = arith.addf %95, %94 : vector<8x128xf32>
    %97 = arith.divf %95, %96 : vector<8x128xf32>
    %98 = arith.mulf %89, %56 : vector<8x128xf32>
    %99 = arith.mulf %83, %91 : vector<8x128xf32>
    %100 = arith.addf %98, %99 : vector<8x128xf32>
    %101 = math.tanh %100 : vector<8x128xf32>
    %102 = arith.mulf %97, %101 : vector<8x128xf32>
    %103 = arith.addf %102, %0 : vector<8x128xf32>
    %c2_i32 = arith.constant 2 : i32
    %cst_30 = arith.constant dense<0.000000e+00> : vector<8x640xf32>
    %104 = tpu.matmul %103, %2, %cst_30 {dimension_numbers = #tpu.dot_dimension_numbers<[1], [0], [0], [1], [0, 0, 1, 1], [], []>} : vector<8x128xf32>, vector<128x640xf32>, vector<8x640xf32> -> vector<8x640xf32>
    %105 = vector.extract_strided_slice %104 {offsets = [0, 0], sizes = [8, 128], strides = [1, 1]} : vector<8x640xf32> to vector<8x128xf32>
    %106 = vector.extract_strided_slice %104 {offsets = [0, 128], sizes = [8, 512], strides = [1, 1]} : vector<8x640xf32> to vector<8x512xf32>
    %107 = arith.addf %105, %14 : vector<8x128xf32>
    %cst_31 = arith.constant dense<0xFF800000> : vector<8xf32>
    %108 = vector.multi_reduction <maximumf>, %107, %cst_31 [1] : vector<8x128xf32> to vector<8xf32>
    %109 = vector.shape_cast %108 : vector<8xf32> to vector<8x1xf32>
    %110 = vector.broadcast %109 : vector<8x1xf32> to vector<8x128xf32>
    %111 = arith.subf %107, %110 : vector<8x128xf32>
    %112 = math.exp %111 : vector<8x128xf32>
    %cst_32 = arith.constant dense<0.000000e+00> : vector<8xf32>
    %113 = vector.multi_reduction <add>, %112, %cst_32 [1] : vector<8x128xf32> to vector<8xf32>
    %114 = vector.shape_cast %113 : vector<8xf32> to vector<8x1xf32>
    %115 = tpu.reciprocal %114 {approx = true} : vector<8x1xf32> -> vector<8x1xf32>
    %116 = vector.broadcast %115 : vector<8x1xf32> to vector<8x128xf32>
    %117 = arith.mulf %112, %116 : vector<8x128xf32>
    %cst_33 = arith.constant dense<0.000000e+00> : vector<8x128xf32>
    %118 = tpu.matmul %117, %1, %cst_33 {dimension_numbers = #tpu.dot_dimension_numbers<[1], [0], [0], [1], [0, 0, 1, 1], [], []>} : vector<8x128xf32>, vector<128x128xf32>, vector<8x128xf32> -> vector<8x128xf32>
    %119 = arith.addf %8, %106 : vector<8x512xf32>
    %cst_34 = arith.constant dense<0.000000e+00> : vector<8x512xf32>
    %120 = tpu.matmul %118, %4, %cst_34 {dimension_numbers = #tpu.dot_dimension_numbers<[1], [0], [0], [1], [0, 0, 1, 1], [], []>} : vector<8x128xf32>, vector<128x512xf32>, vector<8x512xf32> -> vector<8x512xf32>
    %121 = arith.addf %119, %120 : vector<8x512xf32>
    %122 = vector.extract_strided_slice %121 {offsets = [0, 0], sizes = [8, 128], strides = [1, 1]} : vector<8x512xf32> to vector<8x128xf32>
    %123 = arith.negf %122 : vector<8x128xf32>
    %124 = math.exp %123 : vector<8x128xf32>
    %cst_35 = arith.constant 1.000000e+00 : f32
    %125 = vector.broadcast %cst_35 : f32 to vector<8x128xf32>
    %126 = arith.addf %125, %124 : vector<8x128xf32>
    %127 = arith.divf %125, %126 : vector<8x128xf32>
    %128 = vector.extract_strided_slice %121 {offsets = [0, 128], sizes = [8, 128], strides = [1, 1]} : vector<8x512xf32> to vector<8x128xf32>
    %129 = arith.negf %128 : vector<8x128xf32>
    %130 = math.exp %129 : vector<8x128xf32>
    %cst_36 = arith.constant 1.000000e+00 : f32
    %131 = vector.broadcast %cst_36 : f32 to vector<8x128xf32>
    %132 = arith.addf %131, %130 : vector<8x128xf32>
    %133 = arith.divf %131, %132 : vector<8x128xf32>
    %134 = vector.extract_strided_slice %121 {offsets = [0, 256], sizes = [8, 128], strides = [1, 1]} : vector<8x512xf32> to vector<8x128xf32>
    %135 = math.tanh %134 : vector<8x128xf32>
    %136 = vector.extract_strided_slice %121 {offsets = [0, 384], sizes = [8, 128], strides = [1, 1]} : vector<8x512xf32> to vector<8x128xf32>
    %137 = arith.negf %136 : vector<8x128xf32>
    %138 = math.exp %137 : vector<8x128xf32>
    %cst_37 = arith.constant 1.000000e+00 : f32
    %139 = vector.broadcast %cst_37 : f32 to vector<8x128xf32>
    %140 = arith.addf %139, %138 : vector<8x128xf32>
    %141 = arith.divf %139, %140 : vector<8x128xf32>
    %142 = arith.mulf %133, %100 : vector<8x128xf32>
    %143 = arith.mulf %127, %135 : vector<8x128xf32>
    %144 = arith.addf %142, %143 : vector<8x128xf32>
    %145 = math.tanh %144 : vector<8x128xf32>
    %146 = arith.mulf %141, %145 : vector<8x128xf32>
    %147 = arith.addf %146, %0 : vector<8x128xf32>
    %c3_i32 = arith.constant 3 : i32
    %cst_38 = arith.constant dense<0.000000e+00> : vector<8x640xf32>
    %148 = tpu.matmul %147, %2, %cst_38 {dimension_numbers = #tpu.dot_dimension_numbers<[1], [0], [0], [1], [0, 0, 1, 1], [], []>} : vector<8x128xf32>, vector<128x640xf32>, vector<8x640xf32> -> vector<8x640xf32>
    %149 = vector.extract_strided_slice %148 {offsets = [0, 0], sizes = [8, 128], strides = [1, 1]} : vector<8x640xf32> to vector<8x128xf32>
    %150 = vector.extract_strided_slice %148 {offsets = [0, 128], sizes = [8, 512], strides = [1, 1]} : vector<8x640xf32> to vector<8x512xf32>
    %151 = arith.addf %149, %14 : vector<8x128xf32>
    %cst_39 = arith.constant dense<0xFF800000> : vector<8xf32>
    %152 = vector.multi_reduction <maximumf>, %151, %cst_39 [1] : vector<8x128xf32> to vector<8xf32>
    %153 = vector.shape_cast %152 : vector<8xf32> to vector<8x1xf32>
    %154 = vector.broadcast %153 : vector<8x1xf32> to vector<8x128xf32>
    %155 = arith.subf %151, %154 : vector<8x128xf32>
    %156 = math.exp %155 : vector<8x128xf32>
    %cst_40 = arith.constant dense<0.000000e+00> : vector<8xf32>
    %157 = vector.multi_reduction <add>, %156, %cst_40 [1] : vector<8x128xf32> to vector<8xf32>
    %158 = vector.shape_cast %157 : vector<8xf32> to vector<8x1xf32>
    %159 = tpu.reciprocal %158 {approx = true} : vector<8x1xf32> -> vector<8x1xf32>
    %160 = vector.broadcast %159 : vector<8x1xf32> to vector<8x128xf32>
    %161 = arith.mulf %156, %160 : vector<8x128xf32>
    %cst_41 = arith.constant dense<0.000000e+00> : vector<8x128xf32>
    %162 = tpu.matmul %161, %1, %cst_41 {dimension_numbers = #tpu.dot_dimension_numbers<[1], [0], [0], [1], [0, 0, 1, 1], [], []>} : vector<8x128xf32>, vector<128x128xf32>, vector<8x128xf32> -> vector<8x128xf32>
    %163 = arith.addf %8, %150 : vector<8x512xf32>
    %cst_42 = arith.constant dense<0.000000e+00> : vector<8x512xf32>
    %164 = tpu.matmul %162, %4, %cst_42 {dimension_numbers = #tpu.dot_dimension_numbers<[1], [0], [0], [1], [0, 0, 1, 1], [], []>} : vector<8x128xf32>, vector<128x512xf32>, vector<8x512xf32> -> vector<8x512xf32>
    %165 = arith.addf %163, %164 : vector<8x512xf32>
    %166 = vector.extract_strided_slice %165 {offsets = [0, 0], sizes = [8, 128], strides = [1, 1]} : vector<8x512xf32> to vector<8x128xf32>
    %167 = arith.negf %166 : vector<8x128xf32>
    %168 = math.exp %167 : vector<8x128xf32>
    %cst_43 = arith.constant 1.000000e+00 : f32
    %169 = vector.broadcast %cst_43 : f32 to vector<8x128xf32>
    %170 = arith.addf %169, %168 : vector<8x128xf32>
    %171 = arith.divf %169, %170 : vector<8x128xf32>
    %172 = vector.extract_strided_slice %165 {offsets = [0, 128], sizes = [8, 128], strides = [1, 1]} : vector<8x512xf32> to vector<8x128xf32>
    %173 = arith.negf %172 : vector<8x128xf32>
    %174 = math.exp %173 : vector<8x128xf32>
    %cst_44 = arith.constant 1.000000e+00 : f32
    %175 = vector.broadcast %cst_44 : f32 to vector<8x128xf32>
    %176 = arith.addf %175, %174 : vector<8x128xf32>
    %177 = arith.divf %175, %176 : vector<8x128xf32>
    %178 = vector.extract_strided_slice %165 {offsets = [0, 256], sizes = [8, 128], strides = [1, 1]} : vector<8x512xf32> to vector<8x128xf32>
    %179 = math.tanh %178 : vector<8x128xf32>
    %180 = vector.extract_strided_slice %165 {offsets = [0, 384], sizes = [8, 128], strides = [1, 1]} : vector<8x512xf32> to vector<8x128xf32>
    %181 = arith.negf %180 : vector<8x128xf32>
    %182 = math.exp %181 : vector<8x128xf32>
    %cst_45 = arith.constant 1.000000e+00 : f32
    %183 = vector.broadcast %cst_45 : f32 to vector<8x128xf32>
    %184 = arith.addf %183, %182 : vector<8x128xf32>
    %185 = arith.divf %183, %184 : vector<8x128xf32>
    %186 = arith.mulf %177, %144 : vector<8x128xf32>
    %187 = arith.mulf %171, %179 : vector<8x128xf32>
    %188 = arith.addf %186, %187 : vector<8x128xf32>
    %189 = math.tanh %188 : vector<8x128xf32>
    %190 = arith.mulf %185, %189 : vector<8x128xf32>
    %191 = arith.addf %190, %0 : vector<8x128xf32>
    %c4_i32 = arith.constant 4 : i32
    %cst_46 = arith.constant dense<0.000000e+00> : vector<8x640xf32>
    %192 = tpu.matmul %191, %2, %cst_46 {dimension_numbers = #tpu.dot_dimension_numbers<[1], [0], [0], [1], [0, 0, 1, 1], [], []>} : vector<8x128xf32>, vector<128x640xf32>, vector<8x640xf32> -> vector<8x640xf32>
    %193 = vector.extract_strided_slice %192 {offsets = [0, 0], sizes = [8, 128], strides = [1, 1]} : vector<8x640xf32> to vector<8x128xf32>
    %194 = vector.extract_strided_slice %192 {offsets = [0, 128], sizes = [8, 512], strides = [1, 1]} : vector<8x640xf32> to vector<8x512xf32>
    %195 = arith.addf %193, %14 : vector<8x128xf32>
    %cst_47 = arith.constant dense<0xFF800000> : vector<8xf32>
    %196 = vector.multi_reduction <maximumf>, %195, %cst_47 [1] : vector<8x128xf32> to vector<8xf32>
    %197 = vector.shape_cast %196 : vector<8xf32> to vector<8x1xf32>
    %198 = vector.broadcast %197 : vector<8x1xf32> to vector<8x128xf32>
    %199 = arith.subf %195, %198 : vector<8x128xf32>
    %200 = math.exp %199 : vector<8x128xf32>
    %cst_48 = arith.constant dense<0.000000e+00> : vector<8xf32>
    %201 = vector.multi_reduction <add>, %200, %cst_48 [1] : vector<8x128xf32> to vector<8xf32>
    %202 = vector.shape_cast %201 : vector<8xf32> to vector<8x1xf32>
    %203 = tpu.reciprocal %202 {approx = true} : vector<8x1xf32> -> vector<8x1xf32>
    %204 = vector.broadcast %203 : vector<8x1xf32> to vector<8x128xf32>
    %205 = arith.mulf %200, %204 : vector<8x128xf32>
    %cst_49 = arith.constant dense<0.000000e+00> : vector<8x128xf32>
    %206 = tpu.matmul %205, %1, %cst_49 {dimension_numbers = #tpu.dot_dimension_numbers<[1], [0], [0], [1], [0, 0, 1, 1], [], []>} : vector<8x128xf32>, vector<128x128xf32>, vector<8x128xf32> -> vector<8x128xf32>
    %207 = arith.addf %8, %194 : vector<8x512xf32>
    %cst_50 = arith.constant dense<0.000000e+00> : vector<8x512xf32>
    %208 = tpu.matmul %206, %4, %cst_50 {dimension_numbers = #tpu.dot_dimension_numbers<[1], [0], [0], [1], [0, 0, 1, 1], [], []>} : vector<8x128xf32>, vector<128x512xf32>, vector<8x512xf32> -> vector<8x512xf32>
    %209 = arith.addf %207, %208 : vector<8x512xf32>
    %210 = vector.extract_strided_slice %209 {offsets = [0, 0], sizes = [8, 128], strides = [1, 1]} : vector<8x512xf32> to vector<8x128xf32>
    %211 = arith.negf %210 : vector<8x128xf32>
    %212 = math.exp %211 : vector<8x128xf32>
    %cst_51 = arith.constant 1.000000e+00 : f32
    %213 = vector.broadcast %cst_51 : f32 to vector<8x128xf32>
    %214 = arith.addf %213, %212 : vector<8x128xf32>
    %215 = arith.divf %213, %214 : vector<8x128xf32>
    %216 = vector.extract_strided_slice %209 {offsets = [0, 128], sizes = [8, 128], strides = [1, 1]} : vector<8x512xf32> to vector<8x128xf32>
    %217 = arith.negf %216 : vector<8x128xf32>
    %218 = math.exp %217 : vector<8x128xf32>
    %cst_52 = arith.constant 1.000000e+00 : f32
    %219 = vector.broadcast %cst_52 : f32 to vector<8x128xf32>
    %220 = arith.addf %219, %218 : vector<8x128xf32>
    %221 = arith.divf %219, %220 : vector<8x128xf32>
    %222 = vector.extract_strided_slice %209 {offsets = [0, 256], sizes = [8, 128], strides = [1, 1]} : vector<8x512xf32> to vector<8x128xf32>
    %223 = math.tanh %222 : vector<8x128xf32>
    %224 = vector.extract_strided_slice %209 {offsets = [0, 384], sizes = [8, 128], strides = [1, 1]} : vector<8x512xf32> to vector<8x128xf32>
    %225 = arith.negf %224 : vector<8x128xf32>
    %226 = math.exp %225 : vector<8x128xf32>
    %cst_53 = arith.constant 1.000000e+00 : f32
    %227 = vector.broadcast %cst_53 : f32 to vector<8x128xf32>
    %228 = arith.addf %227, %226 : vector<8x128xf32>
    %229 = arith.divf %227, %228 : vector<8x128xf32>
    %230 = arith.mulf %221, %188 : vector<8x128xf32>
    %231 = arith.mulf %215, %223 : vector<8x128xf32>
    %232 = arith.addf %230, %231 : vector<8x128xf32>
    %233 = math.tanh %232 : vector<8x128xf32>
    %234 = arith.mulf %229, %233 : vector<8x128xf32>
    %235 = arith.addf %234, %0 : vector<8x128xf32>
    %c5_i32 = arith.constant 5 : i32
    %cst_54 = arith.constant dense<0.000000e+00> : vector<8x640xf32>
    %236 = tpu.matmul %235, %2, %cst_54 {dimension_numbers = #tpu.dot_dimension_numbers<[1], [0], [0], [1], [0, 0, 1, 1], [], []>} : vector<8x128xf32>, vector<128x640xf32>, vector<8x640xf32> -> vector<8x640xf32>
    %237 = vector.extract_strided_slice %236 {offsets = [0, 0], sizes = [8, 128], strides = [1, 1]} : vector<8x640xf32> to vector<8x128xf32>
    %238 = vector.extract_strided_slice %236 {offsets = [0, 128], sizes = [8, 512], strides = [1, 1]} : vector<8x640xf32> to vector<8x512xf32>
    %239 = arith.addf %237, %14 : vector<8x128xf32>
    %cst_55 = arith.constant dense<0xFF800000> : vector<8xf32>
    %240 = vector.multi_reduction <maximumf>, %239, %cst_55 [1] : vector<8x128xf32> to vector<8xf32>
    %241 = vector.shape_cast %240 : vector<8xf32> to vector<8x1xf32>
    %242 = vector.broadcast %241 : vector<8x1xf32> to vector<8x128xf32>
    %243 = arith.subf %239, %242 : vector<8x128xf32>
    %244 = math.exp %243 : vector<8x128xf32>
    %cst_56 = arith.constant dense<0.000000e+00> : vector<8xf32>
    %245 = vector.multi_reduction <add>, %244, %cst_56 [1] : vector<8x128xf32> to vector<8xf32>
    %246 = vector.shape_cast %245 : vector<8xf32> to vector<8x1xf32>
    %247 = tpu.reciprocal %246 {approx = true} : vector<8x1xf32> -> vector<8x1xf32>
    %248 = vector.broadcast %247 : vector<8x1xf32> to vector<8x128xf32>
    %249 = arith.mulf %244, %248 : vector<8x128xf32>
    %cst_57 = arith.constant dense<0.000000e+00> : vector<8x128xf32>
    %250 = tpu.matmul %249, %1, %cst_57 {dimension_numbers = #tpu.dot_dimension_numbers<[1], [0], [0], [1], [0, 0, 1, 1], [], []>} : vector<8x128xf32>, vector<128x128xf32>, vector<8x128xf32> -> vector<8x128xf32>
    %251 = arith.addf %8, %238 : vector<8x512xf32>
    %cst_58 = arith.constant dense<0.000000e+00> : vector<8x512xf32>
    %252 = tpu.matmul %250, %4, %cst_58 {dimension_numbers = #tpu.dot_dimension_numbers<[1], [0], [0], [1], [0, 0, 1, 1], [], []>} : vector<8x128xf32>, vector<128x512xf32>, vector<8x512xf32> -> vector<8x512xf32>
    %253 = arith.addf %251, %252 : vector<8x512xf32>
    %254 = vector.extract_strided_slice %253 {offsets = [0, 0], sizes = [8, 128], strides = [1, 1]} : vector<8x512xf32> to vector<8x128xf32>
    %255 = arith.negf %254 : vector<8x128xf32>
    %256 = math.exp %255 : vector<8x128xf32>
    %cst_59 = arith.constant 1.000000e+00 : f32
    %257 = vector.broadcast %cst_59 : f32 to vector<8x128xf32>
    %258 = arith.addf %257, %256 : vector<8x128xf32>
    %259 = arith.divf %257, %258 : vector<8x128xf32>
    %260 = vector.extract_strided_slice %253 {offsets = [0, 128], sizes = [8, 128], strides = [1, 1]} : vector<8x512xf32> to vector<8x128xf32>
    %261 = arith.negf %260 : vector<8x128xf32>
    %262 = math.exp %261 : vector<8x128xf32>
    %cst_60 = arith.constant 1.000000e+00 : f32
    %263 = vector.broadcast %cst_60 : f32 to vector<8x128xf32>
    %264 = arith.addf %263, %262 : vector<8x128xf32>
    %265 = arith.divf %263, %264 : vector<8x128xf32>
    %266 = vector.extract_strided_slice %253 {offsets = [0, 256], sizes = [8, 128], strides = [1, 1]} : vector<8x512xf32> to vector<8x128xf32>
    %267 = math.tanh %266 : vector<8x128xf32>
    %268 = vector.extract_strided_slice %253 {offsets = [0, 384], sizes = [8, 128], strides = [1, 1]} : vector<8x512xf32> to vector<8x128xf32>
    %269 = arith.negf %268 : vector<8x128xf32>
    %270 = math.exp %269 : vector<8x128xf32>
    %cst_61 = arith.constant 1.000000e+00 : f32
    %271 = vector.broadcast %cst_61 : f32 to vector<8x128xf32>
    %272 = arith.addf %271, %270 : vector<8x128xf32>
    %273 = arith.divf %271, %272 : vector<8x128xf32>
    %274 = arith.mulf %265, %232 : vector<8x128xf32>
    %275 = arith.mulf %259, %267 : vector<8x128xf32>
    %276 = arith.addf %274, %275 : vector<8x128xf32>
    %277 = math.tanh %276 : vector<8x128xf32>
    %278 = arith.mulf %273, %277 : vector<8x128xf32>
    %279 = arith.addf %278, %0 : vector<8x128xf32>
    %c6_i32 = arith.constant 6 : i32
    %cst_62 = arith.constant dense<0.000000e+00> : vector<8x640xf32>
    %280 = tpu.matmul %279, %2, %cst_62 {dimension_numbers = #tpu.dot_dimension_numbers<[1], [0], [0], [1], [0, 0, 1, 1], [], []>} : vector<8x128xf32>, vector<128x640xf32>, vector<8x640xf32> -> vector<8x640xf32>
    %281 = vector.extract_strided_slice %280 {offsets = [0, 0], sizes = [8, 128], strides = [1, 1]} : vector<8x640xf32> to vector<8x128xf32>
    %282 = vector.extract_strided_slice %280 {offsets = [0, 128], sizes = [8, 512], strides = [1, 1]} : vector<8x640xf32> to vector<8x512xf32>
    %283 = arith.addf %281, %14 : vector<8x128xf32>
    %cst_63 = arith.constant dense<0xFF800000> : vector<8xf32>
    %284 = vector.multi_reduction <maximumf>, %283, %cst_63 [1] : vector<8x128xf32> to vector<8xf32>
    %285 = vector.shape_cast %284 : vector<8xf32> to vector<8x1xf32>
    %286 = vector.broadcast %285 : vector<8x1xf32> to vector<8x128xf32>
    %287 = arith.subf %283, %286 : vector<8x128xf32>
    %288 = math.exp %287 : vector<8x128xf32>
    %cst_64 = arith.constant dense<0.000000e+00> : vector<8xf32>
    %289 = vector.multi_reduction <add>, %288, %cst_64 [1] : vector<8x128xf32> to vector<8xf32>
    %290 = vector.shape_cast %289 : vector<8xf32> to vector<8x1xf32>
    %291 = tpu.reciprocal %290 {approx = true} : vector<8x1xf32> -> vector<8x1xf32>
    %292 = vector.broadcast %291 : vector<8x1xf32> to vector<8x128xf32>
    %293 = arith.mulf %288, %292 : vector<8x128xf32>
    %cst_65 = arith.constant dense<0.000000e+00> : vector<8x128xf32>
    %294 = tpu.matmul %293, %1, %cst_65 {dimension_numbers = #tpu.dot_dimension_numbers<[1], [0], [0], [1], [0, 0, 1, 1], [], []>} : vector<8x128xf32>, vector<128x128xf32>, vector<8x128xf32> -> vector<8x128xf32>
    %295 = arith.addf %8, %282 : vector<8x512xf32>
    %cst_66 = arith.constant dense<0.000000e+00> : vector<8x512xf32>
    %296 = tpu.matmul %294, %4, %cst_66 {dimension_numbers = #tpu.dot_dimension_numbers<[1], [0], [0], [1], [0, 0, 1, 1], [], []>} : vector<8x128xf32>, vector<128x512xf32>, vector<8x512xf32> -> vector<8x512xf32>
    %297 = arith.addf %295, %296 : vector<8x512xf32>
    %298 = vector.extract_strided_slice %297 {offsets = [0, 0], sizes = [8, 128], strides = [1, 1]} : vector<8x512xf32> to vector<8x128xf32>
    %299 = arith.negf %298 : vector<8x128xf32>
    %300 = math.exp %299 : vector<8x128xf32>
    %cst_67 = arith.constant 1.000000e+00 : f32
    %301 = vector.broadcast %cst_67 : f32 to vector<8x128xf32>
    %302 = arith.addf %301, %300 : vector<8x128xf32>
    %303 = arith.divf %301, %302 : vector<8x128xf32>
    %304 = vector.extract_strided_slice %297 {offsets = [0, 128], sizes = [8, 128], strides = [1, 1]} : vector<8x512xf32> to vector<8x128xf32>
    %305 = arith.negf %304 : vector<8x128xf32>
    %306 = math.exp %305 : vector<8x128xf32>
    %cst_68 = arith.constant 1.000000e+00 : f32
    %307 = vector.broadcast %cst_68 : f32 to vector<8x128xf32>
    %308 = arith.addf %307, %306 : vector<8x128xf32>
    %309 = arith.divf %307, %308 : vector<8x128xf32>
    %310 = vector.extract_strided_slice %297 {offsets = [0, 256], sizes = [8, 128], strides = [1, 1]} : vector<8x512xf32> to vector<8x128xf32>
    %311 = math.tanh %310 : vector<8x128xf32>
    %312 = vector.extract_strided_slice %297 {offsets = [0, 384], sizes = [8, 128], strides = [1, 1]} : vector<8x512xf32> to vector<8x128xf32>
    %313 = arith.negf %312 : vector<8x128xf32>
    %314 = math.exp %313 : vector<8x128xf32>
    %cst_69 = arith.constant 1.000000e+00 : f32
    %315 = vector.broadcast %cst_69 : f32 to vector<8x128xf32>
    %316 = arith.addf %315, %314 : vector<8x128xf32>
    %317 = arith.divf %315, %316 : vector<8x128xf32>
    %318 = arith.mulf %309, %276 : vector<8x128xf32>
    %319 = arith.mulf %303, %311 : vector<8x128xf32>
    %320 = arith.addf %318, %319 : vector<8x128xf32>
    %321 = math.tanh %320 : vector<8x128xf32>
    %322 = arith.mulf %317, %321 : vector<8x128xf32>
    %323 = arith.addf %322, %0 : vector<8x128xf32>
    %c7_i32 = arith.constant 7 : i32
    %cst_70 = arith.constant dense<0.000000e+00> : vector<8x640xf32>
    %324 = tpu.matmul %323, %2, %cst_70 {dimension_numbers = #tpu.dot_dimension_numbers<[1], [0], [0], [1], [0, 0, 1, 1], [], []>} : vector<8x128xf32>, vector<128x640xf32>, vector<8x640xf32> -> vector<8x640xf32>
    %325 = vector.extract_strided_slice %324 {offsets = [0, 0], sizes = [8, 128], strides = [1, 1]} : vector<8x640xf32> to vector<8x128xf32>
    %326 = vector.extract_strided_slice %324 {offsets = [0, 128], sizes = [8, 512], strides = [1, 1]} : vector<8x640xf32> to vector<8x512xf32>
    %327 = arith.addf %325, %14 : vector<8x128xf32>
    %cst_71 = arith.constant dense<0xFF800000> : vector<8xf32>
    %328 = vector.multi_reduction <maximumf>, %327, %cst_71 [1] : vector<8x128xf32> to vector<8xf32>
    %329 = vector.shape_cast %328 : vector<8xf32> to vector<8x1xf32>
    %330 = vector.broadcast %329 : vector<8x1xf32> to vector<8x128xf32>
    %331 = arith.subf %327, %330 : vector<8x128xf32>
    %332 = math.exp %331 : vector<8x128xf32>
    %cst_72 = arith.constant dense<0.000000e+00> : vector<8xf32>
    %333 = vector.multi_reduction <add>, %332, %cst_72 [1] : vector<8x128xf32> to vector<8xf32>
    %334 = vector.shape_cast %333 : vector<8xf32> to vector<8x1xf32>
    %335 = tpu.reciprocal %334 {approx = true} : vector<8x1xf32> -> vector<8x1xf32>
    %336 = vector.broadcast %335 : vector<8x1xf32> to vector<8x128xf32>
    %337 = arith.mulf %332, %336 : vector<8x128xf32>
    %cst_73 = arith.constant dense<0.000000e+00> : vector<8x128xf32>
    %338 = tpu.matmul %337, %1, %cst_73 {dimension_numbers = #tpu.dot_dimension_numbers<[1], [0], [0], [1], [0, 0, 1, 1], [], []>} : vector<8x128xf32>, vector<128x128xf32>, vector<8x128xf32> -> vector<8x128xf32>
    %339 = arith.addf %8, %326 : vector<8x512xf32>
    %cst_74 = arith.constant dense<0.000000e+00> : vector<8x512xf32>
    %340 = tpu.matmul %338, %4, %cst_74 {dimension_numbers = #tpu.dot_dimension_numbers<[1], [0], [0], [1], [0, 0, 1, 1], [], []>} : vector<8x128xf32>, vector<128x512xf32>, vector<8x512xf32> -> vector<8x512xf32>
    %341 = arith.addf %339, %340 : vector<8x512xf32>
    %342 = vector.extract_strided_slice %341 {offsets = [0, 0], sizes = [8, 128], strides = [1, 1]} : vector<8x512xf32> to vector<8x128xf32>
    %343 = arith.negf %342 : vector<8x128xf32>
    %344 = math.exp %343 : vector<8x128xf32>
    %cst_75 = arith.constant 1.000000e+00 : f32
    %345 = vector.broadcast %cst_75 : f32 to vector<8x128xf32>
    %346 = arith.addf %345, %344 : vector<8x128xf32>
    %347 = arith.divf %345, %346 : vector<8x128xf32>
    %348 = vector.extract_strided_slice %341 {offsets = [0, 128], sizes = [8, 128], strides = [1, 1]} : vector<8x512xf32> to vector<8x128xf32>
    %349 = arith.negf %348 : vector<8x128xf32>
    %350 = math.exp %349 : vector<8x128xf32>
    %cst_76 = arith.constant 1.000000e+00 : f32
    %351 = vector.broadcast %cst_76 : f32 to vector<8x128xf32>
    %352 = arith.addf %351, %350 : vector<8x128xf32>
    %353 = arith.divf %351, %352 : vector<8x128xf32>
    %354 = vector.extract_strided_slice %341 {offsets = [0, 256], sizes = [8, 128], strides = [1, 1]} : vector<8x512xf32> to vector<8x128xf32>
    %355 = math.tanh %354 : vector<8x128xf32>
    %356 = vector.extract_strided_slice %341 {offsets = [0, 384], sizes = [8, 128], strides = [1, 1]} : vector<8x512xf32> to vector<8x128xf32>
    %357 = arith.negf %356 : vector<8x128xf32>
    %358 = math.exp %357 : vector<8x128xf32>
    %cst_77 = arith.constant 1.000000e+00 : f32
    %359 = vector.broadcast %cst_77 : f32 to vector<8x128xf32>
    %360 = arith.addf %359, %358 : vector<8x128xf32>
    %361 = arith.divf %359, %360 : vector<8x128xf32>
    %362 = arith.mulf %353, %320 : vector<8x128xf32>
    %363 = arith.mulf %347, %355 : vector<8x128xf32>
    %364 = arith.addf %362, %363 : vector<8x128xf32>
    %365 = math.tanh %364 : vector<8x128xf32>
    %366 = arith.mulf %361, %365 : vector<8x128xf32>
    %367 = arith.addf %366, %0 : vector<8x128xf32>
    %c0_78 = arith.constant 0 : index
    %c0_79 = arith.constant 0 : index
    %368 = vector.load %arg7[%c0_78, %c0_79] : memref<8x128xf32, #tpu.memory_space<vmem>>, vector<8x128xf32>
    tpu.vector_store %arg7[%c0_78, %c0_79], %367 {strides = array<i32>} : memref<8x128xf32, #tpu.memory_space<vmem>>, vector<8x128xf32>,
    return
  }
  func.func @transform_0(%arg0: i32) -> (i32, i32) {
    %c0_i32 = arith.constant 0 : i32
    %c0_i32_0 = arith.constant 0 : i32
    return %arg0, %c0_i32 : i32, i32
  }
  func.func @transform_1(%arg0: i32) -> (i32, i32) {
    %c0_i32 = arith.constant 0 : i32
    %c0_i32_0 = arith.constant 0 : i32
    %c0_i32_1 = arith.constant 0 : i32
    return %c0_i32, %c0_i32_0 : i32, i32
  }
  func.func @transform_2(%arg0: i32) -> (i32, i32) {
    %c0_i32 = arith.constant 0 : i32
    %c0_i32_0 = arith.constant 0 : i32
    %c0_i32_1 = arith.constant 0 : i32
    return %c0_i32, %c0_i32_0 : i32, i32
  }
  func.func @transform_3(%arg0: i32) -> (i32, i32) {
    %c0_i32 = arith.constant 0 : i32
    %c0_i32_0 = arith.constant 0 : i32
    %c0_i32_1 = arith.constant 0 : i32
    return %c0_i32, %c0_i32_0 : i32, i32
  }
  func.func @transform_4(%arg0: i32) -> (i32, i32) {
    %c0_i32 = arith.constant 0 : i32
    %c0_i32_0 = arith.constant 0 : i32
    %c0_i32_1 = arith.constant 0 : i32
    return %c0_i32, %c0_i32_0 : i32, i32
  }
  func.func @transform_5(%arg0: i32) -> (i32, i32) {
    %c0_i32 = arith.constant 0 : i32
    %c0_i32_0 = arith.constant 0 : i32
    %c0_i32_1 = arith.constant 0 : i32
    return %c0_i32, %c0_i32_0 : i32, i32
  }
  func.func @transform_6(%arg0: i32) -> (i32, i32) {
    %c0_i32 = arith.constant 0 : i32
    %c0_i32_0 = arith.constant 0 : i32
    return %arg0, %c0_i32 : i32, i32
  }
}

</mosaic_0001>

<llo_original>
// kernel: tpu_custom_call.1
$region0: #{tpu_custom_call.1}
  #allocation0 [shape = 'u32[]', space=smem, size = 0x4, offset = 0x4, fixed_abs, tag = 'smem constant byte address 0x4 - core index']
  #allocation1 [shape = 'u32[144,128]{1,0:T(1,128)}', space=vmem, size = 0x12000, scoped, tag = 'internal scratch']
  %s0 = inlined_call_operand.hbm [shape: f32[8,128], index: 0, kind: input, shape index: {}]
  %s1 = inlined_call_operand.hbm [shape: f32[128,128], index: 1, kind: input, shape index: {}]
  %s2 = inlined_call_operand.hbm [shape: f32[128,640], index: 2, kind: input, shape index: {}]
  %s3 = inlined_call_operand.hbm [shape: f32[128,512], index: 3, kind: input, shape index: {}]
  %s4 = inlined_call_operand.hbm [shape: f32[128,512], index: 4, kind: input, shape index: {}]
  %s5 = inlined_call_operand.vmem [shape: f32[1,512], index: 5, kind: input, shape index: {}]
  %s6 = inlined_call_operand.hbm [shape: f32[8,128], index: 6, kind: output, shape index: {}]
  %s7 = sld [smem:[#allocation0]]
  $region54: #{tpu_custom_call.1} parent=0
    _
  %s9 = ssub.s32 1, %s7
  %s10 = scalar_select 0, %s9, %s7
  $region1: #{tpu_custom_call.1} parent=0
    #allocation2 [shape = 'u8[4096]{0}', space=vmem, size = 0x1000, scoped, tag = 'input window, operand 0, single buffered']
    #allocation3 [shape = 's32[1]{0}', space=sflag, size = 0x4, scoped, tag = 'scoped memory for tpu_custom_call.1']
    #allocation4 [shape = 's32[1]{0}', space=sflag, size = 0x4, scoped, tag = 'scoped memory for tpu_custom_call.1']
    #allocation5 [shape = 'u8[65536]{0}', space=vmem, size = 0x10000, scoped, tag = 'input window, operand 1, single buffered']
    #allocation6 [shape = 's32[1]{0}', space=sflag, size = 0x4, scoped, tag = 'scoped memory for tpu_custom_call.1']
    #allocation7 [shape = 'u8[327680]{0}', space=vmem, size = 0x50000, scoped, tag = 'input window, operand 2, single buffered']
    #allocation8 [shape = 'u8[262144]{0}', space=vmem, size = 0x40000, scoped, tag = 'input window, operand 3, single buffered']
    #allocation9 [shape = 's32[1]{0}', space=sflag, size = 0x4, scoped, tag = 'scoped memory for tpu_custom_call.1']
    #allocation10 [shape = 'u8[262144]{0}', space=vmem, size = 0x40000, scoped, tag = 'input window, operand 4, single buffered']
    #allocation11 [shape = 'u8[4096]{0}', space=vmem, size = 0x1000, scoped, tag = 'output window, operand 0, single buffered']
    %11 = vsyncpa [#allocation3], 0
    %12 = vsyncpa [#allocation6], 0
    %13 = vsyncpa [#allocation9], 0
    %14 = vsyncpa [#allocation4], 0
    // Predicated region
    $region2: #{tpu_custom_call.1} parent=1 // pred_check
      _
    $region3: #{tpu_custom_call.1} parent=1 // pred_check_branch
      %16 = sbr.rel (0) target = $region5
    $region4: #{tpu_custom_call.1} parent=1 // pred_region
      %s18 = ssub.s32 128, 128
      %19 = vsyncadd [#allocation3], %s18
      %s21 = sshll.u32 [#allocation2], 4
      %s22 = int_to_ptr.vmem [resolvable:$true] %s21
      %24 = dma.hbm_to_vmem [thread:$0]  %s0, 128, %s22, [#allocation3]
    $region5: #{tpu_custom_call.1} parent=1 // pred_fallthru
      _
    // Predicated region
    $region6: #{tpu_custom_call.1} parent=1 // pred_check
      _
    $region7: #{tpu_custom_call.1} parent=1 // pred_check_branch
      %26 = sbr.rel (0) target = $region9
    $region8: #{tpu_custom_call.1} parent=1 // pred_region
      %s28 = ssub.s32 2048, 2048
      %29 = vsyncadd [#allocation6], %s28
      %s30 = sshll.u32 [#allocation5], 4
      %s31 = int_to_ptr.vmem [resolvable:$true] %s30
      %36 = dma.hbm_to_vmem [thread:$0]  %s1, 2048, %s31, [#allocation6], 128, 128, 8
    $region9: #{tpu_custom_call.1} parent=1 // pred_fallthru
      _
    // Predicated region
    $region10: #{tpu_custom_call.1} parent=1 // pred_check
      _
    $region11: #{tpu_custom_call.1} parent=1 // pred_check_branch
      %38 = sbr.rel (0) target = $region13
    $region12: #{tpu_custom_call.1} parent=1 // pred_region
      %s40 = ssub.s32 10240, 10240
      %41 = vsyncadd [#allocation6], %s40
      %s42 = sshll.u32 [#allocation7], 4
      %s43 = int_to_ptr.vmem [resolvable:$true] %s42
      %48 = dma.hbm_to_vmem [thread:$0]  %s2, 10240, %s43, [#allocation6], 640, 640, 40
    $region13: #{tpu_custom_call.1} parent=1 // pred_fallthru
      _
    // Predicated region
    $region14: #{tpu_custom_call.1} parent=1 // pred_check
      _
    $region15: #{tpu_custom_call.1} parent=1 // pred_check_branch
      %50 = sbr.rel (0) target = $region17
    $region16: #{tpu_custom_call.1} parent=1 // pred_region
      %s52 = ssub.s32 8192, 8192
      %53 = vsyncadd [#allocation9], %s52
      %s54 = sshll.u32 [#allocation8], 4
      %s55 = int_to_ptr.vmem [resolvable:$true] %s54
      %60 = dma.hbm_to_vmem [thread:$0]  %s3, 8192, %s55, [#allocation9], 512, 512, 32
    $region17: #{tpu_custom_call.1} parent=1 // pred_fallthru
      _
    // Predicated region
    $region18: #{tpu_custom_call.1} parent=1 // pred_check
      _
    $region19: #{tpu_custom_call.1} parent=1 // pred_check_branch
      %62 = sbr.rel (0) target = $region21
    $region20: #{tpu_custom_call.1} parent=1 // pred_region
      %s64 = ssub.s32 8192, 8192
      %65 = vsyncadd [#allocation9], %s64
      %s66 = sshll.u32 [#allocation10], 4
      %s67 = int_to_ptr.vmem [resolvable:$true] %s66
      %72 = dma.hbm_to_vmem [thread:$0]  %s4, 8192, %s67, [#allocation9], 512, 512, 32
    $region21: #{tpu_custom_call.1} parent=1 // pred_fallthru
      _
    // Predicated region
    $region22: #{tpu_custom_call.1} parent=1 // pred_check
      _
    $region23: #{tpu_custom_call.1} parent=1 // pred_check_branch
      %74 = sbr.rel (0) target = $region25
    $region24: #{tpu_custom_call.1} parent=1 // pred_region
      _
    $region25: #{tpu_custom_call.1} parent=1 // pred_fallthru
      _
    // Predicated region
    $region26: #{tpu_custom_call.1} parent=1 // pred_check
      _
    $region27: #{tpu_custom_call.1} parent=1 // pred_check_branch
      %76 = sbr.rel (0) target = $region29
    $region28: #{tpu_custom_call.1} parent=1 // pred_region
      %77 = dma.done [#allocation3], 128
    $region29: #{tpu_custom_call.1} parent=1 // pred_fallthru
      _
    // Predicated region
    $region30: #{tpu_custom_call.1} parent=1 // pred_check
      _
    $region31: #{tpu_custom_call.1} parent=1 // pred_check_branch
      %79 = sbr.rel (0) target = $region33
    $region32: #{tpu_custom_call.1} parent=1 // pred_region
      %80 = dma.done [#allocation6], 2048
    $region33: #{tpu_custom_call.1} parent=1 // pred_fallthru
      _
    // Predicated region
    $region34: #{tpu_custom_call.1} parent=1 // pred_check
      _
    $region35: #{tpu_custom_call.1} parent=1 // pred_check_branch
      %82 = sbr.rel (0) target = $region37
    $region36: #{tpu_custom_call.1} parent=1 // pred_region
      %83 = dma.done [#allocation6], 10240
    $region37: #{tpu_custom_call.1} parent=1 // pred_fallthru
      _
    // Predicated region
    $region38: #{tpu_custom_call.1} parent=1 // pred_check
      _
    $region39: #{tpu_custom_call.1} parent=1 // pred_check_branch
      %85 = sbr.rel (0) target = $region41
    $region40: #{tpu_custom_call.1} parent=1 // pred_region
      %86 = dma.done [#allocation9], 8192
    $region41: #{tpu_custom_call.1} parent=1 // pred_fallthru
      _
    // Predicated region
    $region42: #{tpu_custom_call.1} parent=1 // pred_check
      _
    $region43: #{tpu_custom_call.1} parent=1 // pred_check_branch
      %88 = sbr.rel (0) target = $region45
    $region44: #{tpu_custom_call.1} parent=1 // pred_region
      %89 = dma.done [#allocation9], 8192
    $region45: #{tpu_custom_call.1} parent=1 // pred_fallthru
      _
    %v90 = vld [vmem:[#allocation2] sm:$0xff]
    %v91 = vld [vmem:[#allocation5] sm:$0xff]
    %v92 = vld [vmem:[#allocation5 + $0x8] sm:$0xff]
    %v93 = vld [vmem:[#allocation5 + $0x10] sm:$0xff]
    %v94 = vld [vmem:[#allocation5 + $0x18] sm:$0xff]
    %v95 = vld [vmem:[#allocation5 + $0x20] sm:$0xff]
    %v96 = vld [vmem:[#allocation5 + $0x28] sm:$0xff]
    %v97 = vld [vmem:[#allocation5 + $0x30] sm:$0xff]
    %v98 = vld [vmem:[#allocation5 + $0x38] sm:$0xff]
    %v99 = vld [vmem:[#allocation5 + $0x40] sm:$0xff]
    %v100 = vld [vmem:[#allocation5 + $0x48] sm:$0xff]
    %v101 = vld [vmem:[#allocation5 + $0x50] sm:$0xff]
    %v102 = vld [vmem:[#allocation5 + $0x58] sm:$0xff]
    %v103 = vld [vmem:[#allocation5 + $0x60] sm:$0xff]
    %v104 = vld [vmem:[#allocation5 + $0x68] sm:$0xff]
    %v105 = vld [vmem:[#allocation5 + $0x70] sm:$0xff]
    %v106 = vld [vmem:[#allocation5 + $0x78] sm:$0xff]
    %v107 = vld [vmem:[#allocation7] sm:$0xff]
    %v108 = vld [vmem:[#allocation7 + $0x8] sm:$0xff]
    %v109 = vld [vmem:[#allocation7 + $0x10] sm:$0xff]
    %v110 = vld [vmem:[#allocation7 + $0x18] sm:$0xff]
    %v111 = vld [vmem:[#allocation7 + $0x20] sm:$0xff]
    %v112 = vld [vmem:[#allocation7 + $0x28] sm:$0xff]
    %v113 = vld [vmem:[#allocation7 + $0x30] sm:$0xff]
    %v114 = vld [vmem:[#allocation7 + $0x38] sm:$0xff]
    %v115 = vld [vmem:[#allocation7 + $0x40] sm:$0xff]
    %v116 = vld [vmem:[#allocation7 + $0x48] sm:$0xff]
    %v117 = vld [vmem:[#allocation7 + $0x50] sm:$0xff]
    %v118 = vld [vmem:[#allocation7 + $0x58] sm:$0xff]
    %v119 = vld [vmem:[#allocation7 + $0x60] sm:$0xff]
    %v120 = vld [vmem:[#allocation7 + $0x68] sm:$0xff]
    %v121 = vld [vmem:[#allocation7 + $0x70] sm:$0xff]
    %v122 = vld [vmem:[#allocation7 + $0x78] sm:$0xff]
    %v123 = vld [vmem:[#allocation7 + $0x80] sm:$0xff]
    %v124 = vld [vmem:[#allocation7 + $0x88] sm:$0xff]
    %v125 = vld [vmem:[#allocation7 + $0x90] sm:$0xff]
    %v126 = vld [vmem:[#allocation7 + $0x98] sm:$0xff]
    %v127 = vld [vmem:[#allocation7 + $0xa0] sm:$0xff]
    %v128 = vld [vmem:[#allocation7 + $0xa8] sm:$0xff]
    %v129 = vld [vmem:[#allocation7 + $0xb0] sm:$0xff]
    %v130 = vld [vmem:[#allocation7 + $0xb8] sm:$0xff]
    %v131 = vld [vmem:[#allocation7 + $0xc0] sm:$0xff]
    %v132 = vld [vmem:[#allocation7 + $0xc8] sm:$0xff]
    %v133 = vld [vmem:[#allocation7 + $0xd0] sm:$0xff]
    %v134 = vld [vmem:[#allocation7 + $0xd8] sm:$0xff]
    %v135 = vld [vmem:[#allocation7 + $0xe0] sm:$0xff]
    %v136 = vld [vmem:[#allocation7 + $0xe8] sm:$0xff]
    %v137 = vld [vmem:[#allocation7 + $0xf0] sm:$0xff]
    %v138 = vld [vmem:[#allocation7 + $0xf8] sm:$0xff]
    %v139 = vld [vmem:[#allocation7 + $0x100] sm:$0xff]
    %v140 = vld [vmem:[#allocation7 + $0x108] sm:$0xff]
    %v141 = vld [vmem:[#allocation7 + $0x110] sm:$0xff]
    %v142 = vld [vmem:[#allocation7 + $0x118] sm:$0xff]
    %v143 = vld [vmem:[#allocation7 + $0x120] sm:$0xff]
    %v144 = vld [vmem:[#allocation7 + $0x128] sm:$0xff]
    %v145 = vld [vmem:[#allocation7 + $0x130] sm:$0xff]
    %v146 = vld [vmem:[#allocation7 + $0x138] sm:$0xff]
    %v147 = vld [vmem:[#allocation7 + $0x140] sm:$0xff]
    %v148 = vld [vmem:[#allocation7 + $0x148] sm:$0xff]
    %v149 = vld [vmem:[#allocation7 + $0x150] sm:$0xff]
    %v150 = vld [vmem:[#allocation7 + $0x158] sm:$0xff]
    %v151 = vld [vmem:[#allocation7 + $0x160] sm:$0xff]
    %v152 = vld [vmem:[#allocation7 + $0x168] sm:$0xff]
    %v153 = vld [vmem:[#allocation7 + $0x170] sm:$0xff]
    %v154 = vld [vmem:[#allocation7 + $0x178] sm:$0xff]
    %v155 = vld [vmem:[#allocation7 + $0x180] sm:$0xff]
    %v156 = vld [vmem:[#allocation7 + $0x188] sm:$0xff]
    %v157 = vld [vmem:[#allocation7 + $0x190] sm:$0xff]
    %v158 = vld [vmem:[#allocation7 + $0x198] sm:$0xff]
    %v159 = vld [vmem:[#allocation7 + $0x1a0] sm:$0xff]
    %v160 = vld [vmem:[#allocation7 + $0x1a8] sm:$0xff]
    %v161 = vld [vmem:[#allocation7 + $0x1b0] sm:$0xff]
    %v162 = vld [vmem:[#allocation7 + $0x1b8] sm:$0xff]
    %v163 = vld [vmem:[#allocation7 + $0x1c0] sm:$0xff]
    %v164 = vld [vmem:[#allocation7 + $0x1c8] sm:$0xff]
    %v165 = vld [vmem:[#allocation7 + $0x1d0] sm:$0xff]
    %v166 = vld [vmem:[#allocation7 + $0x1d8] sm:$0xff]
    %v167 = vld [vmem:[#allocation7 + $0x1e0] sm:$0xff]
    %v168 = vld [vmem:[#allocation7 + $0x1e8] sm:$0xff]
    %v169 = vld [vmem:[#allocation7 + $0x1f0] sm:$0xff]
    %v170 = vld [vmem:[#allocation7 + $0x1f8] sm:$0xff]
    %v171 = vld [vmem:[#allocation7 + $0x200] sm:$0xff]
    %v172 = vld [vmem:[#allocation7 + $0x208] sm:$0xff]
    %v173 = vld [vmem:[#allocation7 + $0x210] sm:$0xff]
    %v174 = vld [vmem:[#allocation7 + $0x218] sm:$0xff]
    %v175 = vld [vmem:[#allocation7 + $0x220] sm:$0xff]
    %v176 = vld [vmem:[#allocation7 + $0x228] sm:$0xff]
    %v177 = vld [vmem:[#allocation7 + $0x230] sm:$0xff]
    %v178 = vld [vmem:[#allocation7 + $0x238] sm:$0xff]
    %v179 = vld [vmem:[#allocation7 + $0x240] sm:$0xff]
    %v180 = vld [vmem:[#allocation7 + $0x248] sm:$0xff]
    %v181 = vld [vmem:[#allocation7 + $0x250] sm:$0xff]
    %v182 = vld [vmem:[#allocation7 + $0x258] sm:$0xff]
    %v183 = vld [vmem:[#allocation7 + $0x260] sm:$0xff]
    %v184 = vld [vmem:[#allocation7 + $0x268] sm:$0xff]
    %v185 = vld [vmem:[#allocation7 + $0x270] sm:$0xff]
    %v186 = vld [vmem:[#allocation7 + $0x278] sm:$0xff]
    %v187 = vld [vmem:[#allocation8] sm:$0xff]
    %v188 = vld [vmem:[#allocation8 + $0x8] sm:$0xff]
    %v189 = vld [vmem:[#allocation8 + $0x10] sm:$0xff]
    %v190 = vld [vmem:[#allocation8 + $0x18] sm:$0xff]
    %v191 = vld [vmem:[#allocation8 + $0x20] sm:$0xff]
    %v192 = vld [vmem:[#allocation8 + $0x28] sm:$0xff]
    %v193 = vld [vmem:[#allocation8 + $0x30] sm:$0xff]
    %v194 = vld [vmem:[#allocation8 + $0x38] sm:$0xff]
    %v195 = vld [vmem:[#allocation8 + $0x40] sm:$0xff]
    %v196 = vld [vmem:[#allocation8 + $0x48] sm:$0xff]
    %v197 = vld [vmem:[#allocation8 + $0x50] sm:$0xff]
    %v198 = vld [vmem:[#allocation8 + $0x58] sm:$0xff]
    %v199 = vld [vmem:[#allocation8 + $0x60] sm:$0xff]
    %v200 = vld [vmem:[#allocation8 + $0x68] sm:$0xff]
    %v201 = vld [vmem:[#allocation8 + $0x70] sm:$0xff]
    %v202 = vld [vmem:[#allocation8 + $0x78] sm:$0xff]
    %v203 = vld [vmem:[#allocation8 + $0x80] sm:$0xff]
    %v204 = vld [vmem:[#allocation8 + $0x88] sm:$0xff]
    %v205 = vld [vmem:[#allocation8 + $0x90] sm:$0xff]
    %v206 = vld [vmem:[#allocation8 + $0x98] sm:$0xff]
    %v207 = vld [vmem:[#allocation8 + $0xa0] sm:$0xff]
    %v208 = vld [vmem:[#allocation8 + $0xa8] sm:$0xff]
    %v209 = vld [vmem:[#allocation8 + $0xb0] sm:$0xff]
    %v210 = vld [vmem:[#allocation8 + $0xb8] sm:$0xff]
    %v211 = vld [vmem:[#allocation8 + $0xc0] sm:$0xff]
    %v212 = vld [vmem:[#allocation8 + $0xc8] sm:$0xff]
    %v213 = vld [vmem:[#allocation8 + $0xd0] sm:$0xff]
    %v214 = vld [vmem:[#allocation8 + $0xd8] sm:$0xff]
    %v215 = vld [vmem:[#allocation8 + $0xe0] sm:$0xff]
    %v216 = vld [vmem:[#allocation8 + $0xe8] sm:$0xff]
    %v217 = vld [vmem:[#allocation8 + $0xf0] sm:$0xff]
    %v218 = vld [vmem:[#allocation8 + $0xf8] sm:$0xff]
    %v219 = vld [vmem:[#allocation8 + $0x100] sm:$0xff]
    %v220 = vld [vmem:[#allocation8 + $0x108] sm:$0xff]
    %v221 = vld [vmem:[#allocation8 + $0x110] sm:$0xff]
    %v222 = vld [vmem:[#allocation8 + $0x118] sm:$0xff]
    %v223 = vld [vmem:[#allocation8 + $0x120] sm:$0xff]
    %v224 = vld [vmem:[#allocation8 + $0x128] sm:$0xff]
    %v225 = vld [vmem:[#allocation8 + $0x130] sm:$0xff]
    %v226 = vld [vmem:[#allocation8 + $0x138] sm:$0xff]
    %v227 = vld [vmem:[#allocation8 + $0x140] sm:$0xff]
    %v228 = vld [vmem:[#allocation8 + $0x148] sm:$0xff]
    %v229 = vld [vmem:[#allocation8 + $0x150] sm:$0xff]
    %v230 = vld [vmem:[#allocation8 + $0x158] sm:$0xff]
    %v231 = vld [vmem:[#allocation8 + $0x160] sm:$0xff]
    %v232 = vld [vmem:[#allocation8 + $0x168] sm:$0xff]
    %v233 = vld [vmem:[#allocation8 + $0x170] sm:$0xff]
    %v234 = vld [vmem:[#allocation8 + $0x178] sm:$0xff]
    %v235 = vld [vmem:[#allocation8 + $0x180] sm:$0xff]
    %v236 = vld [vmem:[#allocation8 + $0x188] sm:$0xff]
    %v237 = vld [vmem:[#allocation8 + $0x190] sm:$0xff]
    %v238 = vld [vmem:[#allocation8 + $0x198] sm:$0xff]
    %v239 = vld [vmem:[#allocation8 + $0x1a0] sm:$0xff]
    %v240 = vld [vmem:[#allocation8 + $0x1a8] sm:$0xff]
    %v241 = vld [vmem:[#allocation8 + $0x1b0] sm:$0xff]
    %v242 = vld [vmem:[#allocation8 + $0x1b8] sm:$0xff]
    %v243 = vld [vmem:[#allocation8 + $0x1c0] sm:$0xff]
    %v244 = vld [vmem:[#allocation8 + $0x1c8] sm:$0xff]
    %v245 = vld [vmem:[#allocation8 + $0x1d0] sm:$0xff]
    %v246 = vld [vmem:[#allocation8 + $0x1d8] sm:$0xff]
    %v247 = vld [vmem:[#allocation8 + $0x1e0] sm:$0xff]
    %v248 = vld [vmem:[#allocation8 + $0x1e8] sm:$0xff]
    %v249 = vld [vmem:[#allocation8 + $0x1f0] sm:$0xff]
    %v250 = vld [vmem:[#allocation8 + $0x1f8] sm:$0xff]
    %v251 = vld [vmem:[#allocation10] sm:$0xff]
    %v252 = vld [vmem:[#allocation10 + $0x8] sm:$0xff]
    %v253 = vld [vmem:[#allocation10 + $0x10] sm:$0xff]
    %v254 = vld [vmem:[#allocation10 + $0x18] sm:$0xff]
    %v255 = vld [vmem:[#allocation10 + $0x20] sm:$0xff]
    %v256 = vld [vmem:[#allocation10 + $0x28] sm:$0xff]
    %v257 = vld [vmem:[#allocation10 + $0x30] sm:$0xff]
    %v258 = vld [vmem:[#allocation10 + $0x38] sm:$0xff]
    %v259 = vld [vmem:[#allocation10 + $0x40] sm:$0xff]
    %v260 = vld [vmem:[#allocation10 + $0x48] sm:$0xff]
    %v261 = vld [vmem:[#allocation10 + $0x50] sm:$0xff]
    %v262 = vld [vmem:[#allocation10 + $0x58] sm:$0xff]
    %v263 = vld [vmem:[#allocation10 + $0x60] sm:$0xff]
    %v264 = vld [vmem:[#allocation10 + $0x68] sm:$0xff]
    %v265 = vld [vmem:[#allocation10 + $0x70] sm:$0xff]
    %v266 = vld [vmem:[#allocation10 + $0x78] sm:$0xff]
    %v267 = vld [vmem:[#allocation10 + $0x80] sm:$0xff]
    %v268 = vld [vmem:[#allocation10 + $0x88] sm:$0xff]
    %v269 = vld [vmem:[#allocation10 + $0x90] sm:$0xff]
    %v270 = vld [vmem:[#allocation10 + $0x98] sm:$0xff]
    %v271 = vld [vmem:[#allocation10 + $0xa0] sm:$0xff]
    %v272 = vld [vmem:[#allocation10 + $0xa8] sm:$0xff]
    %v273 = vld [vmem:[#allocation10 + $0xb0] sm:$0xff]
    %v274 = vld [vmem:[#allocation10 + $0xb8] sm:$0xff]
    %v275 = vld [vmem:[#allocation10 + $0xc0] sm:$0xff]
    %v276 = vld [vmem:[#allocation10 + $0xc8] sm:$0xff]
    %v277 = vld [vmem:[#allocation10 + $0xd0] sm:$0xff]
    %v278 = vld [vmem:[#allocation10 + $0xd8] sm:$0xff]
    %v279 = vld [vmem:[#allocation10 + $0xe0] sm:$0xff]
    %v280 = vld [vmem:[#allocation10 + $0xe8] sm:$0xff]
    %v281 = vld [vmem:[#allocation10 + $0xf0] sm:$0xff]
    %v282 = vld [vmem:[#allocation10 + $0xf8] sm:$0xff]
    %v283 = vld [vmem:[#allocation10 + $0x100] sm:$0xff]
    %v284 = vld [vmem:[#allocation10 + $0x108] sm:$0xff]
    %v285 = vld [vmem:[#allocation10 + $0x110] sm:$0xff]
    %v286 = vld [vmem:[#allocation10 + $0x118] sm:$0xff]
    %v287 = vld [vmem:[#allocation10 + $0x120] sm:$0xff]
    %v288 = vld [vmem:[#allocation10 + $0x128] sm:$0xff]
    %v289 = vld [vmem:[#allocation10 + $0x130] sm:$0xff]
    %v290 = vld [vmem:[#allocation10 + $0x138] sm:$0xff]
    %v291 = vld [vmem:[#allocation10 + $0x140] sm:$0xff]
    %v292 = vld [vmem:[#allocation10 + $0x148] sm:$0xff]
    %v293 = vld [vmem:[#allocation10 + $0x150] sm:$0xff]
    %v294 = vld [vmem:[#allocation10 + $0x158] sm:$0xff]
    %v295 = vld [vmem:[#allocation10 + $0x160] sm:$0xff]
    %v296 = vld [vmem:[#allocation10 + $0x168] sm:$0xff]
    %v297 = vld [vmem:[#allocation10 + $0x170] sm:$0xff]
    %v298 = vld [vmem:[#allocation10 + $0x178] sm:$0xff]
    %v299 = vld [vmem:[#allocation10 + $0x180] sm:$0xff]
    %v300 = vld [vmem:[#allocation10 + $0x188] sm:$0xff]
    %v301 = vld [vmem:[#allocation10 + $0x190] sm:$0xff]
    %v302 = vld [vmem:[#allocation10 + $0x198] sm:$0xff]
    %v303 = vld [vmem:[#allocation10 + $0x1a0] sm:$0xff]
    %v304 = vld [vmem:[#allocation10 + $0x1a8] sm:$0xff]
    %v305 = vld [vmem:[#allocation10 + $0x1b0] sm:$0xff]
    %v306 = vld [vmem:[#allocation10 + $0x1b8] sm:$0xff]
    %v307 = vld [vmem:[#allocation10 + $0x1c0] sm:$0xff]
    %v308 = vld [vmem:[#allocation10 + $0x1c8] sm:$0xff]
    %v309 = vld [vmem:[#allocation10 + $0x1d0] sm:$0xff]
    %v310 = vld [vmem:[#allocation10 + $0x1d8] sm:$0xff]
    %v311 = vld [vmem:[#allocation10 + $0x1e0] sm:$0xff]
    %v312 = vld [vmem:[#allocation10 + $0x1e8] sm:$0xff]
    %v313 = vld [vmem:[#allocation10 + $0x1f0] sm:$0xff]
    %v314 = vld [vmem:[#allocation10 + $0x1f8] sm:$0xff]
    %v315 = vld [vmem:[%s5] sm:$0xf]
    %v317 = vlaneseq
    %v318 = vshrl.u32 %v317, 7
    %v319 = vsub.s32 0, %v318
    %v320 = vrot.slane %v315, %v319
    %v321 = vlaneseq
    %v322 = vshrl.u32 %v321, 7
    %v323 = vsub.s32 1, %v322
    %v324 = vrot.slane %v315, %v323
    %v325 = vlaneseq
    %v326 = vshrl.u32 %v325, 7
    %v327 = vsub.s32 2, %v326
    %v328 = vrot.slane %v315, %v327
    %v329 = vlaneseq
    %v330 = vshrl.u32 %v329, 7
    %v331 = vsub.s32 3, %v330
    %v332 = vrot.slane %v315, %v331
    %337 = vmatprep.subr.mxu0 %v248
    %338 = vmatpush1.msra.mxu0 %v247
    %339 = vmatprep.subr.mxu0 %v244
    %340 = vmatpush1.msra.mxu0 %v243
    %341 = vmatprep.subr.mxu0 %v240
    %342 = vmatpush1.msra.mxu0 %v239
    %343 = vmatprep.subr.mxu0 %v236
    %344 = vmatpush1.msra.mxu0 %v235
    %345 = vmatprep.subr.mxu0 %v232
    %346 = vmatpush1.msra.mxu0 %v231
    %347 = vmatprep.subr.mxu0 %v228
    %348 = vmatpush1.msra.mxu0 %v227
    %349 = vmatprep.subr.mxu0 %v224
    %350 = vmatpush1.msra.mxu0 %v223
    %351 = vmatprep.subr.mxu0 %v220
    %352 = vmatpush1.msra.mxu0 %v219
    %353 = vmatprep.subr.mxu0 %v216
    %354 = vmatpush1.msra.mxu0 %v215
    %355 = vmatprep.subr.mxu0 %v212
    %356 = vmatpush1.msra.mxu0 %v211
    %357 = vmatprep.subr.mxu0 %v208
    %358 = vmatpush1.msra.mxu0 %v207
    %359 = vmatprep.subr.mxu0 %v204
    %360 = vmatpush1.msra.mxu0 %v203
    %361 = vmatprep.subr.mxu0 %v200
    %362 = vmatpush1.msra.mxu0 %v199
    %363 = vmatprep.subr.mxu0 %v196
    %364 = vmatpush1.msra.mxu0 %v195
    %365 = vmatprep.subr.mxu0 %v192
    %366 = vmatpush1.msra.mxu0 %v191
    %367 = vmatprep.subr.mxu0 %v188
    %368 = vmatpush1.msra.mxu0 %v187
    %369 = vmatprep.subr.mxu0 0.0
    %370 = vmatpush2.msra.mxu0 0.0
    %371 = vmatprep.subr.mxu0 0.0
    %372 = vmatpush2.msra.mxu0 0.0
    %373 = vmatprep.subr.mxu0 0.0
    %374 = vmatpush2.msra.mxu0 0.0
    %375 = vmatprep.subr.mxu0 0.0
    %376 = vmatpush2.msra.mxu0 0.0
    %377 = vmatprep.subr.mxu0 0.0
    %378 = vmatpush2.msra.mxu0 0.0
    %379 = vmatprep.subr.mxu0 0.0
    %380 = vmatpush2.msra.mxu0 0.0
    %381 = vmatprep.subr.mxu0 0.0
    %382 = vmatpush2.msra.mxu0 0.0
    %383 = vmatprep.subr.mxu0 0.0
    %384 = vmatpush2.msra.mxu0 0.0
    %385 = vmatprep.subr.mxu0 0.0
    %386 = vmatpush2.msra.mxu0 0.0
    %387 = vmatprep.subr.mxu0 0.0
    %388 = vmatpush2.msra.mxu0 0.0
    %389 = vmatprep.subr.mxu0 0.0
    %390 = vmatpush2.msra.mxu0 0.0
    %391 = vmatprep.subr.mxu0 0.0
    %392 = vmatpush2.msra.mxu0 0.0
    %393 = vmatprep.subr.mxu0 0.0
    %394 = vmatpush2.msra.mxu0 0.0
    %395 = vmatprep.subr.mxu0 0.0
    %396 = vmatpush2.msra.mxu0 0.0
    %397 = vmatprep.subr.mxu0 0.0
    %398 = vmatpush2.msra.mxu0 0.0
    %399 = vmatprep.subr.mxu0 0.0
    %400 = vmatpush2.msra.mxu0 0.0
    %401 = vmatprep.mubr.f32.mxu0 0.0
    %402 = vmatmul.mubr.f32.gmra.mxu0 %v90
    %v403 = vpop.f32.mrf.mxu0
    %v404 = vadd.f32 %v320, %v403
    %v405 = vpop.f32.mrf.mxu0
    %v406 = vadd.f32 %v324, %v405
    %407 = vdwg.mxu0
    %408 = vmatprep.subr.mxu0 %v250
    %409 = vmatpush1.msra.mxu0 %v249
    %410 = vmatprep.subr.mxu0 %v246
    %411 = vmatpush1.msra.mxu0 %v245
    %412 = vmatprep.subr.mxu0 %v242
    %413 = vmatpush1.msra.mxu0 %v241
    %414 = vmatprep.subr.mxu0 %v238
    %415 = vmatpush1.msra.mxu0 %v237
    %416 = vmatprep.subr.mxu0 %v234
    %417 = vmatpush1.msra.mxu0 %v233
    %418 = vmatprep.subr.mxu0 %v230
    %419 = vmatpush1.msra.mxu0 %v229
    %420 = vmatprep.subr.mxu0 %v226
    %421 = vmatpush1.msra.mxu0 %v225
    %422 = vmatprep.subr.mxu0 %v222
    %423 = vmatpush1.msra.mxu0 %v221
    %424 = vmatprep.subr.mxu0 %v218
    %425 = vmatpush1.msra.mxu0 %v217
    %426 = vmatprep.subr.mxu0 %v214
    %427 = vmatpush1.msra.mxu0 %v213
    %428 = vmatprep.subr.mxu0 %v210
    %429 = vmatpush1.msra.mxu0 %v209
    %430 = vmatprep.subr.mxu0 %v206
    %431 = vmatpush1.msra.mxu0 %v205
    %432 = vmatprep.subr.mxu0 %v202
    %433 = vmatpush1.msra.mxu0 %v201
    %434 = vmatprep.subr.mxu0 %v198
    %435 = vmatpush1.msra.mxu0 %v197
    %436 = vmatprep.subr.mxu0 %v194
    %437 = vmatpush1.msra.mxu0 %v193
    %438 = vmatprep.subr.mxu0 %v190
    %439 = vmatpush1.msra.mxu0 %v189
    %440 = vmatprep.subr.mxu0 0.0
    %441 = vmatpush2.msra.mxu0 0.0
    %442 = vmatprep.subr.mxu0 0.0
    %443 = vmatpush2.msra.mxu0 0.0
    %444 = vmatprep.subr.mxu0 0.0
    %445 = vmatpush2.msra.mxu0 0.0
    %446 = vmatprep.subr.mxu0 0.0
    %447 = vmatpush2.msra.mxu0 0.0
    %448 = vmatprep.subr.mxu0 0.0
    %449 = vmatpush2.msra.mxu0 0.0
    %450 = vmatprep.subr.mxu0 0.0
    %451 = vmatpush2.msra.mxu0 0.0
    %452 = vmatprep.subr.mxu0 0.0
    %453 = vmatpush2.msra.mxu0 0.0
    %454 = vmatprep.subr.mxu0 0.0
    %455 = vmatpush2.msra.mxu0 0.0
    %456 = vmatprep.subr.mxu0 0.0
    %457 = vmatpush2.msra.mxu0 0.0
    %458 = vmatprep.subr.mxu0 0.0
    %459 = vmatpush2.msra.mxu0 0.0
    %460 = vmatprep.subr.mxu0 0.0
    %461 = vmatpush2.msra.mxu0 0.0
    %462 = vmatprep.subr.mxu0 0.0
    %463 = vmatpush2.msra.mxu0 0.0
    %464 = vmatprep.subr.mxu0 0.0
    %465 = vmatpush2.msra.mxu0 0.0
    %466 = vmatprep.subr.mxu0 0.0
    %467 = vmatpush2.msra.mxu0 0.0
    %468 = vmatprep.subr.mxu0 0.0
    %469 = vmatpush2.msra.mxu0 0.0
    %470 = vmatprep.subr.mxu0 0.0
    %471 = vmatpush2.msra.mxu0 0.0
    %472 = vmatprep.mubr.f32.mxu0 0.0
    %473 = vmatmul.mubr.f32.gmra.mxu0 %v90
    %v474 = vpop.f32.mrf.mxu0
    %v475 = vadd.f32 %v328, %v474
    %v476 = vpop.f32.mrf.mxu0
    %v477 = vadd.f32 %v332, %v476
    %478 = vdwg.mxu0
    %v479 = vlaneseq
    %v480 = vand.u32 %v479, 127
    %vm481 = vcmp.lt.s32.totalorder %v480, 8
    %v482 = vsel %vm481, 0.0, -1e+30
    %483 = vmatprep.subr.mxu0 %v183
    %484 = vmatpush1.msra.mxu0 %v182
    %485 = vmatprep.subr.mxu0 %v178
    %486 = vmatpush1.msra.mxu0 %v177
    %487 = vmatprep.subr.mxu0 %v173
    %488 = vmatpush1.msra.mxu0 %v172
    %489 = vmatprep.subr.mxu0 %v168
    %490 = vmatpush1.msra.mxu0 %v167
    %491 = vmatprep.subr.mxu0 %v163
    %492 = vmatpush1.msra.mxu0 %v162
    %493 = vmatprep.subr.mxu0 %v158
    %494 = vmatpush1.msra.mxu0 %v157
    %495 = vmatprep.subr.mxu0 %v153
    %496 = vmatpush1.msra.mxu0 %v152
    %497 = vmatprep.subr.mxu0 %v148
    %498 = vmatpush1.msra.mxu0 %v147
    %499 = vmatprep.subr.mxu0 %v143
    %500 = vmatpush1.msra.mxu0 %v142
    %501 = vmatprep.subr.mxu0 %v138
    %502 = vmatpush1.msra.mxu0 %v137
    %503 = vmatprep.subr.mxu0 %v133
    %504 = vmatpush1.msra.mxu0 %v132
    %505 = vmatprep.subr.mxu0 %v128
    %506 = vmatpush1.msra.mxu0 %v127
    %507 = vmatprep.subr.mxu0 %v123
    %508 = vmatpush1.msra.mxu0 %v122
    %509 = vmatprep.subr.mxu0 %v118
    %510 = vmatpush1.msra.mxu0 %v117
    %511 = vmatprep.subr.mxu0 %v113
    %512 = vmatpush1.msra.mxu0 %v112
    %513 = vmatprep.subr.mxu0 %v108
    %514 = vmatpush1.msra.mxu0 %v107
    %515 = vmatprep.subr.mxu0 0.0
    %516 = vmatpush2.msra.mxu0 0.0
    %517 = vmatprep.subr.mxu0 0.0
    %518 = vmatpush2.msra.mxu0 0.0
    %519 = vmatprep.subr.mxu0 0.0
    %520 = vmatpush2.msra.mxu0 0.0
    %521 = vmatprep.subr.mxu0 0.0
    %522 = vmatpush2.msra.mxu0 0.0
    %523 = vmatprep.subr.mxu0 0.0
    %524 = vmatpush2.msra.mxu0 0.0
    %525 = vmatprep.subr.mxu0 0.0
    %526 = vmatpush2.msra.mxu0 0.0
    %527 = vmatprep.subr.mxu0 0.0
    %528 = vmatpush2.msra.mxu0 0.0
    %529 = vmatprep.subr.mxu0 0.0
    %530 = vmatpush2.msra.mxu0 0.0
    %531 = vmatprep.subr.mxu0 0.0
    %532 = vmatpush2.msra.mxu0 0.0
    %533 = vmatprep.subr.mxu0 0.0
    %534 = vmatpush2.msra.mxu0 0.0
    %535 = vmatprep.subr.mxu0 0.0
    %536 = vmatpush2.msra.mxu0 0.0
    %537 = vmatprep.subr.mxu0 0.0
    %538 = vmatpush2.msra.mxu0 0.0
    %539 = vmatprep.subr.mxu0 0.0
    %540 = vmatpush2.msra.mxu0 0.0
    %541 = vmatprep.subr.mxu0 0.0
    %542 = vmatpush2.msra.mxu0 0.0
    %543 = vmatprep.subr.mxu0 0.0
    %544 = vmatpush2.msra.mxu0 0.0
    %545 = vmatprep.subr.mxu0 0.0
    %546 = vmatpush2.msra.mxu0 0.0
    %547 = vmatprep.mubr.f32.mxu0 0.0
    %548 = vmatmul.mubr.f32.gmra.mxu0 %v90
    %v549 = vpop.f32.mrf.mxu0
    %v550 = vadd.f32 0.0, %v549
    %v551 = vpop.f32.mrf.mxu0
    %v552 = vadd.f32 0.0, %v551
    %553 = vdwg.mxu0
    %554 = vmatprep.subr.mxu0 %v185
    %555 = vmatpush1.msra.mxu0 %v184
    %556 = vmatprep.subr.mxu0 %v180
    %557 = vmatpush1.msra.mxu0 %v179
    %558 = vmatprep.subr.mxu0 %v175
    %559 = vmatpush1.msra.mxu0 %v174
    %560 = vmatprep.subr.mxu0 %v170
    %561 = vmatpush1.msra.mxu0 %v169
    %562 = vmatprep.subr.mxu0 %v165
    %563 = vmatpush1.msra.mxu0 %v164
    %564 = vmatprep.subr.mxu0 %v160
    %565 = vmatpush1.msra.mxu0 %v159
    %566 = vmatprep.subr.mxu0 %v155
    %567 = vmatpush1.msra.mxu0 %v154
    %568 = vmatprep.subr.mxu0 %v150
    %569 = vmatpush1.msra.mxu0 %v149
    %570 = vmatprep.subr.mxu0 %v145
    %571 = vmatpush1.msra.mxu0 %v144
    %572 = vmatprep.subr.mxu0 %v140
    %573 = vmatpush1.msra.mxu0 %v139
    %574 = vmatprep.subr.mxu0 %v135
    %575 = vmatpush1.msra.mxu0 %v134
    %576 = vmatprep.subr.mxu0 %v130
    %577 = vmatpush1.msra.mxu0 %v129
    %578 = vmatprep.subr.mxu0 %v125
    %579 = vmatpush1.msra.mxu0 %v124
    %580 = vmatprep.subr.mxu0 %v120
    %581 = vmatpush1.msra.mxu0 %v119
    %582 = vmatprep.subr.mxu0 %v115
    %583 = vmatpush1.msra.mxu0 %v114
    %584 = vmatprep.subr.mxu0 %v110
    %585 = vmatpush1.msra.mxu0 %v109
    %586 = vmatprep.subr.mxu0 0.0
    %587 = vmatpush2.msra.mxu0 0.0
    %588 = vmatprep.subr.mxu0 0.0
    %589 = vmatpush2.msra.mxu0 0.0
    %590 = vmatprep.subr.mxu0 0.0
    %591 = vmatpush2.msra.mxu0 0.0
    %592 = vmatprep.subr.mxu0 0.0
    %593 = vmatpush2.msra.mxu0 0.0
    %594 = vmatprep.subr.mxu0 0.0
    %595 = vmatpush2.msra.mxu0 0.0
    %596 = vmatprep.subr.mxu0 0.0
    %597 = vmatpush2.msra.mxu0 0.0
    %598 = vmatprep.subr.mxu0 0.0
    %599 = vmatpush2.msra.mxu0 0.0
    %600 = vmatprep.subr.mxu0 0.0
    %601 = vmatpush2.msra.mxu0 0.0
    %602 = vmatprep.subr.mxu0 0.0
    %603 = vmatpush2.msra.mxu0 0.0
    %604 = vmatprep.subr.mxu0 0.0
    %605 = vmatpush2.msra.mxu0 0.0
    %606 = vmatprep.subr.mxu0 0.0
    %607 = vmatpush2.msra.mxu0 0.0
    %608 = vmatprep.subr.mxu0 0.0
    %609 = vmatpush2.msra.mxu0 0.0
    %610 = vmatprep.subr.mxu0 0.0
    %611 = vmatpush2.msra.mxu0 0.0
    %612 = vmatprep.subr.mxu0 0.0
    %613 = vmatpush2.msra.mxu0 0.0
    %614 = vmatprep.subr.mxu0 0.0
    %615 = vmatpush2.msra.mxu0 0.0
    %616 = vmatprep.subr.mxu0 0.0
    %617 = vmatpush2.msra.mxu0 0.0
    %618 = vmatprep.mubr.f32.mxu0 0.0
    %619 = vmatmul.mubr.f32.gmra.mxu0 %v90
    %v620 = vpop.f32.mrf.mxu0
    %v621 = vadd.f32 0.0, %v620
    %v622 = vpop.f32.mrf.mxu0
    %v623 = vadd.f32 0.0, %v622
    %624 = vdwg.mxu0
    %625 = vmatprep.subr.mxu0 0.0
    %626 = vmatpush1.msra.mxu0 %v186
    %627 = vmatprep.subr.mxu0 0.0
    %628 = vmatpush1.msra.mxu0 %v181
    %629 = vmatprep.subr.mxu0 0.0
    %630 = vmatpush1.msra.mxu0 %v176
    %631 = vmatprep.subr.mxu0 0.0
    %632 = vmatpush1.msra.mxu0 %v171
    %633 = vmatprep.subr.mxu0 0.0
    %634 = vmatpush1.msra.mxu0 %v166
    %635 = vmatprep.subr.mxu0 0.0
    %636 = vmatpush1.msra.mxu0 %v161
    %637 = vmatprep.subr.mxu0 0.0
    %638 = vmatpush1.msra.mxu0 %v156
    %639 = vmatprep.subr.mxu0 0.0
    %640 = vmatpush1.msra.mxu0 %v151
    %641 = vmatprep.subr.mxu0 0.0
    %642 = vmatpush1.msra.mxu0 %v146
    %643 = vmatprep.subr.mxu0 0.0
    %644 = vmatpush1.msra.mxu0 %v141
    %645 = vmatprep.subr.mxu0 0.0
    %646 = vmatpush1.msra.mxu0 %v136
    %647 = vmatprep.subr.mxu0 0.0
    %648 = vmatpush1.msra.mxu0 %v131
    %649 = vmatprep.subr.mxu0 0.0
    %650 = vmatpush1.msra.mxu0 %v126
    %651 = vmatprep.subr.mxu0 0.0
    %652 = vmatpush1.msra.mxu0 %v121
    %653 = vmatprep.subr.mxu0 0.0
    %654 = vmatpush1.msra.mxu0 %v116
    %655 = vmatprep.subr.mxu0 0.0
    %656 = vmatpush1.msra.mxu0 %v111
    %657 = vmatprep.subr.mxu0 0.0
    %658 = vmatpush2.msra.mxu0 0.0
    %659 = vmatprep.subr.mxu0 0.0
    %660 = vmatpush2.msra.mxu0 0.0
    %661 = vmatprep.subr.mxu0 0.0
    %662 = vmatpush2.msra.mxu0 0.0
    %663 = vmatprep.subr.mxu0 0.0
    %664 = vmatpush2.msra.mxu0 0.0
    %665 = vmatprep.subr.mxu0 0.0
    %666 = vmatpush2.msra.mxu0 0.0
    %667 = vmatprep.subr.mxu0 0.0
    %668 = vmatpush2.msra.mxu0 0.0
    %669 = vmatprep.subr.mxu0 0.0
    %670 = vmatpush2.msra.mxu0 0.0
    %671 = vmatprep.subr.mxu0 0.0
    %672 = vmatpush2.msra.mxu0 0.0
    %673 = vmatprep.subr.mxu0 0.0
    %674 = vmatpush2.msra.mxu0 0.0
    %675 = vmatprep.subr.mxu0 0.0
    %676 = vmatpush2.msra.mxu0 0.0
    %677 = vmatprep.subr.mxu0 0.0
    %678 = vmatpush2.msra.mxu0 0.0
    %679 = vmatprep.subr.mxu0 0.0
    %680 = vmatpush2.msra.mxu0 0.0
    %681 = vmatprep.subr.mxu0 0.0
    %682 = vmatpush2.msra.mxu0 0.0
    %683 = vmatprep.subr.mxu0 0.0
    %684 = vmatpush2.msra.mxu0 0.0
    %685 = vmatprep.subr.mxu0 0.0
    %686 = vmatpush2.msra.mxu0 0.0
    %687 = vmatprep.subr.mxu0 0.0
    %688 = vmatpush2.msra.mxu0 0.0
    %689 = vmatprep.mubr.f32.mxu0 0.0
    %690 = vmatmul.mubr.f32.gmra.mxu0 %v90
    %v691 = vpop.f32.mrf.mxu0
    %v692 = vadd.f32 0.0, %v691
    %v693 = vpop.f32.mrf.mxu0
    %694 = vdwg.mxu0
    %v695 = vadd.f32 %v550, %v482
    %696 = vmax.xlane.f32.xlu0 %v695
    %v697 = vpop.xlane.xlu0 %696
    %v698 = vsub.f32 %v695, %v697
    %v699 = vmul.f32 %v698, 1.442695
    %v700 = vpow.pop %v699
    %701 = vadd.xlane.f32.xlu0 %v700
    %v702 = vpop.xlane.xlu0 %701
    %v703 = vrcp.pop %v702
    %v704 = vmul.f32 %v700, %v703
    %705 = vmatprep.subr.mxu0 0.0
    %706 = vmatpush1.msra.mxu0 %v106
    %707 = vmatprep.subr.mxu0 0.0
    %708 = vmatpush1.msra.mxu0 %v105
    %709 = vmatprep.subr.mxu0 0.0
    %710 = vmatpush1.msra.mxu0 %v104
    %711 = vmatprep.subr.mxu0 0.0
    %712 = vmatpush1.msra.mxu0 %v103
    %713 = vmatprep.subr.mxu0 0.0
    %714 = vmatpush1.msra.mxu0 %v102
    %715 = vmatprep.subr.mxu0 0.0
    %716 = vmatpush1.msra.mxu0 %v101
    %717 = vmatprep.subr.mxu0 0.0
    %718 = vmatpush1.msra.mxu0 %v100
    %719 = vmatprep.subr.mxu0 0.0
    %720 = vmatpush1.msra.mxu0 %v99
    %721 = vmatprep.subr.mxu0 0.0
    %722 = vmatpush1.msra.mxu0 %v98
    %723 = vmatprep.subr.mxu0 0.0
    %724 = vmatpush1.msra.mxu0 %v97
    %725 = vmatprep.subr.mxu0 0.0
    %726 = vmatpush1.msra.mxu0 %v96
    %727 = vmatprep.subr.mxu0 0.0
    %728 = vmatpush1.msra.mxu0 %v95
    %729 = vmatprep.subr.mxu0 0.0
    %730 = vmatpush1.msra.mxu0 %v94
    %731 = vmatprep.subr.mxu0 0.0
    %732 = vmatpush1.msra.mxu0 %v93
    %733 = vmatprep.subr.mxu0 0.0
    %734 = vmatpush1.msra.mxu0 %v92
    %735 = vmatprep.subr.mxu0 0.0
    %736 = vmatpush1.msra.mxu0 %v91
    %737 = vmatprep.subr.mxu0 0.0
    %738 = vmatpush2.msra.mxu0 0.0
    %739 = vmatprep.subr.mxu0 0.0
    %740 = vmatpush2.msra.mxu0 0.0
    %741 = vmatprep.subr.mxu0 0.0
    %742 = vmatpush2.msra.mxu0 0.0
    %743 = vmatprep.subr.mxu0 0.0
    %744 = vmatpush2.msra.mxu0 0.0
    %745 = vmatprep.subr.mxu0 0.0
    %746 = vmatpush2.msra.mxu0 0.0
    %747 = vmatprep.subr.mxu0 0.0
    %748 = vmatpush2.msra.mxu0 0.0
    %749 = vmatprep.subr.mxu0 0.0
    %750 = vmatpush2.msra.mxu0 0.0
    %751 = vmatprep.subr.mxu0 0.0
    %752 = vmatpush2.msra.mxu0 0.0
    %753 = vmatprep.subr.mxu0 0.0
    %754 = vmatpush2.msra.mxu0 0.0
    %755 = vmatprep.subr.mxu0 0.0
    %756 = vmatpush2.msra.mxu0 0.0
    %757 = vmatprep.subr.mxu0 0.0
    %758 = vmatpush2.msra.mxu0 0.0
    %759 = vmatprep.subr.mxu0 0.0
    %760 = vmatpush2.msra.mxu0 0.0
    %761 = vmatprep.subr.mxu0 0.0
    %762 = vmatpush2.msra.mxu0 0.0
    %763 = vmatprep.subr.mxu0 0.0
    %764 = vmatpush2.msra.mxu0 0.0
    %765 = vmatprep.subr.mxu0 0.0
    %766 = vmatpush2.msra.mxu0 0.0
    %767 = vmatprep.subr.mxu0 0.0
    %768 = vmatpush2.msra.mxu0 0.0
    %769 = vmatprep.mubr.f32.mxu0 0.0
    %770 = vmatmul.mubr.f32.gmra.mxu0 %v704
    %v771 = vpop.f32.mrf.mxu0
    %v772 = vadd.f32 0.0, %v771
    %v773 = vpop.f32.mrf.mxu0
    %774 = vdwg.mxu0
    %v775 = vadd.f32 %v404, %v552
    %v776 = vadd.f32 %v406, %v621
    %v777 = vadd.f32 %v475, %v623
    %v778 = vadd.f32 %v477, %v692
    %779 = vmatprep.subr.mxu0 %v312
    %780 = vmatpush1.msra.mxu0 %v311
    %781 = vmatprep.subr.mxu0 %v308
    %782 = vmatpush1.msra.mxu0 %v307
    %783 = vmatprep.subr.mxu0 %v304
    %784 = vmatpush1.msra.mxu0 %v303
    %785 = vmatprep.subr.mxu0 %v300
    %786 = vmatpush1.msra.mxu0 %v299
    %787 = vmatprep.subr.mxu0 %v296
    %788 = vmatpush1.msra.mxu0 %v295
    %789 = vmatprep.subr.mxu0 %v292
    %790 = vmatpush1.msra.mxu0 %v291
    %791 = vmatprep.subr.mxu0 %v288
    %792 = vmatpush1.msra.mxu0 %v287
    %793 = vmatprep.subr.mxu0 %v284
    %794 = vmatpush1.msra.mxu0 %v283
    %795 = vmatprep.subr.mxu0 %v280
    %796 = vmatpush1.msra.mxu0 %v279
    %797 = vmatprep.subr.mxu0 %v276
    %798 = vmatpush1.msra.mxu0 %v275
    %799 = vmatprep.subr.mxu0 %v272
    %800 = vmatpush1.msra.mxu0 %v271
    %801 = vmatprep.subr.mxu0 %v268
    %802 = vmatpush1.msra.mxu0 %v267
    %803 = vmatprep.subr.mxu0 %v264
    %804 = vmatpush1.msra.mxu0 %v263
    %805 = vmatprep.subr.mxu0 %v260
    %806 = vmatpush1.msra.mxu0 %v259
    %807 = vmatprep.subr.mxu0 %v256
    %808 = vmatpush1.msra.mxu0 %v255
    %809 = vmatprep.subr.mxu0 %v252
    %810 = vmatpush1.msra.mxu0 %v251
    %811 = vmatprep.subr.mxu0 0.0
    %812 = vmatpush2.msra.mxu0 0.0
    %813 = vmatprep.subr.mxu0 0.0
    %814 = vmatpush2.msra.mxu0 0.0
    %815 = vmatprep.subr.mxu0 0.0
    %816 = vmatpush2.msra.mxu0 0.0
    %817 = vmatprep.subr.mxu0 0.0
    %818 = vmatpush2.msra.mxu0 0.0
    %819 = vmatprep.subr.mxu0 0.0
    %820 = vmatpush2.msra.mxu0 0.0
    %821 = vmatprep.subr.mxu0 0.0
    %822 = vmatpush2.msra.mxu0 0.0
    %823 = vmatprep.subr.mxu0 0.0
    %824 = vmatpush2.msra.mxu0 0.0
    %825 = vmatprep.subr.mxu0 0.0
    %826 = vmatpush2.msra.mxu0 0.0
    %827 = vmatprep.subr.mxu0 0.0
    %828 = vmatpush2.msra.mxu0 0.0
    %829 = vmatprep.subr.mxu0 0.0
    %830 = vmatpush2.msra.mxu0 0.0
    %831 = vmatprep.subr.mxu0 0.0
    %832 = vmatpush2.msra.mxu0 0.0
    %833 = vmatprep.subr.mxu0 0.0
    %834 = vmatpush2.msra.mxu0 0.0
    %835 = vmatprep.subr.mxu0 0.0
    %836 = vmatpush2.msra.mxu0 0.0
    %837 = vmatprep.subr.mxu0 0.0
    %838 = vmatpush2.msra.mxu0 0.0
    %839 = vmatprep.subr.mxu0 0.0
    %840 = vmatpush2.msra.mxu0 0.0
    %841 = vmatprep.subr.mxu0 0.0
    %842 = vmatpush2.msra.mxu0 0.0
    %843 = vmatprep.mubr.f32.mxu0 0.0
    %844 = vmatmul.mubr.f32.gmra.mxu0 %v772
    %v845 = vpop.f32.mrf.mxu0
    %v846 = vadd.f32 0.0, %v845
    %v847 = vpop.f32.mrf.mxu0
    %v848 = vadd.f32 0.0, %v847
    %849 = vdwg.mxu0
    %850 = vmatprep.subr.mxu0 %v314
    %851 = vmatpush1.msra.mxu0 %v313
    %852 = vmatprep.subr.mxu0 %v310
    %853 = vmatpush1.msra.mxu0 %v309
    %854 = vmatprep.subr.mxu0 %v306
    %855 = vmatpush1.msra.mxu0 %v305
    %856 = vmatprep.subr.mxu0 %v302
    %857 = vmatpush1.msra.mxu0 %v301
    %858 = vmatprep.subr.mxu0 %v298
    %859 = vmatpush1.msra.mxu0 %v297
    %860 = vmatprep.subr.mxu0 %v294
    %861 = vmatpush1.msra.mxu0 %v293
    %862 = vmatprep.subr.mxu0 %v290
    %863 = vmatpush1.msra.mxu0 %v289
    %864 = vmatprep.subr.mxu0 %v286
    %865 = vmatpush1.msra.mxu0 %v285
    %866 = vmatprep.subr.mxu0 %v282
    %867 = vmatpush1.msra.mxu0 %v281
    %868 = vmatprep.subr.mxu0 %v278
    %869 = vmatpush1.msra.mxu0 %v277
    %870 = vmatprep.subr.mxu0 %v274
    %871 = vmatpush1.msra.mxu0 %v273
    %872 = vmatprep.subr.mxu0 %v270
    %873 = vmatpush1.msra.mxu0 %v269
    %874 = vmatprep.subr.mxu0 %v266
    %875 = vmatpush1.msra.mxu0 %v265
    %876 = vmatprep.subr.mxu0 %v262
    %877 = vmatpush1.msra.mxu0 %v261
    %878 = vmatprep.subr.mxu0 %v258
    %879 = vmatpush1.msra.mxu0 %v257
    %880 = vmatprep.subr.mxu0 %v254
    %881 = vmatpush1.msra.mxu0 %v253
    %882 = vmatprep.subr.mxu0 0.0
    %883 = vmatpush2.msra.mxu0 0.0
    %884 = vmatprep.subr.mxu0 0.0
    %885 = vmatpush2.msra.mxu0 0.0
    %886 = vmatprep.subr.mxu0 0.0
    %887 = vmatpush2.msra.mxu0 0.0
    %888 = vmatprep.subr.mxu0 0.0
    %889 = vmatpush2.msra.mxu0 0.0
    %890 = vmatprep.subr.mxu0 0.0
    %891 = vmatpush2.msra.mxu0 0.0
    %892 = vmatprep.subr.mxu0 0.0
    %893 = vmatpush2.msra.mxu0 0.0
    %894 = vmatprep.subr.mxu0 0.0
    %895 = vmatpush2.msra.mxu0 0.0
    %896 = vmatprep.subr.mxu0 0.0
    %897 = vmatpush2.msra.mxu0 0.0
    %898 = vmatprep.subr.mxu0 0.0
    %899 = vmatpush2.msra.mxu0 0.0
    %900 = vmatprep.subr.mxu0 0.0
    %901 = vmatpush2.msra.mxu0 0.0
    %902 = vmatprep.subr.mxu0 0.0
    %903 = vmatpush2.msra.mxu0 0.0
    %904 = vmatprep.subr.mxu0 0.0
    %905 = vmatpush2.msra.mxu0 0.0
    %906 = vmatprep.subr.mxu0 0.0
    %907 = vmatpush2.msra.mxu0 0.0
    %908 = vmatprep.subr.mxu0 0.0
    %909 = vmatpush2.msra.mxu0 0.0
    %910 = vmatprep.subr.mxu0 0.0
    %911 = vmatpush2.msra.mxu0 0.0
    %912 = vmatprep.subr.mxu0 0.0
    %913 = vmatpush2.msra.mxu0 0.0
    %914 = vmatprep.mubr.f32.mxu0 0.0
    %915 = vmatmul.mubr.f32.gmra.mxu0 %v772
    %v916 = vpop.f32.mrf.mxu0
    %v917 = vadd.f32 0.0, %v916
    %v918 = vpop.f32.mrf.mxu0
    %v919 = vadd.f32 0.0, %v918
    %920 = vdwg.mxu0
    %v921 = vadd.f32 %v775, %v846
    %v922 = vadd.f32 %v776, %v848
    %v923 = vadd.f32 %v777, %v917
    %v924 = vadd.f32 %v778, %v919
    %v925 = vxor.u32 %v921, 2147483648
    %v926 = vmul.f32 %v925, 1.442695
    %v927 = vpow.pop %v926
    %v928 = vadd.f32 %v927, 1.0
    %v929 = vrcp.pop %v928
    %v930 = vmul.f32 1.0, %v929
    %v931 = vxor.u32 %v922, 2147483648
    %v932 = vmul.f32 %v931, 1.442695
    %v933 = vpow.pop %v932
    %v934 = vadd.f32 %v933, 1.0
    %v935 = vrcp.pop %v934
    %v936 = vmul.f32 1.0, %v935
    %v937 = vtanh.pop %v923
    %v938 = vxor.u32 %v924, 2147483648
    %v939 = vmul.f32 %v938, 1.442695
    %v940 = vpow.pop %v939
    %v941 = vadd.f32 %v940, 1.0
    %v942 = vrcp.pop %v941
    %v943 = vmul.f32 1.0, %v942
    %v944 = vmul.f32 %v936, 0.0
    %v945 = vmul.f32 %v930, %v937
    %v946 = vadd.f32 %v944, %v945
    %v947 = vtanh.pop %v946
    %v948 = vmul.f32 %v943, %v947
    %v949 = vadd.f32 %v948, %v90
    %950 = vmatprep.subr.mxu0 %v183
    %951 = vmatpush1.msra.mxu0 %v182
    %952 = vmatprep.subr.mxu0 %v178
    %953 = vmatpush1.msra.mxu0 %v177
    %954 = vmatprep.subr.mxu0 %v173
    %955 = vmatpush1.msra.mxu0 %v172
    %956 = vmatprep.subr.mxu0 %v168
    %957 = vmatpush1.msra.mxu0 %v167
    %958 = vmatprep.subr.mxu0 %v163
    %959 = vmatpush1.msra.mxu0 %v162
    %960 = vmatprep.subr.mxu0 %v158
    %961 = vmatpush1.msra.mxu0 %v157
    %962 = vmatprep.subr.mxu0 %v153
    %963 = vmatpush1.msra.mxu0 %v152
    %964 = vmatprep.subr.mxu0 %v148
    %965 = vmatpush1.msra.mxu0 %v147
    %966 = vmatprep.subr.mxu0 %v143
    %967 = vmatpush1.msra.mxu0 %v142
    %968 = vmatprep.subr.mxu0 %v138
    %969 = vmatpush1.msra.mxu0 %v137
    %970 = vmatprep.subr.mxu0 %v133
    %971 = vmatpush1.msra.mxu0 %v132
    %972 = vmatprep.subr.mxu0 %v128
    %973 = vmatpush1.msra.mxu0 %v127
    %974 = vmatprep.subr.mxu0 %v123
    %975 = vmatpush1.msra.mxu0 %v122
    %976 = vmatprep.subr.mxu0 %v118
    %977 = vmatpush1.msra.mxu0 %v117
    %978 = vmatprep.subr.mxu0 %v113
    %979 = vmatpush1.msra.mxu0 %v112
    %980 = vmatprep.subr.mxu0 %v108
    %981 = vmatpush1.msra.mxu0 %v107
    %982 = vmatprep.subr.mxu0 0.0
    %983 = vmatpush2.msra.mxu0 0.0
    %984 = vmatprep.subr.mxu0 0.0
    %985 = vmatpush2.msra.mxu0 0.0
    %986 = vmatprep.subr.mxu0 0.0
    %987 = vmatpush2.msra.mxu0 0.0
    %988 = vmatprep.subr.mxu0 0.0
    %989 = vmatpush2.msra.mxu0 0.0
    %990 = vmatprep.subr.mxu0 0.0
    %991 = vmatpush2.msra.mxu0 0.0
    %992 = vmatprep.subr.mxu0 0.0
    %993 = vmatpush2.msra.mxu0 0.0
    %994 = vmatprep.subr.mxu0 0.0
    %995 = vmatpush2.msra.mxu0 0.0
    %996 = vmatprep.subr.mxu0 0.0
    %997 = vmatpush2.msra.mxu0 0.0
    %998 = vmatprep.subr.mxu0 0.0
    %999 = vmatpush2.msra.mxu0 0.0
    %1000 = vmatprep.subr.mxu0 0.0
    %1001 = vmatpush2.msra.mxu0 0.0
    %1002 = vmatprep.subr.mxu0 0.0
    %1003 = vmatpush2.msra.mxu0 0.0
    %1004 = vmatprep.subr.mxu0 0.0
    %1005 = vmatpush2.msra.mxu0 0.0
    %1006 = vmatprep.subr.mxu0 0.0
    %1007 = vmatpush2.msra.mxu0 0.0
    %1008 = vmatprep.subr.mxu0 0.0
    %1009 = vmatpush2.msra.mxu0 0.0
    %1010 = vmatprep.subr.mxu0 0.0
    %1011 = vmatpush2.msra.mxu0 0.0
    %1012 = vmatprep.subr.mxu0 0.0
    %1013 = vmatpush2.msra.mxu0 0.0
    %1014 = vmatprep.mubr.f32.mxu0 0.0
    %1015 = vmatmul.mubr.f32.gmra.mxu0 %v949
    %v1016 = vpop.f32.mrf.mxu0
    %v1017 = vadd.f32 0.0, %v1016
    %v1018 = vpop.f32.mrf.mxu0
    %v1019 = vadd.f32 0.0, %v1018
    %1020 = vdwg.mxu0
    %1021 = vmatprep.subr.mxu0 %v185
    %1022 = vmatpush1.msra.mxu0 %v184
    %1023 = vmatprep.subr.mxu0 %v180
    %1024 = vmatpush1.msra.mxu0 %v179
    %1025 = vmatprep.subr.mxu0 %v175
    %1026 = vmatpush1.msra.mxu0 %v174
    %1027 = vmatprep.subr.mxu0 %v170
    %1028 = vmatpush1.msra.mxu0 %v169
    %1029 = vmatprep.subr.mxu0 %v165
    %1030 = vmatpush1.msra.mxu0 %v164
    %1031 = vmatprep.subr.mxu0 %v160
    %1032 = vmatpush1.msra.mxu0 %v159
    %1033 = vmatprep.subr.mxu0 %v155
    %1034 = vmatpush1.msra.mxu0 %v154
    %1035 = vmatprep.subr.mxu0 %v150
    %1036 = vmatpush1.msra.mxu0 %v149
    %1037 = vmatprep.subr.mxu0 %v145
    %1038 = vmatpush1.msra.mxu0 %v144
    %1039 = vmatprep.subr.mxu0 %v140
    %1040 = vmatpush1.msra.mxu0 %v139
    %1041 = vmatprep.subr.mxu0 %v135
    %1042 = vmatpush1.msra.mxu0 %v134
    %1043 = vmatprep.subr.mxu0 %v130
    %1044 = vmatpush1.msra.mxu0 %v129
    %1045 = vmatprep.subr.mxu0 %v125
    %1046 = vmatpush1.msra.mxu0 %v124
    %1047 = vmatprep.subr.mxu0 %v120
    %1048 = vmatpush1.msra.mxu0 %v119
    %1049 = vmatprep.subr.mxu0 %v115
    %1050 = vmatpush1.msra.mxu0 %v114
    %1051 = vmatprep.subr.mxu0 %v110
    %1052 = vmatpush1.msra.mxu0 %v109
    %1053 = vmatprep.subr.mxu0 0.0
    %1054 = vmatpush2.msra.mxu0 0.0
    %1055 = vmatprep.subr.mxu0 0.0
    %1056 = vmatpush2.msra.mxu0 0.0
    %1057 = vmatprep.subr.mxu0 0.0
    %1058 = vmatpush2.msra.mxu0 0.0
    %1059 = vmatprep.subr.mxu0 0.0
    %1060 = vmatpush2.msra.mxu0 0.0
    %1061 = vmatprep.subr.mxu0 0.0
    %1062 = vmatpush2.msra.mxu0 0.0
    %1063 = vmatprep.subr.mxu0 0.0
    %1064 = vmatpush2.msra.mxu0 0.0
    %1065 = vmatprep.subr.mxu0 0.0
    %1066 = vmatpush2.msra.mxu0 0.0
    %1067 = vmatprep.subr.mxu0 0.0
    %1068 = vmatpush2.msra.mxu0 0.0
    %1069 = vmatprep.subr.mxu0 0.0
    %1070 = vmatpush2.msra.mxu0 0.0
    %1071 = vmatprep.subr.mxu0 0.0
    %1072 = vmatpush2.msra.mxu0 0.0
    %1073 = vmatprep.subr.mxu0 0.0
    %1074 = vmatpush2.msra.mxu0 0.0
    %1075 = vmatprep.subr.mxu0 0.0
    %1076 = vmatpush2.msra.mxu0 0.0
    %1077 = vmatprep.subr.mxu0 0.0
    %1078 = vmatpush2.msra.mxu0 0.0
    %1079 = vmatprep.subr.mxu0 0.0
    %1080 = vmatpush2.msra.mxu0 0.0
    %1081 = vmatprep.subr.mxu0 0.0
    %1082 = vmatpush2.msra.mxu0 0.0
    %1083 = vmatprep.subr.mxu0 0.0
    %1084 = vmatpush2.msra.mxu0 0.0
    %1085 = vmatprep.mubr.f32.mxu0 0.0
    %1086 = vmatmul.mubr.f32.gmra.mxu0 %v949
    %v1087 = vpop.f32.mrf.mxu0
    %v1088 = vadd.f32 0.0, %v1087
    %v1089 = vpop.f32.mrf.mxu0
    %v1090 = vadd.f32 0.0, %v1089
    %1091 = vdwg.mxu0
    %1092 = vmatprep.subr.mxu0 0.0
    %1093 = vmatpush1.msra.mxu0 %v186
    %1094 = vmatprep.subr.mxu0 0.0
    %1095 = vmatpush1.msra.mxu0 %v181
    %1096 = vmatprep.subr.mxu0 0.0
    %1097 = vmatpush1.msra.mxu0 %v176
    %1098 = vmatprep.subr.mxu0 0.0
    %1099 = vmatpush1.msra.mxu0 %v171
    %1100 = vmatprep.subr.mxu0 0.0
    %1101 = vmatpush1.msra.mxu0 %v166
    %1102 = vmatprep.subr.mxu0 0.0
    %1103 = vmatpush1.msra.mxu0 %v161
    %1104 = vmatprep.subr.mxu0 0.0
    %1105 = vmatpush1.msra.mxu0 %v156
    %1106 = vmatprep.subr.mxu0 0.0
    %1107 = vmatpush1.msra.mxu0 %v151
    %1108 = vmatprep.subr.mxu0 0.0
    %1109 = vmatpush1.msra.mxu0 %v146
    %1110 = vmatprep.subr.mxu0 0.0
    %1111 = vmatpush1.msra.mxu0 %v141
    %1112 = vmatprep.subr.mxu0 0.0
    %1113 = vmatpush1.msra.mxu0 %v136
    %1114 = vmatprep.subr.mxu0 0.0
    %1115 = vmatpush1.msra.mxu0 %v131
    %1116 = vmatprep.subr.mxu0 0.0
    %1117 = vmatpush1.msra.mxu0 %v126
    %1118 = vmatprep.subr.mxu0 0.0
    %1119 = vmatpush1.msra.mxu0 %v121
    %1120 = vmatprep.subr.mxu0 0.0
    %1121 = vmatpush1.msra.mxu0 %v116
    %1122 = vmatprep.subr.mxu0 0.0
    %1123 = vmatpush1.msra.mxu0 %v111
    %1124 = vmatprep.subr.mxu0 0.0
    %1125 = vmatpush2.msra.mxu0 0.0
    %1126 = vmatprep.subr.mxu0 0.0
    %1127 = vmatpush2.msra.mxu0 0.0
    %1128 = vmatprep.subr.mxu0 0.0
    %1129 = vmatpush2.msra.mxu0 0.0
    %1130 = vmatprep.subr.mxu0 0.0
    %1131 = vmatpush2.msra.mxu0 0.0
    %1132 = vmatprep.subr.mxu0 0.0
    %1133 = vmatpush2.msra.mxu0 0.0
    %1134 = vmatprep.subr.mxu0 0.0
    %1135 = vmatpush2.msra.mxu0 0.0
    %1136 = vmatprep.subr.mxu0 0.0
    %1137 = vmatpush2.msra.mxu0 0.0
    %1138 = vmatprep.subr.mxu0 0.0
    %1139 = vmatpush2.msra.mxu0 0.0
    %1140 = vmatprep.subr.mxu0 0.0
    %1141 = vmatpush2.msra.mxu0 0.0
    %1142 = vmatprep.subr.mxu0 0.0
    %1143 = vmatpush2.msra.mxu0 0.0
    %1144 = vmatprep.subr.mxu0 0.0
    %1145 = vmatpush2.msra.mxu0 0.0
    %1146 = vmatprep.subr.mxu0 0.0
    %1147 = vmatpush2.msra.mxu0 0.0
    %1148 = vmatprep.subr.mxu0 0.0
    %1149 = vmatpush2.msra.mxu0 0.0
    %1150 = vmatprep.subr.mxu0 0.0
    %1151 = vmatpush2.msra.mxu0 0.0
    %1152 = vmatprep.subr.mxu0 0.0
    %1153 = vmatpush2.msra.mxu0 0.0
    %1154 = vmatprep.subr.mxu0 0.0
    %1155 = vmatpush2.msra.mxu0 0.0
    %1156 = vmatprep.mubr.f32.mxu0 0.0
    %1157 = vmatmul.mubr.f32.gmra.mxu0 %v949
    %v1158 = vpop.f32.mrf.mxu0
    %v1159 = vadd.f32 0.0, %v1158
    %v1160 = vpop.f32.mrf.mxu0
    %1161 = vdwg.mxu0
    %v1162 = vadd.f32 %v1017, %v482
    %1163 = vmax.xlane.f32.xlu0 %v1162
    %v1164 = vpop.xlane.xlu0 %1163
    %v1165 = vsub.f32 %v1162, %v1164
    %v1166 = vmul.f32 %v1165, 1.442695
    %v1167 = vpow.pop %v1166
    %1168 = vadd.xlane.f32.xlu0 %v1167
    %v1169 = vpop.xlane.xlu0 %1168
    %v1170 = vrcp.pop %v1169
    %v1171 = vmul.f32 %v1167, %v1170
    %1172 = vmatprep.subr.mxu0 0.0
    %1173 = vmatpush1.msra.mxu0 %v106
    %1174 = vmatprep.subr.mxu0 0.0
    %1175 = vmatpush1.msra.mxu0 %v105
    %1176 = vmatprep.subr.mxu0 0.0
    %1177 = vmatpush1.msra.mxu0 %v104
    %1178 = vmatprep.subr.mxu0 0.0
    %1179 = vmatpush1.msra.mxu0 %v103
    %1180 = vmatprep.subr.mxu0 0.0
    %1181 = vmatpush1.msra.mxu0 %v102
    %1182 = vmatprep.subr.mxu0 0.0
    %1183 = vmatpush1.msra.mxu0 %v101
    %1184 = vmatprep.subr.mxu0 0.0
    %1185 = vmatpush1.msra.mxu0 %v100
    %1186 = vmatprep.subr.mxu0 0.0
    %1187 = vmatpush1.msra.mxu0 %v99
    %1188 = vmatprep.subr.mxu0 0.0
    %1189 = vmatpush1.msra.mxu0 %v98
    %1190 = vmatprep.subr.mxu0 0.0
    %1191 = vmatpush1.msra.mxu0 %v97
    %1192 = vmatprep.subr.mxu0 0.0
    %1193 = vmatpush1.msra.mxu0 %v96
    %1194 = vmatprep.subr.mxu0 0.0
    %1195 = vmatpush1.msra.mxu0 %v95
    %1196 = vmatprep.subr.mxu0 0.0
    %1197 = vmatpush1.msra.mxu0 %v94
    %1198 = vmatprep.subr.mxu0 0.0
    %1199 = vmatpush1.msra.mxu0 %v93
    %1200 = vmatprep.subr.mxu0 0.0
    %1201 = vmatpush1.msra.mxu0 %v92
    %1202 = vmatprep.subr.mxu0 0.0
    %1203 = vmatpush1.msra.mxu0 %v91
    %1204 = vmatprep.subr.mxu0 0.0
    %1205 = vmatpush2.msra.mxu0 0.0
    %1206 = vmatprep.subr.mxu0 0.0
    %1207 = vmatpush2.msra.mxu0 0.0
    %1208 = vmatprep.subr.mxu0 0.0
    %1209 = vmatpush2.msra.mxu0 0.0
    %1210 = vmatprep.subr.mxu0 0.0
    %1211 = vmatpush2.msra.mxu0 0.0
    %1212 = vmatprep.subr.mxu0 0.0
    %1213 = vmatpush2.msra.mxu0 0.0
    %1214 = vmatprep.subr.mxu0 0.0
    %1215 = vmatpush2.msra.mxu0 0.0
    %1216 = vmatprep.subr.mxu0 0.0
    %1217 = vmatpush2.msra.mxu0 0.0
    %1218 = vmatprep.subr.mxu0 0.0
    %1219 = vmatpush2.msra.mxu0 0.0
    %1220 = vmatprep.subr.mxu0 0.0
    %1221 = vmatpush2.msra.mxu0 0.0
    %1222 = vmatprep.subr.mxu0 0.0
    %1223 = vmatpush2.msra.mxu0 0.0
    %1224 = vmatprep.subr.mxu0 0.0
    %1225 = vmatpush2.msra.mxu0 0.0
    %1226 = vmatprep.subr.mxu0 0.0
    %1227 = vmatpush2.msra.mxu0 0.0
    %1228 = vmatprep.subr.mxu0 0.0
    %1229 = vmatpush2.msra.mxu0 0.0
    %1230 = vmatprep.subr.mxu0 0.0
    %1231 = vmatpush2.msra.mxu0 0.0
    %1232 = vmatprep.subr.mxu0 0.0
    %1233 = vmatpush2.msra.mxu0 0.0
    %1234 = vmatprep.subr.mxu0 0.0
    %1235 = vmatpush2.msra.mxu0 0.0
    %1236 = vmatprep.mubr.f32.mxu0 0.0
    %1237 = vmatmul.mubr.f32.gmra.mxu0 %v1171
    %v1238 = vpop.f32.mrf.mxu0
    %v1239 = vadd.f32 0.0, %v1238
    %v1240 = vpop.f32.mrf.mxu0
    %1241 = vdwg.mxu0
    %v1242 = vadd.f32 %v404, %v1019
    %v1243 = vadd.f32 %v406, %v1088
    %v1244 = vadd.f32 %v475, %v1090
    %v1245 = vadd.f32 %v477, %v1159
    %1246 = vmatprep.subr.mxu0 %v312
    %1247 = vmatpush1.msra.mxu0 %v311
    %1248 = vmatprep.subr.mxu0 %v308
    %1249 = vmatpush1.msra.mxu0 %v307
    %1250 = vmatprep.subr.mxu0 %v304
    %1251 = vmatpush1.msra.mxu0 %v303
    %1252 = vmatprep.subr.mxu0 %v300
    %1253 = vmatpush1.msra.mxu0 %v299
    %1254 = vmatprep.subr.mxu0 %v296
    %1255 = vmatpush1.msra.mxu0 %v295
    %1256 = vmatprep.subr.mxu0 %v292
    %1257 = vmatpush1.msra.mxu0 %v291
    %1258 = vmatprep.subr.mxu0 %v288
    %1259 = vmatpush1.msra.mxu0 %v287
    %1260 = vmatprep.subr.mxu0 %v284
    %1261 = vmatpush1.msra.mxu0 %v283
    %1262 = vmatprep.subr.mxu0 %v280
    %1263 = vmatpush1.msra.mxu0 %v279
    %1264 = vmatprep.subr.mxu0 %v276
    %1265 = vmatpush1.msra.mxu0 %v275
    %1266 = vmatprep.subr.mxu0 %v272
    %1267 = vmatpush1.msra.mxu0 %v271
    %1268 = vmatprep.subr.mxu0 %v268
    %1269 = vmatpush1.msra.mxu0 %v267
    %1270 = vmatprep.subr.mxu0 %v264
    %1271 = vmatpush1.msra.mxu0 %v263
    %1272 = vmatprep.subr.mxu0 %v260
    %1273 = vmatpush1.msra.mxu0 %v259
    %1274 = vmatprep.subr.mxu0 %v256
    %1275 = vmatpush1.msra.mxu0 %v255
    %1276 = vmatprep.subr.mxu0 %v252
    %1277 = vmatpush1.msra.mxu0 %v251
    %1278 = vmatprep.subr.mxu0 0.0
    %1279 = vmatpush2.msra.mxu0 0.0
    %1280 = vmatprep.subr.mxu0 0.0
    %1281 = vmatpush2.msra.mxu0 0.0
    %1282 = vmatprep.subr.mxu0 0.0
    %1283 = vmatpush2.msra.mxu0 0.0
    %1284 = vmatprep.subr.mxu0 0.0
    %1285 = vmatpush2.msra.mxu0 0.0
    %1286 = vmatprep.subr.mxu0 0.0
    %1287 = vmatpush2.msra.mxu0 0.0
    %1288 = vmatprep.subr.mxu0 0.0
    %1289 = vmatpush2.msra.mxu0 0.0
    %1290 = vmatprep.subr.mxu0 0.0
    %1291 = vmatpush2.msra.mxu0 0.0
    %1292 = vmatprep.subr.mxu0 0.0
    %1293 = vmatpush2.msra.mxu0 0.0
    %1294 = vmatprep.subr.mxu0 0.0
    %1295 = vmatpush2.msra.mxu0 0.0
    %1296 = vmatprep.subr.mxu0 0.0
    %1297 = vmatpush2.msra.mxu0 0.0
    %1298 = vmatprep.subr.mxu0 0.0
    %1299 = vmatpush2.msra.mxu0 0.0
    %1300 = vmatprep.subr.mxu0 0.0
    %1301 = vmatpush2.msra.mxu0 0.0
    %1302 = vmatprep.subr.mxu0 0.0
    %1303 = vmatpush2.msra.mxu0 0.0
    %1304 = vmatprep.subr.mxu0 0.0
    %1305 = vmatpush2.msra.mxu0 0.0
    %1306 = vmatprep.subr.mxu0 0.0
    %1307 = vmatpush2.msra.mxu0 0.0
    %1308 = vmatprep.subr.mxu0 0.0
    %1309 = vmatpush2.msra.mxu0 0.0
    %1310 = vmatprep.mubr.f32.mxu0 0.0
    %1311 = vmatmul.mubr.f32.gmra.mxu0 %v1239
    %v1312 = vpop.f32.mrf.mxu0
    %v1313 = vadd.f32 0.0, %v1312
    %v1314 = vpop.f32.mrf.mxu0
    %v1315 = vadd.f32 0.0, %v1314
    %1316 = vdwg.mxu0
    %1317 = vmatprep.subr.mxu0 %v314
    %1318 = vmatpush1.msra.mxu0 %v313
    %1319 = vmatprep.subr.mxu0 %v310
    %1320 = vmatpush1.msra.mxu0 %v309
    %1321 = vmatprep.subr.mxu0 %v306
    %1322 = vmatpush1.msra.mxu0 %v305
    %1323 = vmatprep.subr.mxu0 %v302
    %1324 = vmatpush1.msra.mxu0 %v301
    %1325 = vmatprep.subr.mxu0 %v298
    %1326 = vmatpush1.msra.mxu0 %v297
    %1327 = vmatprep.subr.mxu0 %v294
    %1328 = vmatpush1.msra.mxu0 %v293
    %1329 = vmatprep.subr.mxu0 %v290
    %1330 = vmatpush1.msra.mxu0 %v289
    %1331 = vmatprep.subr.mxu0 %v286
    %1332 = vmatpush1.msra.mxu0 %v285
    %1333 = vmatprep.subr.mxu0 %v282
    %1334 = vmatpush1.msra.mxu0 %v281
    %1335 = vmatprep.subr.mxu0 %v278
    %1336 = vmatpush1.msra.mxu0 %v277
    %1337 = vmatprep.subr.mxu0 %v274
    %1338 = vmatpush1.msra.mxu0 %v273
    %1339 = vmatprep.subr.mxu0 %v270
    %1340 = vmatpush1.msra.mxu0 %v269
    %1341 = vmatprep.subr.mxu0 %v266
    %1342 = vmatpush1.msra.mxu0 %v265
    %1343 = vmatprep.subr.mxu0 %v262
    %1344 = vmatpush1.msra.mxu0 %v261
    %1345 = vmatprep.subr.mxu0 %v258
    %1346 = vmatpush1.msra.mxu0 %v257
    %1347 = vmatprep.subr.mxu0 %v254
    %1348 = vmatpush1.msra.mxu0 %v253
    %1349 = vmatprep.subr.mxu0 0.0
    %1350 = vmatpush2.msra.mxu0 0.0
    %1351 = vmatprep.subr.mxu0 0.0
    %1352 = vmatpush2.msra.mxu0 0.0
    %1353 = vmatprep.subr.mxu0 0.0
    %1354 = vmatpush2.msra.mxu0 0.0
    %1355 = vmatprep.subr.mxu0 0.0
    %1356 = vmatpush2.msra.mxu0 0.0
    %1357 = vmatprep.subr.mxu0 0.0
    %1358 = vmatpush2.msra.mxu0 0.0
    %1359 = vmatprep.subr.mxu0 0.0
    %1360 = vmatpush2.msra.mxu0 0.0
    %1361 = vmatprep.subr.mxu0 0.0
    %1362 = vmatpush2.msra.mxu0 0.0
    %1363 = vmatprep.subr.mxu0 0.0
    %1364 = vmatpush2.msra.mxu0 0.0
    %1365 = vmatprep.subr.mxu0 0.0
    %1366 = vmatpush2.msra.mxu0 0.0
    %1367 = vmatprep.subr.mxu0 0.0
    %1368 = vmatpush2.msra.mxu0 0.0
    %1369 = vmatprep.subr.mxu0 0.0
    %1370 = vmatpush2.msra.mxu0 0.0
    %1371 = vmatprep.subr.mxu0 0.0
    %1372 = vmatpush2.msra.mxu0 0.0
    %1373 = vmatprep.subr.mxu0 0.0
    %1374 = vmatpush2.msra.mxu0 0.0
    %1375 = vmatprep.subr.mxu0 0.0
    %1376 = vmatpush2.msra.mxu0 0.0
    %1377 = vmatprep.subr.mxu0 0.0
    %1378 = vmatpush2.msra.mxu0 0.0
    %1379 = vmatprep.subr.mxu0 0.0
    %1380 = vmatpush2.msra.mxu0 0.0
    %1381 = vmatprep.mubr.f32.mxu0 0.0
    %1382 = vmatmul.mubr.f32.gmra.mxu0 %v1239
    %v1383 = vpop.f32.mrf.mxu0
    %v1384 = vadd.f32 0.0, %v1383
    %v1385 = vpop.f32.mrf.mxu0
    %v1386 = vadd.f32 0.0, %v1385
    %1387 = vdwg.mxu0
    %v1388 = vadd.f32 %v1242, %v1313
    %v1389 = vadd.f32 %v1243, %v1315
    %v1390 = vadd.f32 %v1244, %v1384
    %v1391 = vadd.f32 %v1245, %v1386
    %v1392 = vxor.u32 %v1388, 2147483648
    %v1393 = vmul.f32 %v1392, 1.442695
    %v1394 = vpow.pop %v1393
    %v1395 = vadd.f32 %v1394, 1.0
    %v1396 = vrcp.pop %v1395
    %v1397 = vmul.f32 1.0, %v1396
    %v1398 = vxor.u32 %v1389, 2147483648
    %v1399 = vmul.f32 %v1398, 1.442695
    %v1400 = vpow.pop %v1399
    %v1401 = vadd.f32 %v1400, 1.0
    %v1402 = vrcp.pop %v1401
    %v1403 = vmul.f32 1.0, %v1402
    %v1404 = vtanh.pop %v1390
    %v1405 = vxor.u32 %v1391, 2147483648
    %v1406 = vmul.f32 %v1405, 1.442695
    %v1407 = vpow.pop %v1406
    %v1408 = vadd.f32 %v1407, 1.0
    %v1409 = vrcp.pop %v1408
    %v1410 = vmul.f32 1.0, %v1409
    %v1411 = vmul.f32 %v1403, %v946
    %v1412 = vmul.f32 %v1397, %v1404
    %v1413 = vadd.f32 %v1411, %v1412
    %v1414 = vtanh.pop %v1413
    %v1415 = vmul.f32 %v1410, %v1414
    %v1416 = vadd.f32 %v1415, %v90
    %1417 = vmatprep.subr.mxu0 %v183
    %1418 = vmatpush1.msra.mxu0 %v182
    %1419 = vmatprep.subr.mxu0 %v178
    %1420 = vmatpush1.msra.mxu0 %v177
    %1421 = vmatprep.subr.mxu0 %v173
    %1422 = vmatpush1.msra.mxu0 %v172
    %1423 = vmatprep.subr.mxu0 %v168
    %1424 = vmatpush1.msra.mxu0 %v167
    %1425 = vmatprep.subr.mxu0 %v163
    %1426 = vmatpush1.msra.mxu0 %v162
    %1427 = vmatprep.subr.mxu0 %v158
    %1428 = vmatpush1.msra.mxu0 %v157
    %1429 = vmatprep.subr.mxu0 %v153
    %1430 = vmatpush1.msra.mxu0 %v152
    %1431 = vmatprep.subr.mxu0 %v148
    %1432 = vmatpush1.msra.mxu0 %v147
    %1433 = vmatprep.subr.mxu0 %v143
    %1434 = vmatpush1.msra.mxu0 %v142
    %1435 = vmatprep.subr.mxu0 %v138
    %1436 = vmatpush1.msra.mxu0 %v137
    %1437 = vmatprep.subr.mxu0 %v133
    %1438 = vmatpush1.msra.mxu0 %v132
    %1439 = vmatprep.subr.mxu0 %v128
    %1440 = vmatpush1.msra.mxu0 %v127
    %1441 = vmatprep.subr.mxu0 %v123
    %1442 = vmatpush1.msra.mxu0 %v122
    %1443 = vmatprep.subr.mxu0 %v118
    %1444 = vmatpush1.msra.mxu0 %v117
    %1445 = vmatprep.subr.mxu0 %v113
    %1446 = vmatpush1.msra.mxu0 %v112
    %1447 = vmatprep.subr.mxu0 %v108
    %1448 = vmatpush1.msra.mxu0 %v107
    %1449 = vmatprep.subr.mxu0 0.0
    %1450 = vmatpush2.msra.mxu0 0.0
    %1451 = vmatprep.subr.mxu0 0.0
    %1452 = vmatpush2.msra.mxu0 0.0
    %1453 = vmatprep.subr.mxu0 0.0
    %1454 = vmatpush2.msra.mxu0 0.0
    %1455 = vmatprep.subr.mxu0 0.0
    %1456 = vmatpush2.msra.mxu0 0.0
    %1457 = vmatprep.subr.mxu0 0.0
    %1458 = vmatpush2.msra.mxu0 0.0
    %1459 = vmatprep.subr.mxu0 0.0
    %1460 = vmatpush2.msra.mxu0 0.0
    %1461 = vmatprep.subr.mxu0 0.0
    %1462 = vmatpush2.msra.mxu0 0.0
    %1463 = vmatprep.subr.mxu0 0.0
    %1464 = vmatpush2.msra.mxu0 0.0
    %1465 = vmatprep.subr.mxu0 0.0
    %1466 = vmatpush2.msra.mxu0 0.0
    %1467 = vmatprep.subr.mxu0 0.0
    %1468 = vmatpush2.msra.mxu0 0.0
    %1469 = vmatprep.subr.mxu0 0.0
    %1470 = vmatpush2.msra.mxu0 0.0
    %1471 = vmatprep.subr.mxu0 0.0
    %1472 = vmatpush2.msra.mxu0 0.0
    %1473 = vmatprep.subr.mxu0 0.0
    %1474 = vmatpush2.msra.mxu0 0.0
    %1475 = vmatprep.subr.mxu0 0.0
    %1476 = vmatpush2.msra.mxu0 0.0
    %1477 = vmatprep.subr.mxu0 0.0
    %1478 = vmatpush2.msra.mxu0 0.0
    %1479 = vmatprep.subr.mxu0 0.0
    %1480 = vmatpush2.msra.mxu0 0.0
    %1481 = vmatprep.mubr.f32.mxu0 0.0
    %1482 = vmatmul.mubr.f32.gmra.mxu0 %v1416
    %v1483 = vpop.f32.mrf.mxu0
    %v1484 = vadd.f32 0.0, %v1483
    %v1485 = vpop.f32.mrf.mxu0
    %v1486 = vadd.f32 0.0, %v1485
    %1487 = vdwg.mxu0
    %1488 = vmatprep.subr.mxu0 %v185
    %1489 = vmatpush1.msra.mxu0 %v184
    %1490 = vmatprep.subr.mxu0 %v180
    %1491 = vmatpush1.msra.mxu0 %v179
    %1492 = vmatprep.subr.mxu0 %v175
    %1493 = vmatpush1.msra.mxu0 %v174
    %1494 = vmatprep.subr.mxu0 %v170
    %1495 = vmatpush1.msra.mxu0 %v169
    %1496 = vmatprep.subr.mxu0 %v165
    %1497 = vmatpush1.msra.mxu0 %v164
    %1498 = vmatprep.subr.mxu0 %v160
    %1499 = vmatpush1.msra.mxu0 %v159
    %1500 = vmatprep.subr.mxu0 %v155
    %1501 = vmatpush1.msra.mxu0 %v154
    %1502 = vmatprep.subr.mxu0 %v150
    %1503 = vmatpush1.msra.mxu0 %v149
    %1504 = vmatprep.subr.mxu0 %v145
    %1505 = vmatpush1.msra.mxu0 %v144
    %1506 = vmatprep.subr.mxu0 %v140
    %1507 = vmatpush1.msra.mxu0 %v139
    %1508 = vmatprep.subr.mxu0 %v135
    %1509 = vmatpush1.msra.mxu0 %v134
    %1510 = vmatprep.subr.mxu0 %v130
    %1511 = vmatpush1.msra.mxu0 %v129
    %1512 = vmatprep.subr.mxu0 %v125
    %1513 = vmatpush1.msra.mxu0 %v124
    %1514 = vmatprep.subr.mxu0 %v120
    %1515 = vmatpush1.msra.mxu0 %v119
    %1516 = vmatprep.subr.mxu0 %v115
    %1517 = vmatpush1.msra.mxu0 %v114
    %1518 = vmatprep.subr.mxu0 %v110
    %1519 = vmatpush1.msra.mxu0 %v109
    %1520 = vmatprep.subr.mxu0 0.0
    %1521 = vmatpush2.msra.mxu0 0.0
    %1522 = vmatprep.subr.mxu0 0.0
    %1523 = vmatpush2.msra.mxu0 0.0
    %1524 = vmatprep.subr.mxu0 0.0
    %1525 = vmatpush2.msra.mxu0 0.0
    %1526 = vmatprep.subr.mxu0 0.0
    %1527 = vmatpush2.msra.mxu0 0.0
    %1528 = vmatprep.subr.mxu0 0.0
    %1529 = vmatpush2.msra.mxu0 0.0
    %1530 = vmatprep.subr.mxu0 0.0
    %1531 = vmatpush2.msra.mxu0 0.0
    %1532 = vmatprep.subr.mxu0 0.0
    %1533 = vmatpush2.msra.mxu0 0.0
    %1534 = vmatprep.subr.mxu0 0.0
    %1535 = vmatpush2.msra.mxu0 0.0
    %1536 = vmatprep.subr.mxu0 0.0
    %1537 = vmatpush2.msra.mxu0 0.0
    %1538 = vmatprep.subr.mxu0 0.0
    %1539 = vmatpush2.msra.mxu0 0.0
    %1540 = vmatprep.subr.mxu0 0.0
    %1541 = vmatpush2.msra.mxu0 0.0
    %1542 = vmatprep.subr.mxu0 0.0
    %1543 = vmatpush2.msra.mxu0 0.0
    %1544 = vmatprep.subr.mxu0 0.0
    %1545 = vmatpush2.msra.mxu0 0.0
    %1546 = vmatprep.subr.mxu0 0.0
    %1547 = vmatpush2.msra.mxu0 0.0
    %1548 = vmatprep.subr.mxu0 0.0
    %1549 = vmatpush2.msra.mxu0 0.0
    %1550 = vmatprep.subr.mxu0 0.0
    %1551 = vmatpush2.msra.mxu0 0.0
    %1552 = vmatprep.mubr.f32.mxu0 0.0
    %1553 = vmatmul.mubr.f32.gmra.mxu0 %v1416
    %v1554 = vpop.f32.mrf.mxu0
    %v1555 = vadd.f32 0.0, %v1554
    %v1556 = vpop.f32.mrf.mxu0
    %v1557 = vadd.f32 0.0, %v1556
    %1558 = vdwg.mxu0
    %1559 = vmatprep.subr.mxu0 0.0
    %1560 = vmatpush1.msra.mxu0 %v186
    %1561 = vmatprep.subr.mxu0 0.0
    %1562 = vmatpush1.msra.mxu0 %v181
    %1563 = vmatprep.subr.mxu0 0.0
    %1564 = vmatpush1.msra.mxu0 %v176
    %1565 = vmatprep.subr.mxu0 0.0
    %1566 = vmatpush1.msra.mxu0 %v171
    %1567 = vmatprep.subr.mxu0 0.0
    %1568 = vmatpush1.msra.mxu0 %v166
    %1569 = vmatprep.subr.mxu0 0.0
    %1570 = vmatpush1.msra.mxu0 %v161
    %1571 = vmatprep.subr.mxu0 0.0
    %1572 = vmatpush1.msra.mxu0 %v156
    %1573 = vmatprep.subr.mxu0 0.0
    %1574 = vmatpush1.msra.mxu0 %v151
    %1575 = vmatprep.subr.mxu0 0.0
    %1576 = vmatpush1.msra.mxu0 %v146
    %1577 = vmatprep.subr.mxu0 0.0
    %1578 = vmatpush1.msra.mxu0 %v141
    %1579 = vmatprep.subr.mxu0 0.0
    %1580 = vmatpush1.msra.mxu0 %v136
    %1581 = vmatprep.subr.mxu0 0.0
    %1582 = vmatpush1.msra.mxu0 %v131
    %1583 = vmatprep.subr.mxu0 0.0
    %1584 = vmatpush1.msra.mxu0 %v126
    %1585 = vmatprep.subr.mxu0 0.0
    %1586 = vmatpush1.msra.mxu0 %v121
    %1587 = vmatprep.subr.mxu0 0.0
    %1588 = vmatpush1.msra.mxu0 %v116
    %1589 = vmatprep.subr.mxu0 0.0
    %1590 = vmatpush1.msra.mxu0 %v111
    %1591 = vmatprep.subr.mxu0 0.0
    %1592 = vmatpush2.msra.mxu0 0.0
    %1593 = vmatprep.subr.mxu0 0.0
    %1594 = vmatpush2.msra.mxu0 0.0
    %1595 = vmatprep.subr.mxu0 0.0
    %1596 = vmatpush2.msra.mxu0 0.0
    %1597 = vmatprep.subr.mxu0 0.0
    %1598 = vmatpush2.msra.mxu0 0.0
    %1599 = vmatprep.subr.mxu0 0.0
    %1600 = vmatpush2.msra.mxu0 0.0
    %1601 = vmatprep.subr.mxu0 0.0
    %1602 = vmatpush2.msra.mxu0 0.0
    %1603 = vmatprep.subr.mxu0 0.0
    %1604 = vmatpush2.msra.mxu0 0.0
    %1605 = vmatprep.subr.mxu0 0.0
    %1606 = vmatpush2.msra.mxu0 0.0
    %1607 = vmatprep.subr.mxu0 0.0
    %1608 = vmatpush2.msra.mxu0 0.0
    %1609 = vmatprep.subr.mxu0 0.0
    %1610 = vmatpush2.msra.mxu0 0.0
    %1611 = vmatprep.subr.mxu0 0.0
    %1612 = vmatpush2.msra.mxu0 0.0
    %1613 = vmatprep.subr.mxu0 0.0
    %1614 = vmatpush2.msra.mxu0 0.0
    %1615 = vmatprep.subr.mxu0 0.0
    %1616 = vmatpush2.msra.mxu0 0.0
    %1617 = vmatprep.subr.mxu0 0.0
    %1618 = vmatpush2.msra.mxu0 0.0
    %1619 = vmatprep.subr.mxu0 0.0
    %1620 = vmatpush2.msra.mxu0 0.0
    %1621 = vmatprep.subr.mxu0 0.0
    %1622 = vmatpush2.msra.mxu0 0.0
    %1623 = vmatprep.mubr.f32.mxu0 0.0
    %1624 = vmatmul.mubr.f32.gmra.mxu0 %v1416
    %v1625 = vpop.f32.mrf.mxu0
    %v1626 = vadd.f32 0.0, %v1625
    %v1627 = vpop.f32.mrf.mxu0
    %1628 = vdwg.mxu0
    %v1629 = vadd.f32 %v1484, %v482
    %1630 = vmax.xlane.f32.xlu0 %v1629
    %v1631 = vpop.xlane.xlu0 %1630
    %v1632 = vsub.f32 %v1629, %v1631
    %v1633 = vmul.f32 %v1632, 1.442695
    %v1634 = vpow.pop %v1633
    %1635 = vadd.xlane.f32.xlu0 %v1634
    %v1636 = vpop.xlane.xlu0 %1635
    %v1637 = vrcp.pop %v1636
    %v1638 = vmul.f32 %v1634, %v1637
    %1639 = vmatprep.subr.mxu0 0.0
    %1640 = vmatpush1.msra.mxu0 %v106
    %1641 = vmatprep.subr.mxu0 0.0
    %1642 = vmatpush1.msra.mxu0 %v105
    %1643 = vmatprep.subr.mxu0 0.0
    %1644 = vmatpush1.msra.mxu0 %v104
    %1645 = vmatprep.subr.mxu0 0.0
    %1646 = vmatpush1.msra.mxu0 %v103
    %1647 = vmatprep.subr.mxu0 0.0
    %1648 = vmatpush1.msra.mxu0 %v102
    %1649 = vmatprep.subr.mxu0 0.0
    %1650 = vmatpush1.msra.mxu0 %v101
    %1651 = vmatprep.subr.mxu0 0.0
    %1652 = vmatpush1.msra.mxu0 %v100
    %1653 = vmatprep.subr.mxu0 0.0
    %1654 = vmatpush1.msra.mxu0 %v99
    %1655 = vmatprep.subr.mxu0 0.0
    %1656 = vmatpush1.msra.mxu0 %v98
    %1657 = vmatprep.subr.mxu0 0.0
    %1658 = vmatpush1.msra.mxu0 %v97
    %1659 = vmatprep.subr.mxu0 0.0
    %1660 = vmatpush1.msra.mxu0 %v96
    %1661 = vmatprep.subr.mxu0 0.0
    %1662 = vmatpush1.msra.mxu0 %v95
    %1663 = vmatprep.subr.mxu0 0.0
    %1664 = vmatpush1.msra.mxu0 %v94
    %1665 = vmatprep.subr.mxu0 0.0
    %1666 = vmatpush1.msra.mxu0 %v93
    %1667 = vmatprep.subr.mxu0 0.0
    %1668 = vmatpush1.msra.mxu0 %v92
    %1669 = vmatprep.subr.mxu0 0.0
    %1670 = vmatpush1.msra.mxu0 %v91
    %1671 = vmatprep.subr.mxu0 0.0
    %1672 = vmatpush2.msra.mxu0 0.0
    %1673 = vmatprep.subr.mxu0 0.0
    %1674 = vmatpush2.msra.mxu0 0.0
    %1675 = vmatprep.subr.mxu0 0.0
    %1676 = vmatpush2.msra.mxu0 0.0
    %1677 = vmatprep.subr.mxu0 0.0
    %1678 = vmatpush2.msra.mxu0 0.0
    %1679 = vmatprep.subr.mxu0 0.0
    %1680 = vmatpush2.msra.mxu0 0.0
    %1681 = vmatprep.subr.mxu0 0.0
    %1682 = vmatpush2.msra.mxu0 0.0
    %1683 = vmatprep.subr.mxu0 0.0
    %1684 = vmatpush2.msra.mxu0 0.0
    %1685 = vmatprep.subr.mxu0 0.0
    %1686 = vmatpush2.msra.mxu0 0.0
    %1687 = vmatprep.subr.mxu0 0.0
    %1688 = vmatpush2.msra.mxu0 0.0
    %1689 = vmatprep.subr.mxu0 0.0
    %1690 = vmatpush2.msra.mxu0 0.0
    %1691 = vmatprep.subr.mxu0 0.0
    %1692 = vmatpush2.msra.mxu0 0.0
    %1693 = vmatprep.subr.mxu0 0.0
    %1694 = vmatpush2.msra.mxu0 0.0
    %1695 = vmatprep.subr.mxu0 0.0
    %1696 = vmatpush2.msra.mxu0 0.0
    %1697 = vmatprep.subr.mxu0 0.0
    %1698 = vmatpush2.msra.mxu0 0.0
    %1699 = vmatprep.subr.mxu0 0.0
    %1700 = vmatpush2.msra.mxu0 0.0
    %1701 = vmatprep.subr.mxu0 0.0
    %1702 = vmatpush2.msra.mxu0 0.0
    %1703 = vmatprep.mubr.f32.mxu0 0.0
    %1704 = vmatmul.mubr.f32.gmra.mxu0 %v1638
    %v1705 = vpop.f32.mrf.mxu0
    %v1706 = vadd.f32 0.0, %v1705
    %v1707 = vpop.f32.mrf.mxu0
    %1708 = vdwg.mxu0
    %v1709 = vadd.f32 %v404, %v1486
    %v1710 = vadd.f32 %v406, %v1555
    %v1711 = vadd.f32 %v475, %v1557
    %v1712 = vadd.f32 %v477, %v1626
    %1713 = vmatprep.subr.mxu0 %v312
    %1714 = vmatpush1.msra.mxu0 %v311
    %1715 = vmatprep.subr.mxu0 %v308
    %1716 = vmatpush1.msra.mxu0 %v307
    %1717 = vmatprep.subr.mxu0 %v304
    %1718 = vmatpush1.msra.mxu0 %v303
    %1719 = vmatprep.subr.mxu0 %v300
    %1720 = vmatpush1.msra.mxu0 %v299
    %1721 = vmatprep.subr.mxu0 %v296
    %1722 = vmatpush1.msra.mxu0 %v295
    %1723 = vmatprep.subr.mxu0 %v292
    %1724 = vmatpush1.msra.mxu0 %v291
    %1725 = vmatprep.subr.mxu0 %v288
    %1726 = vmatpush1.msra.mxu0 %v287
    %1727 = vmatprep.subr.mxu0 %v284
    %1728 = vmatpush1.msra.mxu0 %v283
    %1729 = vmatprep.subr.mxu0 %v280
    %1730 = vmatpush1.msra.mxu0 %v279
    %1731 = vmatprep.subr.mxu0 %v276
    %1732 = vmatpush1.msra.mxu0 %v275
    %1733 = vmatprep.subr.mxu0 %v272
    %1734 = vmatpush1.msra.mxu0 %v271
    %1735 = vmatprep.subr.mxu0 %v268
    %1736 = vmatpush1.msra.mxu0 %v267
    %1737 = vmatprep.subr.mxu0 %v264
    %1738 = vmatpush1.msra.mxu0 %v263
    %1739 = vmatprep.subr.mxu0 %v260
    %1740 = vmatpush1.msra.mxu0 %v259
    %1741 = vmatprep.subr.mxu0 %v256
    %1742 = vmatpush1.msra.mxu0 %v255
    %1743 = vmatprep.subr.mxu0 %v252
    %1744 = vmatpush1.msra.mxu0 %v251
    %1745 = vmatprep.subr.mxu0 0.0
    %1746 = vmatpush2.msra.mxu0 0.0
    %1747 = vmatprep.subr.mxu0 0.0
    %1748 = vmatpush2.msra.mxu0 0.0
    %1749 = vmatprep.subr.mxu0 0.0
    %1750 = vmatpush2.msra.mxu0 0.0
    %1751 = vmatprep.subr.mxu0 0.0
    %1752 = vmatpush2.msra.mxu0 0.0
    %1753 = vmatprep.subr.mxu0 0.0
    %1754 = vmatpush2.msra.mxu0 0.0
    %1755 = vmatprep.subr.mxu0 0.0
    %1756 = vmatpush2.msra.mxu0 0.0
    %1757 = vmatprep.subr.mxu0 0.0
    %1758 = vmatpush2.msra.mxu0 0.0
    %1759 = vmatprep.subr.mxu0 0.0
    %1760 = vmatpush2.msra.mxu0 0.0
    %1761 = vmatprep.subr.mxu0 0.0
    %1762 = vmatpush2.msra.mxu0 0.0
    %1763 = vmatprep.subr.mxu0 0.0
    %1764 = vmatpush2.msra.mxu0 0.0
    %1765 = vmatprep.subr.mxu0 0.0
    %1766 = vmatpush2.msra.mxu0 0.0
    %1767 = vmatprep.subr.mxu0 0.0
    %1768 = vmatpush2.msra.mxu0 0.0
    %1769 = vmatprep.subr.mxu0 0.0
    %1770 = vmatpush2.msra.mxu0 0.0
    %1771 = vmatprep.subr.mxu0 0.0
    %1772 = vmatpush2.msra.mxu0 0.0
    %1773 = vmatprep.subr.mxu0 0.0
    %1774 = vmatpush2.msra.mxu0 0.0
    %1775 = vmatprep.subr.mxu0 0.0
    %1776 = vmatpush2.msra.mxu0 0.0
    %1777 = vmatprep.mubr.f32.mxu0 0.0
    %1778 = vmatmul.mubr.f32.gmra.mxu0 %v1706
    %v1779 = vpop.f32.mrf.mxu0
    %v1780 = vadd.f32 0.0, %v1779
    %v1781 = vpop.f32.mrf.mxu0
    %v1782 = vadd.f32 0.0, %v1781
    %1783 = vdwg.mxu0
    %1784 = vmatprep.subr.mxu0 %v314
    %1785 = vmatpush1.msra.mxu0 %v313
    %1786 = vmatprep.subr.mxu0 %v310
    %1787 = vmatpush1.msra.mxu0 %v309
    %1788 = vmatprep.subr.mxu0 %v306
    %1789 = vmatpush1.msra.mxu0 %v305
    %1790 = vmatprep.subr.mxu0 %v302
    %1791 = vmatpush1.msra.mxu0 %v301
    %1792 = vmatprep.subr.mxu0 %v298
    %1793 = vmatpush1.msra.mxu0 %v297
    %1794 = vmatprep.subr.mxu0 %v294
    %1795 = vmatpush1.msra.mxu0 %v293
    %1796 = vmatprep.subr.mxu0 %v290
    %1797 = vmatpush1.msra.mxu0 %v289
    %1798 = vmatprep.subr.mxu0 %v286
    %1799 = vmatpush1.msra.mxu0 %v285
    %1800 = vmatprep.subr.mxu0 %v282
    %1801 = vmatpush1.msra.mxu0 %v281
    %1802 = vmatprep.subr.mxu0 %v278
    %1803 = vmatpush1.msra.mxu0 %v277
    %1804 = vmatprep.subr.mxu0 %v274
    %1805 = vmatpush1.msra.mxu0 %v273
    %1806 = vmatprep.subr.mxu0 %v270
    %1807 = vmatpush1.msra.mxu0 %v269
    %1808 = vmatprep.subr.mxu0 %v266
    %1809 = vmatpush1.msra.mxu0 %v265
    %1810 = vmatprep.subr.mxu0 %v262
    %1811 = vmatpush1.msra.mxu0 %v261
    %1812 = vmatprep.subr.mxu0 %v258
    %1813 = vmatpush1.msra.mxu0 %v257
    %1814 = vmatprep.subr.mxu0 %v254
    %1815 = vmatpush1.msra.mxu0 %v253
    %1816 = vmatprep.subr.mxu0 0.0
    %1817 = vmatpush2.msra.mxu0 0.0
    %1818 = vmatprep.subr.mxu0 0.0
    %1819 = vmatpush2.msra.mxu0 0.0
    %1820 = vmatprep.subr.mxu0 0.0
    %1821 = vmatpush2.msra.mxu0 0.0
    %1822 = vmatprep.subr.mxu0 0.0
    %1823 = vmatpush2.msra.mxu0 0.0
    %1824 = vmatprep.subr.mxu0 0.0
    %1825 = vmatpush2.msra.mxu0 0.0
    %1826 = vmatprep.subr.mxu0 0.0
    %1827 = vmatpush2.msra.mxu0 0.0
    %1828 = vmatprep.subr.mxu0 0.0
    %1829 = vmatpush2.msra.mxu0 0.0
    %1830 = vmatprep.subr.mxu0 0.0
    %1831 = vmatpush2.msra.mxu0 0.0
    %1832 = vmatprep.subr.mxu0 0.0
    %1833 = vmatpush2.msra.mxu0 0.0
    %1834 = vmatprep.subr.mxu0 0.0
    %1835 = vmatpush2.msra.mxu0 0.0
    %1836 = vmatprep.subr.mxu0 0.0
    %1837 = vmatpush2.msra.mxu0 0.0
    %1838 = vmatprep.subr.mxu0 0.0
    %1839 = vmatpush2.msra.mxu0 0.0
    %1840 = vmatprep.subr.mxu0 0.0
    %1841 = vmatpush2.msra.mxu0 0.0
    %1842 = vmatprep.subr.mxu0 0.0
    %1843 = vmatpush2.msra.mxu0 0.0
    %1844 = vmatprep.subr.mxu0 0.0
    %1845 = vmatpush2.msra.mxu0 0.0
    %1846 = vmatprep.subr.mxu0 0.0
    %1847 = vmatpush2.msra.mxu0 0.0
    %1848 = vmatprep.mubr.f32.mxu0 0.0
    %1849 = vmatmul.mubr.f32.gmra.mxu0 %v1706
    %v1850 = vpop.f32.mrf.mxu0
    %v1851 = vadd.f32 0.0, %v1850
    %v1852 = vpop.f32.mrf.mxu0
    %v1853 = vadd.f32 0.0, %v1852
    %1854 = vdwg.mxu0
    %v1855 = vadd.f32 %v1709, %v1780
    %v1856 = vadd.f32 %v1710, %v1782
    %v1857 = vadd.f32 %v1711, %v1851
    %v1858 = vadd.f32 %v1712, %v1853
    %v1859 = vxor.u32 %v1855, 2147483648
    %v1860 = vmul.f32 %v1859, 1.442695
    %v1861 = vpow.pop %v1860
    %v1862 = vadd.f32 %v1861, 1.0
    %v1863 = vrcp.pop %v1862
    %v1864 = vmul.f32 1.0, %v1863
    %v1865 = vxor.u32 %v1856, 2147483648
    %v1866 = vmul.f32 %v1865, 1.442695
    %v1867 = vpow.pop %v1866
    %v1868 = vadd.f32 %v1867, 1.0
    %v1869 = vrcp.pop %v1868
    %v1870 = vmul.f32 1.0, %v1869
    %v1871 = vtanh.pop %v1857
    %v1872 = vxor.u32 %v1858, 2147483648
    %v1873 = vmul.f32 %v1872, 1.442695
    %v1874 = vpow.pop %v1873
    %v1875 = vadd.f32 %v1874, 1.0
    %v1876 = vrcp.pop %v1875
    %v1877 = vmul.f32 1.0, %v1876
    %v1878 = vmul.f32 %v1870, %v1413
    %v1879 = vmul.f32 %v1864, %v1871
    %v1880 = vadd.f32 %v1878, %v1879
    %v1881 = vtanh.pop %v1880
    %v1882 = vmul.f32 %v1877, %v1881
    %v1883 = vadd.f32 %v1882, %v90
    %1884 = vmatprep.subr.mxu0 %v183
    %1885 = vmatpush1.msra.mxu0 %v182
    %1886 = vmatprep.subr.mxu0 %v178
    %1887 = vmatpush1.msra.mxu0 %v177
    %1888 = vmatprep.subr.mxu0 %v173
    %1889 = vmatpush1.msra.mxu0 %v172
    %1890 = vmatprep.subr.mxu0 %v168
    %1891 = vmatpush1.msra.mxu0 %v167
    %1892 = vmatprep.subr.mxu0 %v163
    %1893 = vmatpush1.msra.mxu0 %v162
    %1894 = vmatprep.subr.mxu0 %v158
    %1895 = vmatpush1.msra.mxu0 %v157
    %1896 = vmatprep.subr.mxu0 %v153
    %1897 = vmatpush1.msra.mxu0 %v152
    %1898 = vmatprep.subr.mxu0 %v148
    %1899 = vmatpush1.msra.mxu0 %v147
    %1900 = vmatprep.subr.mxu0 %v143
    %1901 = vmatpush1.msra.mxu0 %v142
    %1902 = vmatprep.subr.mxu0 %v138
    %1903 = vmatpush1.msra.mxu0 %v137
    %1904 = vmatprep.subr.mxu0 %v133
    %1905 = vmatpush1.msra.mxu0 %v132
    %1906 = vmatprep.subr.mxu0 %v128
    %1907 = vmatpush1.msra.mxu0 %v127
    %1908 = vmatprep.subr.mxu0 %v123
    %1909 = vmatpush1.msra.mxu0 %v122
    %1910 = vmatprep.subr.mxu0 %v118
    %1911 = vmatpush1.msra.mxu0 %v117
    %1912 = vmatprep.subr.mxu0 %v113
    %1913 = vmatpush1.msra.mxu0 %v112
    %1914 = vmatprep.subr.mxu0 %v108
    %1915 = vmatpush1.msra.mxu0 %v107
    %1916 = vmatprep.subr.mxu0 0.0
    %1917 = vmatpush2.msra.mxu0 0.0
    %1918 = vmatprep.subr.mxu0 0.0
    %1919 = vmatpush2.msra.mxu0 0.0
    %1920 = vmatprep.subr.mxu0 0.0
    %1921 = vmatpush2.msra.mxu0 0.0
    %1922 = vmatprep.subr.mxu0 0.0
    %1923 = vmatpush2.msra.mxu0 0.0
    %1924 = vmatprep.subr.mxu0 0.0
    %1925 = vmatpush2.msra.mxu0 0.0
    %1926 = vmatprep.subr.mxu0 0.0
    %1927 = vmatpush2.msra.mxu0 0.0
    %1928 = vmatprep.subr.mxu0 0.0
    %1929 = vmatpush2.msra.mxu0 0.0
    %1930 = vmatprep.subr.mxu0 0.0
    %1931 = vmatpush2.msra.mxu0 0.0
    %1932 = vmatprep.subr.mxu0 0.0
    %1933 = vmatpush2.msra.mxu0 0.0
    %1934 = vmatprep.subr.mxu0 0.0
    %1935 = vmatpush2.msra.mxu0 0.0
    %1936 = vmatprep.subr.mxu0 0.0
    %1937 = vmatpush2.msra.mxu0 0.0
    %1938 = vmatprep.subr.mxu0 0.0
    %1939 = vmatpush2.msra.mxu0 0.0
    %1940 = vmatprep.subr.mxu0 0.0
    %1941 = vmatpush2.msra.mxu0 0.0
    %1942 = vmatprep.subr.mxu0 0.0
    %1943 = vmatpush2.msra.mxu0 0.0
    %1944 = vmatprep.subr.mxu0 0.0
    %1945 = vmatpush2.msra.mxu0 0.0
    %1946 = vmatprep.subr.mxu0 0.0
    %1947 = vmatpush2.msra.mxu0 0.0
    %1948 = vmatprep.mubr.f32.mxu0 0.0
    %1949 = vmatmul.mubr.f32.gmra.mxu0 %v1883
    %v1950 = vpop.f32.mrf.mxu0
    %v1951 = vadd.f32 0.0, %v1950
    %v1952 = vpop.f32.mrf.mxu0
    %v1953 = vadd.f32 0.0, %v1952
    %1954 = vdwg.mxu0
    %1955 = vmatprep.subr.mxu0 %v185
    %1956 = vmatpush1.msra.mxu0 %v184
    %1957 = vmatprep.subr.mxu0 %v180
    %1958 = vmatpush1.msra.mxu0 %v179
    %1959 = vmatprep.subr.mxu0 %v175
    %1960 = vmatpush1.msra.mxu0 %v174
    %1961 = vmatprep.subr.mxu0 %v170
    %1962 = vmatpush1.msra.mxu0 %v169
    %1963 = vmatprep.subr.mxu0 %v165
    %1964 = vmatpush1.msra.mxu0 %v164
    %1965 = vmatprep.subr.mxu0 %v160
    %1966 = vmatpush1.msra.mxu0 %v159
    %1967 = vmatprep.subr.mxu0 %v155
    %1968 = vmatpush1.msra.mxu0 %v154
    %1969 = vmatprep.subr.mxu0 %v150
    %1970 = vmatpush1.msra.mxu0 %v149
    %1971 = vmatprep.subr.mxu0 %v145
    %1972 = vmatpush1.msra.mxu0 %v144
    %1973 = vmatprep.subr.mxu0 %v140
    %1974 = vmatpush1.msra.mxu0 %v139
    %1975 = vmatprep.subr.mxu0 %v135
    %1976 = vmatpush1.msra.mxu0 %v134
    %1977 = vmatprep.subr.mxu0 %v130
    %1978 = vmatpush1.msra.mxu0 %v129
    %1979 = vmatprep.subr.mxu0 %v125
    %1980 = vmatpush1.msra.mxu0 %v124
    %1981 = vmatprep.subr.mxu0 %v120
    %1982 = vmatpush1.msra.mxu0 %v119
    %1983 = vmatprep.subr.mxu0 %v115
    %1984 = vmatpush1.msra.mxu0 %v114
    %1985 = vmatprep.subr.mxu0 %v110
    %1986 = vmatpush1.msra.mxu0 %v109
    %1987 = vmatprep.subr.mxu0 0.0
    %1988 = vmatpush2.msra.mxu0 0.0
    %1989 = vmatprep.subr.mxu0 0.0
    %1990 = vmatpush2.msra.mxu0 0.0
    %1991 = vmatprep.subr.mxu0 0.0
    %1992 = vmatpush2.msra.mxu0 0.0
    %1993 = vmatprep.subr.mxu0 0.0
    %1994 = vmatpush2.msra.mxu0 0.0
    %1995 = vmatprep.subr.mxu0 0.0
    %1996 = vmatpush2.msra.mxu0 0.0
    %1997 = vmatprep.subr.mxu0 0.0
    %1998 = vmatpush2.msra.mxu0 0.0
    %1999 = vmatprep.subr.mxu0 0.0
    %2000 = vmatpush2.msra.mxu0 0.0
    %2001 = vmatprep.subr.mxu0 0.0
    %2002 = vmatpush2.msra.mxu0 0.0
    %2003 = vmatprep.subr.mxu0 0.0
    %2004 = vmatpush2.msra.mxu0 0.0
    %2005 = vmatprep.subr.mxu0 0.0
    %2006 = vmatpush2.msra.mxu0 0.0
    %2007 = vmatprep.subr.mxu0 0.0
    %2008 = vmatpush2.msra.mxu0 0.0
    %2009 = vmatprep.subr.mxu0 0.0
    %2010 = vmatpush2.msra.mxu0 0.0
    %2011 = vmatprep.subr.mxu0 0.0
    %2012 = vmatpush2.msra.mxu0 0.0
    %2013 = vmatprep.subr.mxu0 0.0
    %2014 = vmatpush2.msra.mxu0 0.0
    %2015 = vmatprep.subr.mxu0 0.0
    %2016 = vmatpush2.msra.mxu0 0.0
    %2017 = vmatprep.subr.mxu0 0.0
    %2018 = vmatpush2.msra.mxu0 0.0
    %2019 = vmatprep.mubr.f32.mxu0 0.0
    %2020 = vmatmul.mubr.f32.gmra.mxu0 %v1883
    %v2021 = vpop.f32.mrf.mxu0
    %v2022 = vadd.f32 0.0, %v2021
    %v2023 = vpop.f32.mrf.mxu0
    %v2024 = vadd.f32 0.0, %v2023
    %2025 = vdwg.mxu0
    %2026 = vmatprep.subr.mxu0 0.0
    %2027 = vmatpush1.msra.mxu0 %v186
    %2028 = vmatprep.subr.mxu0 0.0
    %2029 = vmatpush1.msra.mxu0 %v181
    %2030 = vmatprep.subr.mxu0 0.0
    %2031 = vmatpush1.msra.mxu0 %v176
    %2032 = vmatprep.subr.mxu0 0.0
    %2033 = vmatpush1.msra.mxu0 %v171
    %2034 = vmatprep.subr.mxu0 0.0
    %2035 = vmatpush1.msra.mxu0 %v166
    %2036 = vmatprep.subr.mxu0 0.0
    %2037 = vmatpush1.msra.mxu0 %v161
    %2038 = vmatprep.subr.mxu0 0.0
    %2039 = vmatpush1.msra.mxu0 %v156
    %2040 = vmatprep.subr.mxu0 0.0
    %2041 = vmatpush1.msra.mxu0 %v151
    %2042 = vmatprep.subr.mxu0 0.0
    %2043 = vmatpush1.msra.mxu0 %v146
    %2044 = vmatprep.subr.mxu0 0.0
    %2045 = vmatpush1.msra.mxu0 %v141
    %2046 = vmatprep.subr.mxu0 0.0
    %2047 = vmatpush1.msra.mxu0 %v136
    %2048 = vmatprep.subr.mxu0 0.0
    %2049 = vmatpush1.msra.mxu0 %v131
    %2050 = vmatprep.subr.mxu0 0.0
    %2051 = vmatpush1.msra.mxu0 %v126
    %2052 = vmatprep.subr.mxu0 0.0
    %2053 = vmatpush1.msra.mxu0 %v121
    %2054 = vmatprep.subr.mxu0 0.0
    %2055 = vmatpush1.msra.mxu0 %v116
    %2056 = vmatprep.subr.mxu0 0.0
    %2057 = vmatpush1.msra.mxu0 %v111
    %2058 = vmatprep.subr.mxu0 0.0
    %2059 = vmatpush2.msra.mxu0 0.0
    %2060 = vmatprep.subr.mxu0 0.0
    %2061 = vmatpush2.msra.mxu0 0.0
    %2062 = vmatprep.subr.mxu0 0.0
    %2063 = vmatpush2.msra.mxu0 0.0
    %2064 = vmatprep.subr.mxu0 0.0
    %2065 = vmatpush2.msra.mxu0 0.0
    %2066 = vmatprep.subr.mxu0 0.0
    %2067 = vmatpush2.msra.mxu0 0.0
    %2068 = vmatprep.subr.mxu0 0.0
    %2069 = vmatpush2.msra.mxu0 0.0
    %2070 = vmatprep.subr.mxu0 0.0
    %2071 = vmatpush2.msra.mxu0 0.0
    %2072 = vmatprep.subr.mxu0 0.0
    %2073 = vmatpush2.msra.mxu0 0.0
    %2074 = vmatprep.subr.mxu0 0.0
    %2075 = vmatpush2.msra.mxu0 0.0
    %2076 = vmatprep.subr.mxu0 0.0
    %2077 = vmatpush2.msra.mxu0 0.0
    %2078 = vmatprep.subr.mxu0 0.0
    %2079 = vmatpush2.msra.mxu0 0.0
    %2080 = vmatprep.subr.mxu0 0.0
    %2081 = vmatpush2.msra.mxu0 0.0
    %2082 = vmatprep.subr.mxu0 0.0
    %2083 = vmatpush2.msra.mxu0 0.0
    %2084 = vmatprep.subr.mxu0 0.0
    %2085 = vmatpush2.msra.mxu0 0.0
    %2086 = vmatprep.subr.mxu0 0.0
    %2087 = vmatpush2.msra.mxu0 0.0
    %2088 = vmatprep.subr.mxu0 0.0
    %2089 = vmatpush2.msra.mxu0 0.0
    %2090 = vmatprep.mubr.f32.mxu0 0.0
    %2091 = vmatmul.mubr.f32.gmra.mxu0 %v1883
    %v2092 = vpop.f32.mrf.mxu0
    %v2093 = vadd.f32 0.0, %v2092
    %v2094 = vpop.f32.mrf.mxu0
    %2095 = vdwg.mxu0
    %v2096 = vadd.f32 %v1951, %v482
    %2097 = vmax.xlane.f32.xlu0 %v2096
    %v2098 = vpop.xlane.xlu0 %2097
    %v2099 = vsub.f32 %v2096, %v2098
    %v2100 = vmul.f32 %v2099, 1.442695
    %v2101 = vpow.pop %v2100
    %2102 = vadd.xlane.f32.xlu0 %v2101
    %v2103 = vpop.xlane.xlu0 %2102
    %v2104 = vrcp.pop %v2103
    %v2105 = vmul.f32 %v2101, %v2104
    %2106 = vmatprep.subr.mxu0 0.0
    %2107 = vmatpush1.msra.mxu0 %v106
    %2108 = vmatprep.subr.mxu0 0.0
    %2109 = vmatpush1.msra.mxu0 %v105
    %2110 = vmatprep.subr.mxu0 0.0
    %2111 = vmatpush1.msra.mxu0 %v104
    %2112 = vmatprep.subr.mxu0 0.0
    %2113 = vmatpush1.msra.mxu0 %v103
    %2114 = vmatprep.subr.mxu0 0.0
    %2115 = vmatpush1.msra.mxu0 %v102
    %2116 = vmatprep.subr.mxu0 0.0
    %2117 = vmatpush1.msra.mxu0 %v101
    %2118 = vmatprep.subr.mxu0 0.0
    %2119 = vmatpush1.msra.mxu0 %v100
    %2120 = vmatprep.subr.mxu0 0.0
    %2121 = vmatpush1.msra.mxu0 %v99
    %2122 = vmatprep.subr.mxu0 0.0
    %2123 = vmatpush1.msra.mxu0 %v98
    %2124 = vmatprep.subr.mxu0 0.0
    %2125 = vmatpush1.msra.mxu0 %v97
    %2126 = vmatprep.subr.mxu0 0.0
    %2127 = vmatpush1.msra.mxu0 %v96
    %2128 = vmatprep.subr.mxu0 0.0
    %2129 = vmatpush1.msra.mxu0 %v95
    %2130 = vmatprep.subr.mxu0 0.0
    %2131 = vmatpush1.msra.mxu0 %v94
    %2132 = vmatprep.subr.mxu0 0.0
    %2133 = vmatpush1.msra.mxu0 %v93
    %2134 = vmatprep.subr.mxu0 0.0
    %2135 = vmatpush1.msra.mxu0 %v92
    %2136 = vmatprep.subr.mxu0 0.0
    %2137 = vmatpush1.msra.mxu0 %v91
    %2138 = vmatprep.subr.mxu0 0.0
    %2139 = vmatpush2.msra.mxu0 0.0
    %2140 = vmatprep.subr.mxu0 0.0
    %2141 = vmatpush2.msra.mxu0 0.0
    %2142 = vmatprep.subr.mxu0 0.0
    %2143 = vmatpush2.msra.mxu0 0.0
    %2144 = vmatprep.subr.mxu0 0.0
    %2145 = vmatpush2.msra.mxu0 0.0
    %2146 = vmatprep.subr.mxu0 0.0
    %2147 = vmatpush2.msra.mxu0 0.0
    %2148 = vmatprep.subr.mxu0 0.0
    %2149 = vmatpush2.msra.mxu0 0.0
    %2150 = vmatprep.subr.mxu0 0.0
    %2151 = vmatpush2.msra.mxu0 0.0
    %2152 = vmatprep.subr.mxu0 0.0
    %2153 = vmatpush2.msra.mxu0 0.0
    %2154 = vmatprep.subr.mxu0 0.0
    %2155 = vmatpush2.msra.mxu0 0.0
    %2156 = vmatprep.subr.mxu0 0.0
    %2157 = vmatpush2.msra.mxu0 0.0
    %2158 = vmatprep.subr.mxu0 0.0
    %2159 = vmatpush2.msra.mxu0 0.0
    %2160 = vmatprep.subr.mxu0 0.0
    %2161 = vmatpush2.msra.mxu0 0.0
    %2162 = vmatprep.subr.mxu0 0.0
    %2163 = vmatpush2.msra.mxu0 0.0
    %2164 = vmatprep.subr.mxu0 0.0
    %2165 = vmatpush2.msra.mxu0 0.0
    %2166 = vmatprep.subr.mxu0 0.0
    %2167 = vmatpush2.msra.mxu0 0.0
    %2168 = vmatprep.subr.mxu0 0.0
    %2169 = vmatpush2.msra.mxu0 0.0
    %2170 = vmatprep.mubr.f32.mxu0 0.0
    %2171 = vmatmul.mubr.f32.gmra.mxu0 %v2105
    %v2172 = vpop.f32.mrf.mxu0
    %v2173 = vadd.f32 0.0, %v2172
    %v2174 = vpop.f32.mrf.mxu0
    %2175 = vdwg.mxu0
    %v2176 = vadd.f32 %v404, %v1953
    %v2177 = vadd.f32 %v406, %v2022
    %v2178 = vadd.f32 %v475, %v2024
    %v2179 = vadd.f32 %v477, %v2093
    %2180 = vmatprep.subr.mxu0 %v312
    %2181 = vmatpush1.msra.mxu0 %v311
    %2182 = vmatprep.subr.mxu0 %v308
    %2183 = vmatpush1.msra.mxu0 %v307
    %2184 = vmatprep.subr.mxu0 %v304
    %2185 = vmatpush1.msra.mxu0 %v303
    %2186 = vmatprep.subr.mxu0 %v300
    %2187 = vmatpush1.msra.mxu0 %v299
    %2188 = vmatprep.subr.mxu0 %v296
    %2189 = vmatpush1.msra.mxu0 %v295
    %2190 = vmatprep.subr.mxu0 %v292
    %2191 = vmatpush1.msra.mxu0 %v291
    %2192 = vmatprep.subr.mxu0 %v288
    %2193 = vmatpush1.msra.mxu0 %v287
    %2194 = vmatprep.subr.mxu0 %v284
    %2195 = vmatpush1.msra.mxu0 %v283
    %2196 = vmatprep.subr.mxu0 %v280
    %2197 = vmatpush1.msra.mxu0 %v279
    %2198 = vmatprep.subr.mxu0 %v276
    %2199 = vmatpush1.msra.mxu0 %v275
    %2200 = vmatprep.subr.mxu0 %v272
    %2201 = vmatpush1.msra.mxu0 %v271
    %2202 = vmatprep.subr.mxu0 %v268
    %2203 = vmatpush1.msra.mxu0 %v267
    %2204 = vmatprep.subr.mxu0 %v264
    %2205 = vmatpush1.msra.mxu0 %v263
    %2206 = vmatprep.subr.mxu0 %v260
    %2207 = vmatpush1.msra.mxu0 %v259
    %2208 = vmatprep.subr.mxu0 %v256
    %2209 = vmatpush1.msra.mxu0 %v255
    %2210 = vmatprep.subr.mxu0 %v252
    %2211 = vmatpush1.msra.mxu0 %v251
    %2212 = vmatprep.subr.mxu0 0.0
    %2213 = vmatpush2.msra.mxu0 0.0
    %2214 = vmatprep.subr.mxu0 0.0
    %2215 = vmatpush2.msra.mxu0 0.0
    %2216 = vmatprep.subr.mxu0 0.0
    %2217 = vmatpush2.msra.mxu0 0.0
    %2218 = vmatprep.subr.mxu0 0.0
    %2219 = vmatpush2.msra.mxu0 0.0
    %2220 = vmatprep.subr.mxu0 0.0
    %2221 = vmatpush2.msra.mxu0 0.0
    %2222 = vmatprep.subr.mxu0 0.0
    %2223 = vmatpush2.msra.mxu0 0.0
    %2224 = vmatprep.subr.mxu0 0.0
    %2225 = vmatpush2.msra.mxu0 0.0
    %2226 = vmatprep.subr.mxu0 0.0
    %2227 = vmatpush2.msra.mxu0 0.0
    %2228 = vmatprep.subr.mxu0 0.0
    %2229 = vmatpush2.msra.mxu0 0.0
    %2230 = vmatprep.subr.mxu0 0.0
    %2231 = vmatpush2.msra.mxu0 0.0
    %2232 = vmatprep.subr.mxu0 0.0
    %2233 = vmatpush2.msra.mxu0 0.0
    %2234 = vmatprep.subr.mxu0 0.0
    %2235 = vmatpush2.msra.mxu0 0.0
    %2236 = vmatprep.subr.mxu0 0.0
    %2237 = vmatpush2.msra.mxu0 0.0
    %2238 = vmatprep.subr.mxu0 0.0
    %2239 = vmatpush2.msra.mxu0 0.0
    %2240 = vmatprep.subr.mxu0 0.0
    %2241 = vmatpush2.msra.mxu0 0.0
    %2242 = vmatprep.subr.mxu0 0.0
    %2243 = vmatpush2.msra.mxu0 0.0
    %2244 = vmatprep.mubr.f32.mxu0 0.0
    %2245 = vmatmul.mubr.f32.gmra.mxu0 %v2173
    %v2246 = vpop.f32.mrf.mxu0
    %v2247 = vadd.f32 0.0, %v2246
    %v2248 = vpop.f32.mrf.mxu0
    %v2249 = vadd.f32 0.0, %v2248
    %2250 = vdwg.mxu0
    %2251 = vmatprep.subr.mxu0 %v314
    %2252 = vmatpush1.msra.mxu0 %v313
    %2253 = vmatprep.subr.mxu0 %v310
    %2254 = vmatpush1.msra.mxu0 %v309
    %2255 = vmatprep.subr.mxu0 %v306
    %2256 = vmatpush1.msra.mxu0 %v305
    %2257 = vmatprep.subr.mxu0 %v302
    %2258 = vmatpush1.msra.mxu0 %v301
    %2259 = vmatprep.subr.mxu0 %v298
    %2260 = vmatpush1.msra.mxu0 %v297
    %2261 = vmatprep.subr.mxu0 %v294
    %2262 = vmatpush1.msra.mxu0 %v293
    %2263 = vmatprep.subr.mxu0 %v290
    %2264 = vmatpush1.msra.mxu0 %v289
    %2265 = vmatprep.subr.mxu0 %v286
    %2266 = vmatpush1.msra.mxu0 %v285
    %2267 = vmatprep.subr.mxu0 %v282
    %2268 = vmatpush1.msra.mxu0 %v281
    %2269 = vmatprep.subr.mxu0 %v278
    %2270 = vmatpush1.msra.mxu0 %v277
    %2271 = vmatprep.subr.mxu0 %v274
    %2272 = vmatpush1.msra.mxu0 %v273
    %2273 = vmatprep.subr.mxu0 %v270
    %2274 = vmatpush1.msra.mxu0 %v269
    %2275 = vmatprep.subr.mxu0 %v266
    %2276 = vmatpush1.msra.mxu0 %v265
    %2277 = vmatprep.subr.mxu0 %v262
    %2278 = vmatpush1.msra.mxu0 %v261
    %2279 = vmatprep.subr.mxu0 %v258
    %2280 = vmatpush1.msra.mxu0 %v257
    %2281 = vmatprep.subr.mxu0 %v254
    %2282 = vmatpush1.msra.mxu0 %v253
    %2283 = vmatprep.subr.mxu0 0.0
    %2284 = vmatpush2.msra.mxu0 0.0
    %2285 = vmatprep.subr.mxu0 0.0
    %2286 = vmatpush2.msra.mxu0 0.0
    %2287 = vmatprep.subr.mxu0 0.0
    %2288 = vmatpush2.msra.mxu0 0.0
    %2289 = vmatprep.subr.mxu0 0.0
    %2290 = vmatpush2.msra.mxu0 0.0
    %2291 = vmatprep.subr.mxu0 0.0
    %2292 = vmatpush2.msra.mxu0 0.0
    %2293 = vmatprep.subr.mxu0 0.0
    %2294 = vmatpush2.msra.mxu0 0.0
    %2295 = vmatprep.subr.mxu0 0.0
    %2296 = vmatpush2.msra.mxu0 0.0
    %2297 = vmatprep.subr.mxu0 0.0
    %2298 = vmatpush2.msra.mxu0 0.0
    %2299 = vmatprep.subr.mxu0 0.0
    %2300 = vmatpush2.msra.mxu0 0.0
    %2301 = vmatprep.subr.mxu0 0.0
    %2302 = vmatpush2.msra.mxu0 0.0
    %2303 = vmatprep.subr.mxu0 0.0
    %2304 = vmatpush2.msra.mxu0 0.0
    %2305 = vmatprep.subr.mxu0 0.0
    %2306 = vmatpush2.msra.mxu0 0.0
    %2307 = vmatprep.subr.mxu0 0.0
    %2308 = vmatpush2.msra.mxu0 0.0
    %2309 = vmatprep.subr.mxu0 0.0
    %2310 = vmatpush2.msra.mxu0 0.0
    %2311 = vmatprep.subr.mxu0 0.0
    %2312 = vmatpush2.msra.mxu0 0.0
    %2313 = vmatprep.subr.mxu0 0.0
    %2314 = vmatpush2.msra.mxu0 0.0
    %2315 = vmatprep.mubr.f32.mxu0 0.0
    %2316 = vmatmul.mubr.f32.gmra.mxu0 %v2173
    %v2317 = vpop.f32.mrf.mxu0
    %v2318 = vadd.f32 0.0, %v2317
    %v2319 = vpop.f32.mrf.mxu0
    %v2320 = vadd.f32 0.0, %v2319
    %2321 = vdwg.mxu0
    %v2322 = vadd.f32 %v2176, %v2247
    %v2323 = vadd.f32 %v2177, %v2249
    %v2324 = vadd.f32 %v2178, %v2318
    %v2325 = vadd.f32 %v2179, %v2320
    %v2326 = vxor.u32 %v2322, 2147483648
    %v2327 = vmul.f32 %v2326, 1.442695
    %v2328 = vpow.pop %v2327
    %v2329 = vadd.f32 %v2328, 1.0
    %v2330 = vrcp.pop %v2329
    %v2331 = vmul.f32 1.0, %v2330
    %v2332 = vxor.u32 %v2323, 2147483648
    %v2333 = vmul.f32 %v2332, 1.442695
    %v2334 = vpow.pop %v2333
    %v2335 = vadd.f32 %v2334, 1.0
    %v2336 = vrcp.pop %v2335
    %v2337 = vmul.f32 1.0, %v2336
    %v2338 = vtanh.pop %v2324
    %v2339 = vxor.u32 %v2325, 2147483648
    %v2340 = vmul.f32 %v2339, 1.442695
    %v2341 = vpow.pop %v2340
    %v2342 = vadd.f32 %v2341, 1.0
    %v2343 = vrcp.pop %v2342
    %v2344 = vmul.f32 1.0, %v2343
    %v2345 = vmul.f32 %v2337, %v1880
    %v2346 = vmul.f32 %v2331, %v2338
    %v2347 = vadd.f32 %v2345, %v2346
    %v2348 = vtanh.pop %v2347
    %v2349 = vmul.f32 %v2344, %v2348
    %v2350 = vadd.f32 %v2349, %v90
    %2351 = vmatprep.subr.mxu0 %v183
    %2352 = vmatpush1.msra.mxu0 %v182
    %2353 = vmatprep.subr.mxu0 %v178
    %2354 = vmatpush1.msra.mxu0 %v177
    %2355 = vmatprep.subr.mxu0 %v173
    %2356 = vmatpush1.msra.mxu0 %v172
    %2357 = vmatprep.subr.mxu0 %v168
    %2358 = vmatpush1.msra.mxu0 %v167
    %2359 = vmatprep.subr.mxu0 %v163
    %2360 = vmatpush1.msra.mxu0 %v162
    %2361 = vmatprep.subr.mxu0 %v158
    %2362 = vmatpush1.msra.mxu0 %v157
    %2363 = vmatprep.subr.mxu0 %v153
    %2364 = vmatpush1.msra.mxu0 %v152
    %2365 = vmatprep.subr.mxu0 %v148
    %2366 = vmatpush1.msra.mxu0 %v147
    %2367 = vmatprep.subr.mxu0 %v143
    %2368 = vmatpush1.msra.mxu0 %v142
    %2369 = vmatprep.subr.mxu0 %v138
    %2370 = vmatpush1.msra.mxu0 %v137
    %2371 = vmatprep.subr.mxu0 %v133
    %2372 = vmatpush1.msra.mxu0 %v132
    %2373 = vmatprep.subr.mxu0 %v128
    %2374 = vmatpush1.msra.mxu0 %v127
    %2375 = vmatprep.subr.mxu0 %v123
    %2376 = vmatpush1.msra.mxu0 %v122
    %2377 = vmatprep.subr.mxu0 %v118
    %2378 = vmatpush1.msra.mxu0 %v117
    %2379 = vmatprep.subr.mxu0 %v113
    %2380 = vmatpush1.msra.mxu0 %v112
    %2381 = vmatprep.subr.mxu0 %v108
    %2382 = vmatpush1.msra.mxu0 %v107
    %2383 = vmatprep.subr.mxu0 0.0
    %2384 = vmatpush2.msra.mxu0 0.0
    %2385 = vmatprep.subr.mxu0 0.0
    %2386 = vmatpush2.msra.mxu0 0.0
    %2387 = vmatprep.subr.mxu0 0.0
    %2388 = vmatpush2.msra.mxu0 0.0
    %2389 = vmatprep.subr.mxu0 0.0
    %2390 = vmatpush2.msra.mxu0 0.0
    %2391 = vmatprep.subr.mxu0 0.0
    %2392 = vmatpush2.msra.mxu0 0.0
    %2393 = vmatprep.subr.mxu0 0.0
    %2394 = vmatpush2.msra.mxu0 0.0
    %2395 = vmatprep.subr.mxu0 0.0
    %2396 = vmatpush2.msra.mxu0 0.0
    %2397 = vmatprep.subr.mxu0 0.0
    %2398 = vmatpush2.msra.mxu0 0.0
    %2399 = vmatprep.subr.mxu0 0.0
    %2400 = vmatpush2.msra.mxu0 0.0
    %2401 = vmatprep.subr.mxu0 0.0
    %2402 = vmatpush2.msra.mxu0 0.0
    %2403 = vmatprep.subr.mxu0 0.0
    %2404 = vmatpush2.msra.mxu0 0.0
    %2405 = vmatprep.subr.mxu0 0.0
    %2406 = vmatpush2.msra.mxu0 0.0
    %2407 = vmatprep.subr.mxu0 0.0
    %2408 = vmatpush2.msra.mxu0 0.0
    %2409 = vmatprep.subr.mxu0 0.0
    %2410 = vmatpush2.msra.mxu0 0.0
    %2411 = vmatprep.subr.mxu0 0.0
    %2412 = vmatpush2.msra.mxu0 0.0
    %2413 = vmatprep.subr.mxu0 0.0
    %2414 = vmatpush2.msra.mxu0 0.0
    %2415 = vmatprep.mubr.f32.mxu0 0.0
    %2416 = vmatmul.mubr.f32.gmra.mxu0 %v2350
    %v2417 = vpop.f32.mrf.mxu0
    %v2418 = vadd.f32 0.0, %v2417
    %v2419 = vpop.f32.mrf.mxu0
    %v2420 = vadd.f32 0.0, %v2419
    %2421 = vdwg.mxu0
    %2422 = vmatprep.subr.mxu0 %v185
    %2423 = vmatpush1.msra.mxu0 %v184
    %2424 = vmatprep.subr.mxu0 %v180
    %2425 = vmatpush1.msra.mxu0 %v179
    %2426 = vmatprep.subr.mxu0 %v175
    %2427 = vmatpush1.msra.mxu0 %v174
    %2428 = vmatprep.subr.mxu0 %v170
    %2429 = vmatpush1.msra.mxu0 %v169
    %2430 = vmatprep.subr.mxu0 %v165
    %2431 = vmatpush1.msra.mxu0 %v164
    %2432 = vmatprep.subr.mxu0 %v160
    %2433 = vmatpush1.msra.mxu0 %v159
    %2434 = vmatprep.subr.mxu0 %v155
    %2435 = vmatpush1.msra.mxu0 %v154
    %2436 = vmatprep.subr.mxu0 %v150
    %2437 = vmatpush1.msra.mxu0 %v149
    %2438 = vmatprep.subr.mxu0 %v145
    %2439 = vmatpush1.msra.mxu0 %v144
    %2440 = vmatprep.subr.mxu0 %v140
    %2441 = vmatpush1.msra.mxu0 %v139
    %2442 = vmatprep.subr.mxu0 %v135
    %2443 = vmatpush1.msra.mxu0 %v134
    %2444 = vmatprep.subr.mxu0 %v130
    %2445 = vmatpush1.msra.mxu0 %v129
    %2446 = vmatprep.subr.mxu0 %v125
    %2447 = vmatpush1.msra.mxu0 %v124
    %2448 = vmatprep.subr.mxu0 %v120
    %2449 = vmatpush1.msra.mxu0 %v119
    %2450 = vmatprep.subr.mxu0 %v115
    %2451 = vmatpush1.msra.mxu0 %v114
    %2452 = vmatprep.subr.mxu0 %v110
    %2453 = vmatpush1.msra.mxu0 %v109
    %2454 = vmatprep.subr.mxu0 0.0
    %2455 = vmatpush2.msra.mxu0 0.0
    %2456 = vmatprep.subr.mxu0 0.0
    %2457 = vmatpush2.msra.mxu0 0.0
    %2458 = vmatprep.subr.mxu0 0.0
    %2459 = vmatpush2.msra.mxu0 0.0
    %2460 = vmatprep.subr.mxu0 0.0
    %2461 = vmatpush2.msra.mxu0 0.0
    %2462 = vmatprep.subr.mxu0 0.0
    %2463 = vmatpush2.msra.mxu0 0.0
    %2464 = vmatprep.subr.mxu0 0.0
    %2465 = vmatpush2.msra.mxu0 0.0
    %2466 = vmatprep.subr.mxu0 0.0
    %2467 = vmatpush2.msra.mxu0 0.0
    %2468 = vmatprep.subr.mxu0 0.0
    %2469 = vmatpush2.msra.mxu0 0.0
    %2470 = vmatprep.subr.mxu0 0.0
    %2471 = vmatpush2.msra.mxu0 0.0
    %2472 = vmatprep.subr.mxu0 0.0
    %2473 = vmatpush2.msra.mxu0 0.0
    %2474 = vmatprep.subr.mxu0 0.0
    %2475 = vmatpush2.msra.mxu0 0.0
    %2476 = vmatprep.subr.mxu0 0.0
    %2477 = vmatpush2.msra.mxu0 0.0
    %2478 = vmatprep.subr.mxu0 0.0
    %2479 = vmatpush2.msra.mxu0 0.0
    %2480 = vmatprep.subr.mxu0 0.0
    %2481 = vmatpush2.msra.mxu0 0.0
    %2482 = vmatprep.subr.mxu0 0.0
    %2483 = vmatpush2.msra.mxu0 0.0
    %2484 = vmatprep.subr.mxu0 0.0
    %2485 = vmatpush2.msra.mxu0 0.0
    %2486 = vmatprep.mubr.f32.mxu0 0.0
    %2487 = vmatmul.mubr.f32.gmra.mxu0 %v2350
    %v2488 = vpop.f32.mrf.mxu0
    %v2489 = vadd.f32 0.0, %v2488
    %v2490 = vpop.f32.mrf.mxu0
    %v2491 = vadd.f32 0.0, %v2490
    %2492 = vdwg.mxu0
    %2493 = vmatprep.subr.mxu0 0.0
    %2494 = vmatpush1.msra.mxu0 %v186
    %2495 = vmatprep.subr.mxu0 0.0
    %2496 = vmatpush1.msra.mxu0 %v181
    %2497 = vmatprep.subr.mxu0 0.0
    %2498 = vmatpush1.msra.mxu0 %v176
    %2499 = vmatprep.subr.mxu0 0.0
    %2500 = vmatpush1.msra.mxu0 %v171
    %2501 = vmatprep.subr.mxu0 0.0
    %2502 = vmatpush1.msra.mxu0 %v166
    %2503 = vmatprep.subr.mxu0 0.0
    %2504 = vmatpush1.msra.mxu0 %v161
    %2505 = vmatprep.subr.mxu0 0.0
    %2506 = vmatpush1.msra.mxu0 %v156
    %2507 = vmatprep.subr.mxu0 0.0
    %2508 = vmatpush1.msra.mxu0 %v151
    %2509 = vmatprep.subr.mxu0 0.0
    %2510 = vmatpush1.msra.mxu0 %v146
    %2511 = vmatprep.subr.mxu0 0.0
    %2512 = vmatpush1.msra.mxu0 %v141
    %2513 = vmatprep.subr.mxu0 0.0
    %2514 = vmatpush1.msra.mxu0 %v136
    %2515 = vmatprep.subr.mxu0 0.0
    %2516 = vmatpush1.msra.mxu0 %v131
    %2517 = vmatprep.subr.mxu0 0.0
    %2518 = vmatpush1.msra.mxu0 %v126
    %2519 = vmatprep.subr.mxu0 0.0
    %2520 = vmatpush1.msra.mxu0 %v121
    %2521 = vmatprep.subr.mxu0 0.0
    %2522 = vmatpush1.msra.mxu0 %v116
    %2523 = vmatprep.subr.mxu0 0.0
    %2524 = vmatpush1.msra.mxu0 %v111
    %2525 = vmatprep.subr.mxu0 0.0
    %2526 = vmatpush2.msra.mxu0 0.0
    %2527 = vmatprep.subr.mxu0 0.0
    %2528 = vmatpush2.msra.mxu0 0.0
    %2529 = vmatprep.subr.mxu0 0.0
    %2530 = vmatpush2.msra.mxu0 0.0
    %2531 = vmatprep.subr.mxu0 0.0
    %2532 = vmatpush2.msra.mxu0 0.0
    %2533 = vmatprep.subr.mxu0 0.0
    %2534 = vmatpush2.msra.mxu0 0.0
    %2535 = vmatprep.subr.mxu0 0.0
    %2536 = vmatpush2.msra.mxu0 0.0
    %2537 = vmatprep.subr.mxu0 0.0
    %2538 = vmatpush2.msra.mxu0 0.0
    %2539 = vmatprep.subr.mxu0 0.0
    %2540 = vmatpush2.msra.mxu0 0.0
    %2541 = vmatprep.subr.mxu0 0.0
    %2542 = vmatpush2.msra.mxu0 0.0
    %2543 = vmatprep.subr.mxu0 0.0
    %2544 = vmatpush2.msra.mxu0 0.0
    %2545 = vmatprep.subr.mxu0 0.0
    %2546 = vmatpush2.msra.mxu0 0.0
    %2547 = vmatprep.subr.mxu0 0.0
    %2548 = vmatpush2.msra.mxu0 0.0
    %2549 = vmatprep.subr.mxu0 0.0
    %2550 = vmatpush2.msra.mxu0 0.0
    %2551 = vmatprep.subr.mxu0 0.0
    %2552 = vmatpush2.msra.mxu0 0.0
    %2553 = vmatprep.subr.mxu0 0.0
    %2554 = vmatpush2.msra.mxu0 0.0
    %2555 = vmatprep.subr.mxu0 0.0
    %2556 = vmatpush2.msra.mxu0 0.0
    %2557 = vmatprep.mubr.f32.mxu0 0.0
    %2558 = vmatmul.mubr.f32.gmra.mxu0 %v2350
    %v2559 = vpop.f32.mrf.mxu0
    %v2560 = vadd.f32 0.0, %v2559
    %v2561 = vpop.f32.mrf.mxu0
    %2562 = vdwg.mxu0
    %v2563 = vadd.f32 %v2418, %v482
    %2564 = vmax.xlane.f32.xlu0 %v2563
    %v2565 = vpop.xlane.xlu0 %2564
    %v2566 = vsub.f32 %v2563, %v2565
    %v2567 = vmul.f32 %v2566, 1.442695
    %v2568 = vpow.pop %v2567
    %2569 = vadd.xlane.f32.xlu0 %v2568
    %v2570 = vpop.xlane.xlu0 %2569
    %v2571 = vrcp.pop %v2570
    %v2572 = vmul.f32 %v2568, %v2571
    %2573 = vmatprep.subr.mxu0 0.0
    %2574 = vmatpush1.msra.mxu0 %v106
    %2575 = vmatprep.subr.mxu0 0.0
    %2576 = vmatpush1.msra.mxu0 %v105
    %2577 = vmatprep.subr.mxu0 0.0
    %2578 = vmatpush1.msra.mxu0 %v104
    %2579 = vmatprep.subr.mxu0 0.0
    %2580 = vmatpush1.msra.mxu0 %v103
    %2581 = vmatprep.subr.mxu0 0.0
    %2582 = vmatpush1.msra.mxu0 %v102
    %2583 = vmatprep.subr.mxu0 0.0
    %2584 = vmatpush1.msra.mxu0 %v101
    %2585 = vmatprep.subr.mxu0 0.0
    %2586 = vmatpush1.msra.mxu0 %v100
    %2587 = vmatprep.subr.mxu0 0.0
    %2588 = vmatpush1.msra.mxu0 %v99
    %2589 = vmatprep.subr.mxu0 0.0
    %2590 = vmatpush1.msra.mxu0 %v98
    %2591 = vmatprep.subr.mxu0 0.0
    %2592 = vmatpush1.msra.mxu0 %v97
    %2593 = vmatprep.subr.mxu0 0.0
    %2594 = vmatpush1.msra.mxu0 %v96
    %2595 = vmatprep.subr.mxu0 0.0
    %2596 = vmatpush1.msra.mxu0 %v95
    %2597 = vmatprep.subr.mxu0 0.0
    %2598 = vmatpush1.msra.mxu0 %v94
    %2599 = vmatprep.subr.mxu0 0.0
    %2600 = vmatpush1.msra.mxu0 %v93
    %2601 = vmatprep.subr.mxu0 0.0
    %2602 = vmatpush1.msra.mxu0 %v92
    %2603 = vmatprep.subr.mxu0 0.0
    %2604 = vmatpush1.msra.mxu0 %v91
    %2605 = vmatprep.subr.mxu0 0.0
    %2606 = vmatpush2.msra.mxu0 0.0
    %2607 = vmatprep.subr.mxu0 0.0
    %2608 = vmatpush2.msra.mxu0 0.0
    %2609 = vmatprep.subr.mxu0 0.0
    %2610 = vmatpush2.msra.mxu0 0.0
    %2611 = vmatprep.subr.mxu0 0.0
    %2612 = vmatpush2.msra.mxu0 0.0
    %2613 = vmatprep.subr.mxu0 0.0
    %2614 = vmatpush2.msra.mxu0 0.0
    %2615 = vmatprep.subr.mxu0 0.0
    %2616 = vmatpush2.msra.mxu0 0.0
    %2617 = vmatprep.subr.mxu0 0.0
    %2618 = vmatpush2.msra.mxu0 0.0
    %2619 = vmatprep.subr.mxu0 0.0
    %2620 = vmatpush2.msra.mxu0 0.0
    %2621 = vmatprep.subr.mxu0 0.0
    %2622 = vmatpush2.msra.mxu0 0.0
    %2623 = vmatprep.subr.mxu0 0.0
    %2624 = vmatpush2.msra.mxu0 0.0
    %2625 = vmatprep.subr.mxu0 0.0
    %2626 = vmatpush2.msra.mxu0 0.0
    %2627 = vmatprep.subr.mxu0 0.0
    %2628 = vmatpush2.msra.mxu0 0.0
    %2629 = vmatprep.subr.mxu0 0.0
    %2630 = vmatpush2.msra.mxu0 0.0
    %2631 = vmatprep.subr.mxu0 0.0
    %2632 = vmatpush2.msra.mxu0 0.0
    %2633 = vmatprep.subr.mxu0 0.0
    %2634 = vmatpush2.msra.mxu0 0.0
    %2635 = vmatprep.subr.mxu0 0.0
    %2636 = vmatpush2.msra.mxu0 0.0
    %2637 = vmatprep.mubr.f32.mxu0 0.0
    %2638 = vmatmul.mubr.f32.gmra.mxu0 %v2572
    %v2639 = vpop.f32.mrf.mxu0
    %v2640 = vadd.f32 0.0, %v2639
    %v2641 = vpop.f32.mrf.mxu0
    %2642 = vdwg.mxu0
    %v2643 = vadd.f32 %v404, %v2420
    %v2644 = vadd.f32 %v406, %v2489
    %v2645 = vadd.f32 %v475, %v2491
    %v2646 = vadd.f32 %v477, %v2560
    %2647 = vmatprep.subr.mxu0 %v312
    %2648 = vmatpush1.msra.mxu0 %v311
    %2649 = vmatprep.subr.mxu0 %v308
    %2650 = vmatpush1.msra.mxu0 %v307
    %2651 = vmatprep.subr.mxu0 %v304
    %2652 = vmatpush1.msra.mxu0 %v303
    %2653 = vmatprep.subr.mxu0 %v300
    %2654 = vmatpush1.msra.mxu0 %v299
    %2655 = vmatprep.subr.mxu0 %v296
    %2656 = vmatpush1.msra.mxu0 %v295
    %2657 = vmatprep.subr.mxu0 %v292
    %2658 = vmatpush1.msra.mxu0 %v291
    %2659 = vmatprep.subr.mxu0 %v288
    %2660 = vmatpush1.msra.mxu0 %v287
    %2661 = vmatprep.subr.mxu0 %v284
    %2662 = vmatpush1.msra.mxu0 %v283
    %2663 = vmatprep.subr.mxu0 %v280
    %2664 = vmatpush1.msra.mxu0 %v279
    %2665 = vmatprep.subr.mxu0 %v276
    %2666 = vmatpush1.msra.mxu0 %v275
    %2667 = vmatprep.subr.mxu0 %v272
    %2668 = vmatpush1.msra.mxu0 %v271
    %2669 = vmatprep.subr.mxu0 %v268
    %2670 = vmatpush1.msra.mxu0 %v267
    %2671 = vmatprep.subr.mxu0 %v264
    %2672 = vmatpush1.msra.mxu0 %v263
    %2673 = vmatprep.subr.mxu0 %v260
    %2674 = vmatpush1.msra.mxu0 %v259
    %2675 = vmatprep.subr.mxu0 %v256
    %2676 = vmatpush1.msra.mxu0 %v255
    %2677 = vmatprep.subr.mxu0 %v252
    %2678 = vmatpush1.msra.mxu0 %v251
    %2679 = vmatprep.subr.mxu0 0.0
    %2680 = vmatpush2.msra.mxu0 0.0
    %2681 = vmatprep.subr.mxu0 0.0
    %2682 = vmatpush2.msra.mxu0 0.0
    %2683 = vmatprep.subr.mxu0 0.0
    %2684 = vmatpush2.msra.mxu0 0.0
    %2685 = vmatprep.subr.mxu0 0.0
    %2686 = vmatpush2.msra.mxu0 0.0
    %2687 = vmatprep.subr.mxu0 0.0
    %2688 = vmatpush2.msra.mxu0 0.0
    %2689 = vmatprep.subr.mxu0 0.0
    %2690 = vmatpush2.msra.mxu0 0.0
    %2691 = vmatprep.subr.mxu0 0.0
    %2692 = vmatpush2.msra.mxu0 0.0
    %2693 = vmatprep.subr.mxu0 0.0
    %2694 = vmatpush2.msra.mxu0 0.0
    %2695 = vmatprep.subr.mxu0 0.0
    %2696 = vmatpush2.msra.mxu0 0.0
    %2697 = vmatprep.subr.mxu0 0.0
    %2698 = vmatpush2.msra.mxu0 0.0
    %2699 = vmatprep.subr.mxu0 0.0
    %2700 = vmatpush2.msra.mxu0 0.0
    %2701 = vmatprep.subr.mxu0 0.0
    %2702 = vmatpush2.msra.mxu0 0.0
    %2703 = vmatprep.subr.mxu0 0.0
    %2704 = vmatpush2.msra.mxu0 0.0
    %2705 = vmatprep.subr.mxu0 0.0
    %2706 = vmatpush2.msra.mxu0 0.0
    %2707 = vmatprep.subr.mxu0 0.0
    %2708 = vmatpush2.msra.mxu0 0.0
    %2709 = vmatprep.subr.mxu0 0.0
    %2710 = vmatpush2.msra.mxu0 0.0
    %2711 = vmatprep.mubr.f32.mxu0 0.0
    %2712 = vmatmul.mubr.f32.gmra.mxu0 %v2640
    %v2713 = vpop.f32.mrf.mxu0
    %v2714 = vadd.f32 0.0, %v2713
    %v2715 = vpop.f32.mrf.mxu0
    %v2716 = vadd.f32 0.0, %v2715
    %2717 = vdwg.mxu0
    %2718 = vmatprep.subr.mxu0 %v314
    %2719 = vmatpush1.msra.mxu0 %v313
    %2720 = vmatprep.subr.mxu0 %v310
    %2721 = vmatpush1.msra.mxu0 %v309
    %2722 = vmatprep.subr.mxu0 %v306
    %2723 = vmatpush1.msra.mxu0 %v305
    %2724 = vmatprep.subr.mxu0 %v302
    %2725 = vmatpush1.msra.mxu0 %v301
    %2726 = vmatprep.subr.mxu0 %v298
    %2727 = vmatpush1.msra.mxu0 %v297
    %2728 = vmatprep.subr.mxu0 %v294
    %2729 = vmatpush1.msra.mxu0 %v293
    %2730 = vmatprep.subr.mxu0 %v290
    %2731 = vmatpush1.msra.mxu0 %v289
    %2732 = vmatprep.subr.mxu0 %v286
    %2733 = vmatpush1.msra.mxu0 %v285
    %2734 = vmatprep.subr.mxu0 %v282
    %2735 = vmatpush1.msra.mxu0 %v281
    %2736 = vmatprep.subr.mxu0 %v278
    %2737 = vmatpush1.msra.mxu0 %v277
    %2738 = vmatprep.subr.mxu0 %v274
    %2739 = vmatpush1.msra.mxu0 %v273
    %2740 = vmatprep.subr.mxu0 %v270
    %2741 = vmatpush1.msra.mxu0 %v269
    %2742 = vmatprep.subr.mxu0 %v266
    %2743 = vmatpush1.msra.mxu0 %v265
    %2744 = vmatprep.subr.mxu0 %v262
    %2745 = vmatpush1.msra.mxu0 %v261
    %2746 = vmatprep.subr.mxu0 %v258
    %2747 = vmatpush1.msra.mxu0 %v257
    %2748 = vmatprep.subr.mxu0 %v254
    %2749 = vmatpush1.msra.mxu0 %v253
    %2750 = vmatprep.subr.mxu0 0.0
    %2751 = vmatpush2.msra.mxu0 0.0
    %2752 = vmatprep.subr.mxu0 0.0
    %2753 = vmatpush2.msra.mxu0 0.0
    %2754 = vmatprep.subr.mxu0 0.0
    %2755 = vmatpush2.msra.mxu0 0.0
    %2756 = vmatprep.subr.mxu0 0.0
    %2757 = vmatpush2.msra.mxu0 0.0
    %2758 = vmatprep.subr.mxu0 0.0
    %2759 = vmatpush2.msra.mxu0 0.0
    %2760 = vmatprep.subr.mxu0 0.0
    %2761 = vmatpush2.msra.mxu0 0.0
    %2762 = vmatprep.subr.mxu0 0.0
    %2763 = vmatpush2.msra.mxu0 0.0
    %2764 = vmatprep.subr.mxu0 0.0
    %2765 = vmatpush2.msra.mxu0 0.0
    %2766 = vmatprep.subr.mxu0 0.0
    %2767 = vmatpush2.msra.mxu0 0.0
    %2768 = vmatprep.subr.mxu0 0.0
    %2769 = vmatpush2.msra.mxu0 0.0
    %2770 = vmatprep.subr.mxu0 0.0
    %2771 = vmatpush2.msra.mxu0 0.0
    %2772 = vmatprep.subr.mxu0 0.0
    %2773 = vmatpush2.msra.mxu0 0.0
    %2774 = vmatprep.subr.mxu0 0.0
    %2775 = vmatpush2.msra.mxu0 0.0
    %2776 = vmatprep.subr.mxu0 0.0
    %2777 = vmatpush2.msra.mxu0 0.0
    %2778 = vmatprep.subr.mxu0 0.0
    %2779 = vmatpush2.msra.mxu0 0.0
    %2780 = vmatprep.subr.mxu0 0.0
    %2781 = vmatpush2.msra.mxu0 0.0
    %2782 = vmatprep.mubr.f32.mxu0 0.0
    %2783 = vmatmul.mubr.f32.gmra.mxu0 %v2640
    %v2784 = vpop.f32.mrf.mxu0
    %v2785 = vadd.f32 0.0, %v2784
    %v2786 = vpop.f32.mrf.mxu0
    %v2787 = vadd.f32 0.0, %v2786
    %2788 = vdwg.mxu0
    %v2789 = vadd.f32 %v2643, %v2714
    %v2790 = vadd.f32 %v2644, %v2716
    %v2791 = vadd.f32 %v2645, %v2785
    %v2792 = vadd.f32 %v2646, %v2787
    %v2793 = vxor.u32 %v2789, 2147483648
    %v2794 = vmul.f32 %v2793, 1.442695
    %v2795 = vpow.pop %v2794
    %v2796 = vadd.f32 %v2795, 1.0
    %v2797 = vrcp.pop %v2796
    %v2798 = vmul.f32 1.0, %v2797
    %v2799 = vxor.u32 %v2790, 2147483648
    %v2800 = vmul.f32 %v2799, 1.442695
    %v2801 = vpow.pop %v2800
    %v2802 = vadd.f32 %v2801, 1.0
    %v2803 = vrcp.pop %v2802
    %v2804 = vmul.f32 1.0, %v2803
    %v2805 = vtanh.pop %v2791
    %v2806 = vxor.u32 %v2792, 2147483648
    %v2807 = vmul.f32 %v2806, 1.442695
    %v2808 = vpow.pop %v2807
    %v2809 = vadd.f32 %v2808, 1.0
    %v2810 = vrcp.pop %v2809
    %v2811 = vmul.f32 1.0, %v2810
    %v2812 = vmul.f32 %v2804, %v2347
    %v2813 = vmul.f32 %v2798, %v2805
    %v2814 = vadd.f32 %v2812, %v2813
    %v2815 = vtanh.pop %v2814
    %v2816 = vmul.f32 %v2811, %v2815
    %v2817 = vadd.f32 %v2816, %v90
    %2818 = vmatprep.subr.mxu0 %v183
    %2819 = vmatpush1.msra.mxu0 %v182
    %2820 = vmatprep.subr.mxu0 %v178
    %2821 = vmatpush1.msra.mxu0 %v177
    %2822 = vmatprep.subr.mxu0 %v173
    %2823 = vmatpush1.msra.mxu0 %v172
    %2824 = vmatprep.subr.mxu0 %v168
    %2825 = vmatpush1.msra.mxu0 %v167
    %2826 = vmatprep.subr.mxu0 %v163
    %2827 = vmatpush1.msra.mxu0 %v162
    %2828 = vmatprep.subr.mxu0 %v158
    %2829 = vmatpush1.msra.mxu0 %v157
    %2830 = vmatprep.subr.mxu0 %v153
    %2831 = vmatpush1.msra.mxu0 %v152
    %2832 = vmatprep.subr.mxu0 %v148
    %2833 = vmatpush1.msra.mxu0 %v147
    %2834 = vmatprep.subr.mxu0 %v143
    %2835 = vmatpush1.msra.mxu0 %v142
    %2836 = vmatprep.subr.mxu0 %v138
    %2837 = vmatpush1.msra.mxu0 %v137
    %2838 = vmatprep.subr.mxu0 %v133
    %2839 = vmatpush1.msra.mxu0 %v132
    %2840 = vmatprep.subr.mxu0 %v128
    %2841 = vmatpush1.msra.mxu0 %v127
    %2842 = vmatprep.subr.mxu0 %v123
    %2843 = vmatpush1.msra.mxu0 %v122
    %2844 = vmatprep.subr.mxu0 %v118
    %2845 = vmatpush1.msra.mxu0 %v117
    %2846 = vmatprep.subr.mxu0 %v113
    %2847 = vmatpush1.msra.mxu0 %v112
    %2848 = vmatprep.subr.mxu0 %v108
    %2849 = vmatpush1.msra.mxu0 %v107
    %2850 = vmatprep.subr.mxu0 0.0
    %2851 = vmatpush2.msra.mxu0 0.0
    %2852 = vmatprep.subr.mxu0 0.0
    %2853 = vmatpush2.msra.mxu0 0.0
    %2854 = vmatprep.subr.mxu0 0.0
    %2855 = vmatpush2.msra.mxu0 0.0
    %2856 = vmatprep.subr.mxu0 0.0
    %2857 = vmatpush2.msra.mxu0 0.0
    %2858 = vmatprep.subr.mxu0 0.0
    %2859 = vmatpush2.msra.mxu0 0.0
    %2860 = vmatprep.subr.mxu0 0.0
    %2861 = vmatpush2.msra.mxu0 0.0
    %2862 = vmatprep.subr.mxu0 0.0
    %2863 = vmatpush2.msra.mxu0 0.0
    %2864 = vmatprep.subr.mxu0 0.0
    %2865 = vmatpush2.msra.mxu0 0.0
    %2866 = vmatprep.subr.mxu0 0.0
    %2867 = vmatpush2.msra.mxu0 0.0
    %2868 = vmatprep.subr.mxu0 0.0
    %2869 = vmatpush2.msra.mxu0 0.0
    %2870 = vmatprep.subr.mxu0 0.0
    %2871 = vmatpush2.msra.mxu0 0.0
    %2872 = vmatprep.subr.mxu0 0.0
    %2873 = vmatpush2.msra.mxu0 0.0
    %2874 = vmatprep.subr.mxu0 0.0
    %2875 = vmatpush2.msra.mxu0 0.0
    %2876 = vmatprep.subr.mxu0 0.0
    %2877 = vmatpush2.msra.mxu0 0.0
    %2878 = vmatprep.subr.mxu0 0.0
    %2879 = vmatpush2.msra.mxu0 0.0
    %2880 = vmatprep.subr.mxu0 0.0
    %2881 = vmatpush2.msra.mxu0 0.0
    %2882 = vmatprep.mubr.f32.mxu0 0.0
    %2883 = vmatmul.mubr.f32.gmra.mxu0 %v2817
    %v2884 = vpop.f32.mrf.mxu0
    %v2885 = vadd.f32 0.0, %v2884
    %v2886 = vpop.f32.mrf.mxu0
    %v2887 = vadd.f32 0.0, %v2886
    %2888 = vdwg.mxu0
    %2889 = vmatprep.subr.mxu0 %v185
    %2890 = vmatpush1.msra.mxu0 %v184
    %2891 = vmatprep.subr.mxu0 %v180
    %2892 = vmatpush1.msra.mxu0 %v179
    %2893 = vmatprep.subr.mxu0 %v175
    %2894 = vmatpush1.msra.mxu0 %v174
    %2895 = vmatprep.subr.mxu0 %v170
    %2896 = vmatpush1.msra.mxu0 %v169
    %2897 = vmatprep.subr.mxu0 %v165
    %2898 = vmatpush1.msra.mxu0 %v164
    %2899 = vmatprep.subr.mxu0 %v160
    %2900 = vmatpush1.msra.mxu0 %v159
    %2901 = vmatprep.subr.mxu0 %v155
    %2902 = vmatpush1.msra.mxu0 %v154
    %2903 = vmatprep.subr.mxu0 %v150
    %2904 = vmatpush1.msra.mxu0 %v149
    %2905 = vmatprep.subr.mxu0 %v145
    %2906 = vmatpush1.msra.mxu0 %v144
    %2907 = vmatprep.subr.mxu0 %v140
    %2908 = vmatpush1.msra.mxu0 %v139
    %2909 = vmatprep.subr.mxu0 %v135
    %2910 = vmatpush1.msra.mxu0 %v134
    %2911 = vmatprep.subr.mxu0 %v130
    %2912 = vmatpush1.msra.mxu0 %v129
    %2913 = vmatprep.subr.mxu0 %v125
    %2914 = vmatpush1.msra.mxu0 %v124
    %2915 = vmatprep.subr.mxu0 %v120
    %2916 = vmatpush1.msra.mxu0 %v119
    %2917 = vmatprep.subr.mxu0 %v115
    %2918 = vmatpush1.msra.mxu0 %v114
    %2919 = vmatprep.subr.mxu0 %v110
    %2920 = vmatpush1.msra.mxu0 %v109
    %2921 = vmatprep.subr.mxu0 0.0
    %2922 = vmatpush2.msra.mxu0 0.0
    %2923 = vmatprep.subr.mxu0 0.0
    %2924 = vmatpush2.msra.mxu0 0.0
    %2925 = vmatprep.subr.mxu0 0.0
    %2926 = vmatpush2.msra.mxu0 0.0
    %2927 = vmatprep.subr.mxu0 0.0
    %2928 = vmatpush2.msra.mxu0 0.0
    %2929 = vmatprep.subr.mxu0 0.0
    %2930 = vmatpush2.msra.mxu0 0.0
    %2931 = vmatprep.subr.mxu0 0.0
    %2932 = vmatpush2.msra.mxu0 0.0
    %2933 = vmatprep.subr.mxu0 0.0
    %2934 = vmatpush2.msra.mxu0 0.0
    %2935 = vmatprep.subr.mxu0 0.0
    %2936 = vmatpush2.msra.mxu0 0.0
    %2937 = vmatprep.subr.mxu0 0.0
    %2938 = vmatpush2.msra.mxu0 0.0
    %2939 = vmatprep.subr.mxu0 0.0
    %2940 = vmatpush2.msra.mxu0 0.0
    %2941 = vmatprep.subr.mxu0 0.0
    %2942 = vmatpush2.msra.mxu0 0.0
    %2943 = vmatprep.subr.mxu0 0.0
    %2944 = vmatpush2.msra.mxu0 0.0
    %2945 = vmatprep.subr.mxu0 0.0
    %2946 = vmatpush2.msra.mxu0 0.0
    %2947 = vmatprep.subr.mxu0 0.0
    %2948 = vmatpush2.msra.mxu0 0.0
    %2949 = vmatprep.subr.mxu0 0.0
    %2950 = vmatpush2.msra.mxu0 0.0
    %2951 = vmatprep.subr.mxu0 0.0
    %2952 = vmatpush2.msra.mxu0 0.0
    %2953 = vmatprep.mubr.f32.mxu0 0.0
    %2954 = vmatmul.mubr.f32.gmra.mxu0 %v2817
    %v2955 = vpop.f32.mrf.mxu0
    %v2956 = vadd.f32 0.0, %v2955
    %v2957 = vpop.f32.mrf.mxu0
    %v2958 = vadd.f32 0.0, %v2957
    %2959 = vdwg.mxu0
    %2960 = vmatprep.subr.mxu0 0.0
    %2961 = vmatpush1.msra.mxu0 %v186
    %2962 = vmatprep.subr.mxu0 0.0
    %2963 = vmatpush1.msra.mxu0 %v181
    %2964 = vmatprep.subr.mxu0 0.0
    %2965 = vmatpush1.msra.mxu0 %v176
    %2966 = vmatprep.subr.mxu0 0.0
    %2967 = vmatpush1.msra.mxu0 %v171
    %2968 = vmatprep.subr.mxu0 0.0
    %2969 = vmatpush1.msra.mxu0 %v166
    %2970 = vmatprep.subr.mxu0 0.0
    %2971 = vmatpush1.msra.mxu0 %v161
    %2972 = vmatprep.subr.mxu0 0.0
    %2973 = vmatpush1.msra.mxu0 %v156
    %2974 = vmatprep.subr.mxu0 0.0
    %2975 = vmatpush1.msra.mxu0 %v151
    %2976 = vmatprep.subr.mxu0 0.0
    %2977 = vmatpush1.msra.mxu0 %v146
    %2978 = vmatprep.subr.mxu0 0.0
    %2979 = vmatpush1.msra.mxu0 %v141
    %2980 = vmatprep.subr.mxu0 0.0
    %2981 = vmatpush1.msra.mxu0 %v136
    %2982 = vmatprep.subr.mxu0 0.0
    %2983 = vmatpush1.msra.mxu0 %v131
    %2984 = vmatprep.subr.mxu0 0.0
    %2985 = vmatpush1.msra.mxu0 %v126
    %2986 = vmatprep.subr.mxu0 0.0
    %2987 = vmatpush1.msra.mxu0 %v121
    %2988 = vmatprep.subr.mxu0 0.0
    %2989 = vmatpush1.msra.mxu0 %v116
    %2990 = vmatprep.subr.mxu0 0.0
    %2991 = vmatpush1.msra.mxu0 %v111
    %2992 = vmatprep.subr.mxu0 0.0
    %2993 = vmatpush2.msra.mxu0 0.0
    %2994 = vmatprep.subr.mxu0 0.0
    %2995 = vmatpush2.msra.mxu0 0.0
    %2996 = vmatprep.subr.mxu0 0.0
    %2997 = vmatpush2.msra.mxu0 0.0
    %2998 = vmatprep.subr.mxu0 0.0
    %2999 = vmatpush2.msra.mxu0 0.0
    %3000 = vmatprep.subr.mxu0 0.0
    %3001 = vmatpush2.msra.mxu0 0.0
    %3002 = vmatprep.subr.mxu0 0.0
    %3003 = vmatpush2.msra.mxu0 0.0
    %3004 = vmatprep.subr.mxu0 0.0
    %3005 = vmatpush2.msra.mxu0 0.0
    %3006 = vmatprep.subr.mxu0 0.0
    %3007 = vmatpush2.msra.mxu0 0.0
    %3008 = vmatprep.subr.mxu0 0.0
    %3009 = vmatpush2.msra.mxu0 0.0
    %3010 = vmatprep.subr.mxu0 0.0
    %3011 = vmatpush2.msra.mxu0 0.0
    %3012 = vmatprep.subr.mxu0 0.0
    %3013 = vmatpush2.msra.mxu0 0.0
    %3014 = vmatprep.subr.mxu0 0.0
    %3015 = vmatpush2.msra.mxu0 0.0
    %3016 = vmatprep.subr.mxu0 0.0
    %3017 = vmatpush2.msra.mxu0 0.0
    %3018 = vmatprep.subr.mxu0 0.0
    %3019 = vmatpush2.msra.mxu0 0.0
    %3020 = vmatprep.subr.mxu0 0.0
    %3021 = vmatpush2.msra.mxu0 0.0
    %3022 = vmatprep.subr.mxu0 0.0
    %3023 = vmatpush2.msra.mxu0 0.0
    %3024 = vmatprep.mubr.f32.mxu0 0.0
    %3025 = vmatmul.mubr.f32.gmra.mxu0 %v2817
    %v3026 = vpop.f32.mrf.mxu0
    %v3027 = vadd.f32 0.0, %v3026
    %v3028 = vpop.f32.mrf.mxu0
    %3029 = vdwg.mxu0
    %v3030 = vadd.f32 %v2885, %v482
    %3031 = vmax.xlane.f32.xlu0 %v3030
    %v3032 = vpop.xlane.xlu0 %3031
    %v3033 = vsub.f32 %v3030, %v3032
    %v3034 = vmul.f32 %v3033, 1.442695
    %v3035 = vpow.pop %v3034
    %3036 = vadd.xlane.f32.xlu0 %v3035
    %v3037 = vpop.xlane.xlu0 %3036
    %v3038 = vrcp.pop %v3037
    %v3039 = vmul.f32 %v3035, %v3038
    %3040 = vmatprep.subr.mxu0 0.0
    %3041 = vmatpush1.msra.mxu0 %v106
    %3042 = vmatprep.subr.mxu0 0.0
    %3043 = vmatpush1.msra.mxu0 %v105
    %3044 = vmatprep.subr.mxu0 0.0
    %3045 = vmatpush1.msra.mxu0 %v104
    %3046 = vmatprep.subr.mxu0 0.0
    %3047 = vmatpush1.msra.mxu0 %v103
    %3048 = vmatprep.subr.mxu0 0.0
    %3049 = vmatpush1.msra.mxu0 %v102
    %3050 = vmatprep.subr.mxu0 0.0
    %3051 = vmatpush1.msra.mxu0 %v101
    %3052 = vmatprep.subr.mxu0 0.0
    %3053 = vmatpush1.msra.mxu0 %v100
    %3054 = vmatprep.subr.mxu0 0.0
    %3055 = vmatpush1.msra.mxu0 %v99
    %3056 = vmatprep.subr.mxu0 0.0
    %3057 = vmatpush1.msra.mxu0 %v98
    %3058 = vmatprep.subr.mxu0 0.0
    %3059 = vmatpush1.msra.mxu0 %v97
    %3060 = vmatprep.subr.mxu0 0.0
    %3061 = vmatpush1.msra.mxu0 %v96
    %3062 = vmatprep.subr.mxu0 0.0
    %3063 = vmatpush1.msra.mxu0 %v95
    %3064 = vmatprep.subr.mxu0 0.0
    %3065 = vmatpush1.msra.mxu0 %v94
    %3066 = vmatprep.subr.mxu0 0.0
    %3067 = vmatpush1.msra.mxu0 %v93
    %3068 = vmatprep.subr.mxu0 0.0
    %3069 = vmatpush1.msra.mxu0 %v92
    %3070 = vmatprep.subr.mxu0 0.0
    %3071 = vmatpush1.msra.mxu0 %v91
    %3072 = vmatprep.subr.mxu0 0.0
    %3073 = vmatpush2.msra.mxu0 0.0
    %3074 = vmatprep.subr.mxu0 0.0
    %3075 = vmatpush2.msra.mxu0 0.0
    %3076 = vmatprep.subr.mxu0 0.0
    %3077 = vmatpush2.msra.mxu0 0.0
    %3078 = vmatprep.subr.mxu0 0.0
    %3079 = vmatpush2.msra.mxu0 0.0
    %3080 = vmatprep.subr.mxu0 0.0
    %3081 = vmatpush2.msra.mxu0 0.0
    %3082 = vmatprep.subr.mxu0 0.0
    %3083 = vmatpush2.msra.mxu0 0.0
    %3084 = vmatprep.subr.mxu0 0.0
    %3085 = vmatpush2.msra.mxu0 0.0
    %3086 = vmatprep.subr.mxu0 0.0
    %3087 = vmatpush2.msra.mxu0 0.0
    %3088 = vmatprep.subr.mxu0 0.0
    %3089 = vmatpush2.msra.mxu0 0.0
    %3090 = vmatprep.subr.mxu0 0.0
    %3091 = vmatpush2.msra.mxu0 0.0
    %3092 = vmatprep.subr.mxu0 0.0
    %3093 = vmatpush2.msra.mxu0 0.0
    %3094 = vmatprep.subr.mxu0 0.0
    %3095 = vmatpush2.msra.mxu0 0.0
    %3096 = vmatprep.subr.mxu0 0.0
    %3097 = vmatpush2.msra.mxu0 0.0
    %3098 = vmatprep.subr.mxu0 0.0
    %3099 = vmatpush2.msra.mxu0 0.0
    %3100 = vmatprep.subr.mxu0 0.0
    %3101 = vmatpush2.msra.mxu0 0.0
    %3102 = vmatprep.subr.mxu0 0.0
    %3103 = vmatpush2.msra.mxu0 0.0
    %3104 = vmatprep.mubr.f32.mxu0 0.0
    %3105 = vmatmul.mubr.f32.gmra.mxu0 %v3039
    %v3106 = vpop.f32.mrf.mxu0
    %v3107 = vadd.f32 0.0, %v3106
    %v3108 = vpop.f32.mrf.mxu0
    %3109 = vdwg.mxu0
    %v3110 = vadd.f32 %v404, %v2887
    %v3111 = vadd.f32 %v406, %v2956
    %v3112 = vadd.f32 %v475, %v2958
    %v3113 = vadd.f32 %v477, %v3027
    %3114 = vmatprep.subr.mxu0 %v312
    %3115 = vmatpush1.msra.mxu0 %v311
    %3116 = vmatprep.subr.mxu0 %v308
    %3117 = vmatpush1.msra.mxu0 %v307
    %3118 = vmatprep.subr.mxu0 %v304
    %3119 = vmatpush1.msra.mxu0 %v303
    %3120 = vmatprep.subr.mxu0 %v300
    %3121 = vmatpush1.msra.mxu0 %v299
    %3122 = vmatprep.subr.mxu0 %v296
    %3123 = vmatpush1.msra.mxu0 %v295
    %3124 = vmatprep.subr.mxu0 %v292
    %3125 = vmatpush1.msra.mxu0 %v291
    %3126 = vmatprep.subr.mxu0 %v288
    %3127 = vmatpush1.msra.mxu0 %v287
    %3128 = vmatprep.subr.mxu0 %v284
    %3129 = vmatpush1.msra.mxu0 %v283
    %3130 = vmatprep.subr.mxu0 %v280
    %3131 = vmatpush1.msra.mxu0 %v279
    %3132 = vmatprep.subr.mxu0 %v276
    %3133 = vmatpush1.msra.mxu0 %v275
    %3134 = vmatprep.subr.mxu0 %v272
    %3135 = vmatpush1.msra.mxu0 %v271
    %3136 = vmatprep.subr.mxu0 %v268
    %3137 = vmatpush1.msra.mxu0 %v267
    %3138 = vmatprep.subr.mxu0 %v264
    %3139 = vmatpush1.msra.mxu0 %v263
    %3140 = vmatprep.subr.mxu0 %v260
    %3141 = vmatpush1.msra.mxu0 %v259
    %3142 = vmatprep.subr.mxu0 %v256
    %3143 = vmatpush1.msra.mxu0 %v255
    %3144 = vmatprep.subr.mxu0 %v252
    %3145 = vmatpush1.msra.mxu0 %v251
    %3146 = vmatprep.subr.mxu0 0.0
    %3147 = vmatpush2.msra.mxu0 0.0
    %3148 = vmatprep.subr.mxu0 0.0
    %3149 = vmatpush2.msra.mxu0 0.0
    %3150 = vmatprep.subr.mxu0 0.0
    %3151 = vmatpush2.msra.mxu0 0.0
    %3152 = vmatprep.subr.mxu0 0.0
    %3153 = vmatpush2.msra.mxu0 0.0
    %3154 = vmatprep.subr.mxu0 0.0
    %3155 = vmatpush2.msra.mxu0 0.0
    %3156 = vmatprep.subr.mxu0 0.0
    %3157 = vmatpush2.msra.mxu0 0.0
    %3158 = vmatprep.subr.mxu0 0.0
    %3159 = vmatpush2.msra.mxu0 0.0
    %3160 = vmatprep.subr.mxu0 0.0
    %3161 = vmatpush2.msra.mxu0 0.0
    %3162 = vmatprep.subr.mxu0 0.0
    %3163 = vmatpush2.msra.mxu0 0.0
    %3164 = vmatprep.subr.mxu0 0.0
    %3165 = vmatpush2.msra.mxu0 0.0
    %3166 = vmatprep.subr.mxu0 0.0
    %3167 = vmatpush2.msra.mxu0 0.0
    %3168 = vmatprep.subr.mxu0 0.0
    %3169 = vmatpush2.msra.mxu0 0.0
    %3170 = vmatprep.subr.mxu0 0.0
    %3171 = vmatpush2.msra.mxu0 0.0
    %3172 = vmatprep.subr.mxu0 0.0
    %3173 = vmatpush2.msra.mxu0 0.0
    %3174 = vmatprep.subr.mxu0 0.0
    %3175 = vmatpush2.msra.mxu0 0.0
    %3176 = vmatprep.subr.mxu0 0.0
    %3177 = vmatpush2.msra.mxu0 0.0
    %3178 = vmatprep.mubr.f32.mxu0 0.0
    %3179 = vmatmul.mubr.f32.gmra.mxu0 %v3107
    %v3180 = vpop.f32.mrf.mxu0
    %v3181 = vadd.f32 0.0, %v3180
    %v3182 = vpop.f32.mrf.mxu0
    %v3183 = vadd.f32 0.0, %v3182
    %3184 = vdwg.mxu0
    %3185 = vmatprep.subr.mxu0 %v314
    %3186 = vmatpush1.msra.mxu0 %v313
    %3187 = vmatprep.subr.mxu0 %v310
    %3188 = vmatpush1.msra.mxu0 %v309
    %3189 = vmatprep.subr.mxu0 %v306
    %3190 = vmatpush1.msra.mxu0 %v305
    %3191 = vmatprep.subr.mxu0 %v302
    %3192 = vmatpush1.msra.mxu0 %v301
    %3193 = vmatprep.subr.mxu0 %v298
    %3194 = vmatpush1.msra.mxu0 %v297
    %3195 = vmatprep.subr.mxu0 %v294
    %3196 = vmatpush1.msra.mxu0 %v293
    %3197 = vmatprep.subr.mxu0 %v290
    %3198 = vmatpush1.msra.mxu0 %v289
    %3199 = vmatprep.subr.mxu0 %v286
    %3200 = vmatpush1.msra.mxu0 %v285
    %3201 = vmatprep.subr.mxu0 %v282
    %3202 = vmatpush1.msra.mxu0 %v281
    %3203 = vmatprep.subr.mxu0 %v278
    %3204 = vmatpush1.msra.mxu0 %v277
    %3205 = vmatprep.subr.mxu0 %v274
    %3206 = vmatpush1.msra.mxu0 %v273
    %3207 = vmatprep.subr.mxu0 %v270
    %3208 = vmatpush1.msra.mxu0 %v269
    %3209 = vmatprep.subr.mxu0 %v266
    %3210 = vmatpush1.msra.mxu0 %v265
    %3211 = vmatprep.subr.mxu0 %v262
    %3212 = vmatpush1.msra.mxu0 %v261
    %3213 = vmatprep.subr.mxu0 %v258
    %3214 = vmatpush1.msra.mxu0 %v257
    %3215 = vmatprep.subr.mxu0 %v254
    %3216 = vmatpush1.msra.mxu0 %v253
    %3217 = vmatprep.subr.mxu0 0.0
    %3218 = vmatpush2.msra.mxu0 0.0
    %3219 = vmatprep.subr.mxu0 0.0
    %3220 = vmatpush2.msra.mxu0 0.0
    %3221 = vmatprep.subr.mxu0 0.0
    %3222 = vmatpush2.msra.mxu0 0.0
    %3223 = vmatprep.subr.mxu0 0.0
    %3224 = vmatpush2.msra.mxu0 0.0
    %3225 = vmatprep.subr.mxu0 0.0
    %3226 = vmatpush2.msra.mxu0 0.0
    %3227 = vmatprep.subr.mxu0 0.0
    %3228 = vmatpush2.msra.mxu0 0.0
    %3229 = vmatprep.subr.mxu0 0.0
    %3230 = vmatpush2.msra.mxu0 0.0
    %3231 = vmatprep.subr.mxu0 0.0
    %3232 = vmatpush2.msra.mxu0 0.0
    %3233 = vmatprep.subr.mxu0 0.0
    %3234 = vmatpush2.msra.mxu0 0.0
    %3235 = vmatprep.subr.mxu0 0.0
    %3236 = vmatpush2.msra.mxu0 0.0
    %3237 = vmatprep.subr.mxu0 0.0
    %3238 = vmatpush2.msra.mxu0 0.0
    %3239 = vmatprep.subr.mxu0 0.0
    %3240 = vmatpush2.msra.mxu0 0.0
    %3241 = vmatprep.subr.mxu0 0.0
    %3242 = vmatpush2.msra.mxu0 0.0
    %3243 = vmatprep.subr.mxu0 0.0
    %3244 = vmatpush2.msra.mxu0 0.0
    %3245 = vmatprep.subr.mxu0 0.0
    %3246 = vmatpush2.msra.mxu0 0.0
    %3247 = vmatprep.subr.mxu0 0.0
    %3248 = vmatpush2.msra.mxu0 0.0
    %3249 = vmatprep.mubr.f32.mxu0 0.0
    %3250 = vmatmul.mubr.f32.gmra.mxu0 %v3107
    %v3251 = vpop.f32.mrf.mxu0
    %v3252 = vadd.f32 0.0, %v3251
    %v3253 = vpop.f32.mrf.mxu0
    %v3254 = vadd.f32 0.0, %v3253
    %3255 = vdwg.mxu0
    %v3256 = vadd.f32 %v3110, %v3181
    %v3257 = vadd.f32 %v3111, %v3183
    %v3258 = vadd.f32 %v3112, %v3252
    %v3259 = vadd.f32 %v3113, %v3254
    %v3260 = vxor.u32 %v3256, 2147483648
    %v3261 = vmul.f32 %v3260, 1.442695
    %v3262 = vpow.pop %v3261
    %v3263 = vadd.f32 %v3262, 1.0
    %v3264 = vrcp.pop %v3263
    %v3265 = vmul.f32 1.0, %v3264
    %v3266 = vxor.u32 %v3257, 2147483648
    %v3267 = vmul.f32 %v3266, 1.442695
    %v3268 = vpow.pop %v3267
    %v3269 = vadd.f32 %v3268, 1.0
    %v3270 = vrcp.pop %v3269
    %v3271 = vmul.f32 1.0, %v3270
    %v3272 = vtanh.pop %v3258
    %v3273 = vxor.u32 %v3259, 2147483648
    %v3274 = vmul.f32 %v3273, 1.442695
    %v3275 = vpow.pop %v3274
    %v3276 = vadd.f32 %v3275, 1.0
    %v3277 = vrcp.pop %v3276
    %v3278 = vmul.f32 1.0, %v3277
    %v3279 = vmul.f32 %v3271, %v2814
    %v3280 = vmul.f32 %v3265, %v3272
    %v3281 = vadd.f32 %v3279, %v3280
    %v3282 = vtanh.pop %v3281
    %v3283 = vmul.f32 %v3278, %v3282
    %v3284 = vadd.f32 %v3283, %v90
    %3285 = vmatprep.subr.mxu0 %v183
    %3286 = vmatpush1.msra.mxu0 %v182
    %3287 = vmatprep.subr.mxu0 %v178
    %3288 = vmatpush1.msra.mxu0 %v177
    %3289 = vmatprep.subr.mxu0 %v173
    %3290 = vmatpush1.msra.mxu0 %v172
    %3291 = vmatprep.subr.mxu0 %v168
    %3292 = vmatpush1.msra.mxu0 %v167
    %3293 = vmatprep.subr.mxu0 %v163
    %3294 = vmatpush1.msra.mxu0 %v162
    %3295 = vmatprep.subr.mxu0 %v158
    %3296 = vmatpush1.msra.mxu0 %v157
    %3297 = vmatprep.subr.mxu0 %v153
    %3298 = vmatpush1.msra.mxu0 %v152
    %3299 = vmatprep.subr.mxu0 %v148
    %3300 = vmatpush1.msra.mxu0 %v147
    %3301 = vmatprep.subr.mxu0 %v143
    %3302 = vmatpush1.msra.mxu0 %v142
    %3303 = vmatprep.subr.mxu0 %v138
    %3304 = vmatpush1.msra.mxu0 %v137
    %3305 = vmatprep.subr.mxu0 %v133
    %3306 = vmatpush1.msra.mxu0 %v132
    %3307 = vmatprep.subr.mxu0 %v128
    %3308 = vmatpush1.msra.mxu0 %v127
    %3309 = vmatprep.subr.mxu0 %v123
    %3310 = vmatpush1.msra.mxu0 %v122
    %3311 = vmatprep.subr.mxu0 %v118
    %3312 = vmatpush1.msra.mxu0 %v117
    %3313 = vmatprep.subr.mxu0 %v113
    %3314 = vmatpush1.msra.mxu0 %v112
    %3315 = vmatprep.subr.mxu0 %v108
    %3316 = vmatpush1.msra.mxu0 %v107
    %3317 = vmatprep.subr.mxu0 0.0
    %3318 = vmatpush2.msra.mxu0 0.0
    %3319 = vmatprep.subr.mxu0 0.0
    %3320 = vmatpush2.msra.mxu0 0.0
    %3321 = vmatprep.subr.mxu0 0.0
    %3322 = vmatpush2.msra.mxu0 0.0
    %3323 = vmatprep.subr.mxu0 0.0
    %3324 = vmatpush2.msra.mxu0 0.0
    %3325 = vmatprep.subr.mxu0 0.0
    %3326 = vmatpush2.msra.mxu0 0.0
    %3327 = vmatprep.subr.mxu0 0.0
    %3328 = vmatpush2.msra.mxu0 0.0
    %3329 = vmatprep.subr.mxu0 0.0
    %3330 = vmatpush2.msra.mxu0 0.0
    %3331 = vmatprep.subr.mxu0 0.0
    %3332 = vmatpush2.msra.mxu0 0.0
    %3333 = vmatprep.subr.mxu0 0.0
    %3334 = vmatpush2.msra.mxu0 0.0
    %3335 = vmatprep.subr.mxu0 0.0
    %3336 = vmatpush2.msra.mxu0 0.0
    %3337 = vmatprep.subr.mxu0 0.0
    %3338 = vmatpush2.msra.mxu0 0.0
    %3339 = vmatprep.subr.mxu0 0.0
    %3340 = vmatpush2.msra.mxu0 0.0
    %3341 = vmatprep.subr.mxu0 0.0
    %3342 = vmatpush2.msra.mxu0 0.0
    %3343 = vmatprep.subr.mxu0 0.0
    %3344 = vmatpush2.msra.mxu0 0.0
    %3345 = vmatprep.subr.mxu0 0.0
    %3346 = vmatpush2.msra.mxu0 0.0
    %3347 = vmatprep.subr.mxu0 0.0
    %3348 = vmatpush2.msra.mxu0 0.0
    %3349 = vmatprep.mubr.f32.mxu0 0.0
    %3350 = vmatmul.mubr.f32.gmra.mxu0 %v3284
    %v3351 = vpop.f32.mrf.mxu0
    %v3352 = vadd.f32 0.0, %v3351
    %v3353 = vpop.f32.mrf.mxu0
    %v3354 = vadd.f32 0.0, %v3353
    %3355 = vdwg.mxu0
    %3356 = vmatprep.subr.mxu0 %v185
    %3357 = vmatpush1.msra.mxu0 %v184
    %3358 = vmatprep.subr.mxu0 %v180
    %3359 = vmatpush1.msra.mxu0 %v179
    %3360 = vmatprep.subr.mxu0 %v175
    %3361 = vmatpush1.msra.mxu0 %v174
    %3362 = vmatprep.subr.mxu0 %v170
    %3363 = vmatpush1.msra.mxu0 %v169
    %3364 = vmatprep.subr.mxu0 %v165
    %3365 = vmatpush1.msra.mxu0 %v164
    %3366 = vmatprep.subr.mxu0 %v160
    %3367 = vmatpush1.msra.mxu0 %v159
    %3368 = vmatprep.subr.mxu0 %v155
    %3369 = vmatpush1.msra.mxu0 %v154
    %3370 = vmatprep.subr.mxu0 %v150
    %3371 = vmatpush1.msra.mxu0 %v149
    %3372 = vmatprep.subr.mxu0 %v145
    %3373 = vmatpush1.msra.mxu0 %v144
    %3374 = vmatprep.subr.mxu0 %v140
    %3375 = vmatpush1.msra.mxu0 %v139
    %3376 = vmatprep.subr.mxu0 %v135
    %3377 = vmatpush1.msra.mxu0 %v134
    %3378 = vmatprep.subr.mxu0 %v130
    %3379 = vmatpush1.msra.mxu0 %v129
    %3380 = vmatprep.subr.mxu0 %v125
    %3381 = vmatpush1.msra.mxu0 %v124
    %3382 = vmatprep.subr.mxu0 %v120
    %3383 = vmatpush1.msra.mxu0 %v119
    %3384 = vmatprep.subr.mxu0 %v115
    %3385 = vmatpush1.msra.mxu0 %v114
    %3386 = vmatprep.subr.mxu0 %v110
    %3387 = vmatpush1.msra.mxu0 %v109
    %3388 = vmatprep.subr.mxu0 0.0
    %3389 = vmatpush2.msra.mxu0 0.0
    %3390 = vmatprep.subr.mxu0 0.0
    %3391 = vmatpush2.msra.mxu0 0.0
    %3392 = vmatprep.subr.mxu0 0.0
    %3393 = vmatpush2.msra.mxu0 0.0
    %3394 = vmatprep.subr.mxu0 0.0
    %3395 = vmatpush2.msra.mxu0 0.0
    %3396 = vmatprep.subr.mxu0 0.0
    %3397 = vmatpush2.msra.mxu0 0.0
    %3398 = vmatprep.subr.mxu0 0.0
    %3399 = vmatpush2.msra.mxu0 0.0
    %3400 = vmatprep.subr.mxu0 0.0
    %3401 = vmatpush2.msra.mxu0 0.0
    %3402 = vmatprep.subr.mxu0 0.0
    %3403 = vmatpush2.msra.mxu0 0.0
    %3404 = vmatprep.subr.mxu0 0.0
    %3405 = vmatpush2.msra.mxu0 0.0
    %3406 = vmatprep.subr.mxu0 0.0
    %3407 = vmatpush2.msra.mxu0 0.0
    %3408 = vmatprep.subr.mxu0 0.0
    %3409 = vmatpush2.msra.mxu0 0.0
    %3410 = vmatprep.subr.mxu0 0.0
    %3411 = vmatpush2.msra.mxu0 0.0
    %3412 = vmatprep.subr.mxu0 0.0
    %3413 = vmatpush2.msra.mxu0 0.0
    %3414 = vmatprep.subr.mxu0 0.0
    %3415 = vmatpush2.msra.mxu0 0.0
    %3416 = vmatprep.subr.mxu0 0.0
    %3417 = vmatpush2.msra.mxu0 0.0
    %3418 = vmatprep.subr.mxu0 0.0
    %3419 = vmatpush2.msra.mxu0 0.0
    %3420 = vmatprep.mubr.f32.mxu0 0.0
    %3421 = vmatmul.mubr.f32.gmra.mxu0 %v3284
    %v3422 = vpop.f32.mrf.mxu0
    %v3423 = vadd.f32 0.0, %v3422
    %v3424 = vpop.f32.mrf.mxu0
    %v3425 = vadd.f32 0.0, %v3424
    %3426 = vdwg.mxu0
    %3427 = vmatprep.subr.mxu0 0.0
    %3428 = vmatpush1.msra.mxu0 %v186
    %3429 = vmatprep.subr.mxu0 0.0
    %3430 = vmatpush1.msra.mxu0 %v181
    %3431 = vmatprep.subr.mxu0 0.0
    %3432 = vmatpush1.msra.mxu0 %v176
    %3433 = vmatprep.subr.mxu0 0.0
    %3434 = vmatpush1.msra.mxu0 %v171
    %3435 = vmatprep.subr.mxu0 0.0
    %3436 = vmatpush1.msra.mxu0 %v166
    %3437 = vmatprep.subr.mxu0 0.0
    %3438 = vmatpush1.msra.mxu0 %v161
    %3439 = vmatprep.subr.mxu0 0.0
    %3440 = vmatpush1.msra.mxu0 %v156
    %3441 = vmatprep.subr.mxu0 0.0
    %3442 = vmatpush1.msra.mxu0 %v151
    %3443 = vmatprep.subr.mxu0 0.0
    %3444 = vmatpush1.msra.mxu0 %v146
    %3445 = vmatprep.subr.mxu0 0.0
    %3446 = vmatpush1.msra.mxu0 %v141
    %3447 = vmatprep.subr.mxu0 0.0
    %3448 = vmatpush1.msra.mxu0 %v136
    %3449 = vmatprep.subr.mxu0 0.0
    %3450 = vmatpush1.msra.mxu0 %v131
    %3451 = vmatprep.subr.mxu0 0.0
    %3452 = vmatpush1.msra.mxu0 %v126
    %3453 = vmatprep.subr.mxu0 0.0
    %3454 = vmatpush1.msra.mxu0 %v121
    %3455 = vmatprep.subr.mxu0 0.0
    %3456 = vmatpush1.msra.mxu0 %v116
    %3457 = vmatprep.subr.mxu0 0.0
    %3458 = vmatpush1.msra.mxu0 %v111
    %3459 = vmatprep.subr.mxu0 0.0
    %3460 = vmatpush2.msra.mxu0 0.0
    %3461 = vmatprep.subr.mxu0 0.0
    %3462 = vmatpush2.msra.mxu0 0.0
    %3463 = vmatprep.subr.mxu0 0.0
    %3464 = vmatpush2.msra.mxu0 0.0
    %3465 = vmatprep.subr.mxu0 0.0
    %3466 = vmatpush2.msra.mxu0 0.0
    %3467 = vmatprep.subr.mxu0 0.0
    %3468 = vmatpush2.msra.mxu0 0.0
    %3469 = vmatprep.subr.mxu0 0.0
    %3470 = vmatpush2.msra.mxu0 0.0
    %3471 = vmatprep.subr.mxu0 0.0
    %3472 = vmatpush2.msra.mxu0 0.0
    %3473 = vmatprep.subr.mxu0 0.0
    %3474 = vmatpush2.msra.mxu0 0.0
    %3475 = vmatprep.subr.mxu0 0.0
    %3476 = vmatpush2.msra.mxu0 0.0
    %3477 = vmatprep.subr.mxu0 0.0
    %3478 = vmatpush2.msra.mxu0 0.0
    %3479 = vmatprep.subr.mxu0 0.0
    %3480 = vmatpush2.msra.mxu0 0.0
    %3481 = vmatprep.subr.mxu0 0.0
    %3482 = vmatpush2.msra.mxu0 0.0
    %3483 = vmatprep.subr.mxu0 0.0
    %3484 = vmatpush2.msra.mxu0 0.0
    %3485 = vmatprep.subr.mxu0 0.0
    %3486 = vmatpush2.msra.mxu0 0.0
    %3487 = vmatprep.subr.mxu0 0.0
    %3488 = vmatpush2.msra.mxu0 0.0
    %3489 = vmatprep.subr.mxu0 0.0
    %3490 = vmatpush2.msra.mxu0 0.0
    %3491 = vmatprep.mubr.f32.mxu0 0.0
    %3492 = vmatmul.mubr.f32.gmra.mxu0 %v3284
    %v3493 = vpop.f32.mrf.mxu0
    %v3494 = vadd.f32 0.0, %v3493
    %v3495 = vpop.f32.mrf.mxu0
    %3496 = vdwg.mxu0
    %v3497 = vadd.f32 %v3352, %v482
    %3498 = vmax.xlane.f32.xlu0 %v3497
    %v3499 = vpop.xlane.xlu0 %3498
    %v3500 = vsub.f32 %v3497, %v3499
    %v3501 = vmul.f32 %v3500, 1.442695
    %v3502 = vpow.pop %v3501
    %3503 = vadd.xlane.f32.xlu0 %v3502
    %v3504 = vpop.xlane.xlu0 %3503
    %v3505 = vrcp.pop %v3504
    %v3506 = vmul.f32 %v3502, %v3505
    %3507 = vmatprep.subr.mxu0 0.0
    %3508 = vmatpush1.msra.mxu0 %v106
    %3509 = vmatprep.subr.mxu0 0.0
    %3510 = vmatpush1.msra.mxu0 %v105
    %3511 = vmatprep.subr.mxu0 0.0
    %3512 = vmatpush1.msra.mxu0 %v104
    %3513 = vmatprep.subr.mxu0 0.0
    %3514 = vmatpush1.msra.mxu0 %v103
    %3515 = vmatprep.subr.mxu0 0.0
    %3516 = vmatpush1.msra.mxu0 %v102
    %3517 = vmatprep.subr.mxu0 0.0
    %3518 = vmatpush1.msra.mxu0 %v101
    %3519 = vmatprep.subr.mxu0 0.0
    %3520 = vmatpush1.msra.mxu0 %v100
    %3521 = vmatprep.subr.mxu0 0.0
    %3522 = vmatpush1.msra.mxu0 %v99
    %3523 = vmatprep.subr.mxu0 0.0
    %3524 = vmatpush1.msra.mxu0 %v98
    %3525 = vmatprep.subr.mxu0 0.0
    %3526 = vmatpush1.msra.mxu0 %v97
    %3527 = vmatprep.subr.mxu0 0.0
    %3528 = vmatpush1.msra.mxu0 %v96
    %3529 = vmatprep.subr.mxu0 0.0
    %3530 = vmatpush1.msra.mxu0 %v95
    %3531 = vmatprep.subr.mxu0 0.0
    %3532 = vmatpush1.msra.mxu0 %v94
    %3533 = vmatprep.subr.mxu0 0.0
    %3534 = vmatpush1.msra.mxu0 %v93
    %3535 = vmatprep.subr.mxu0 0.0
    %3536 = vmatpush1.msra.mxu0 %v92
    %3537 = vmatprep.subr.mxu0 0.0
    %3538 = vmatpush1.msra.mxu0 %v91
    %3539 = vmatprep.subr.mxu0 0.0
    %3540 = vmatpush2.msra.mxu0 0.0
    %3541 = vmatprep.subr.mxu0 0.0
    %3542 = vmatpush2.msra.mxu0 0.0
    %3543 = vmatprep.subr.mxu0 0.0
    %3544 = vmatpush2.msra.mxu0 0.0
    %3545 = vmatprep.subr.mxu0 0.0
    %3546 = vmatpush2.msra.mxu0 0.0
    %3547 = vmatprep.subr.mxu0 0.0
    %3548 = vmatpush2.msra.mxu0 0.0
    %3549 = vmatprep.subr.mxu0 0.0
    %3550 = vmatpush2.msra.mxu0 0.0
    %3551 = vmatprep.subr.mxu0 0.0
    %3552 = vmatpush2.msra.mxu0 0.0
    %3553 = vmatprep.subr.mxu0 0.0
    %3554 = vmatpush2.msra.mxu0 0.0
    %3555 = vmatprep.subr.mxu0 0.0
    %3556 = vmatpush2.msra.mxu0 0.0
    %3557 = vmatprep.subr.mxu0 0.0
    %3558 = vmatpush2.msra.mxu0 0.0
    %3559 = vmatprep.subr.mxu0 0.0
    %3560 = vmatpush2.msra.mxu0 0.0
    %3561 = vmatprep.subr.mxu0 0.0
    %3562 = vmatpush2.msra.mxu0 0.0
    %3563 = vmatprep.subr.mxu0 0.0
    %3564 = vmatpush2.msra.mxu0 0.0
    %3565 = vmatprep.subr.mxu0 0.0
    %3566 = vmatpush2.msra.mxu0 0.0
    %3567 = vmatprep.subr.mxu0 0.0
    %3568 = vmatpush2.msra.mxu0 0.0
    %3569 = vmatprep.subr.mxu0 0.0
    %3570 = vmatpush2.msra.mxu0 0.0
    %3571 = vmatprep.mubr.f32.mxu0 0.0
    %3572 = vmatmul.mubr.f32.gmra.mxu0 %v3506
    %v3573 = vpop.f32.mrf.mxu0
    %v3574 = vadd.f32 0.0, %v3573
    %v3575 = vpop.f32.mrf.mxu0
    %3576 = vdwg.mxu0
    %v3577 = vadd.f32 %v404, %v3354
    %v3578 = vadd.f32 %v406, %v3423
    %v3579 = vadd.f32 %v475, %v3425
    %v3580 = vadd.f32 %v477, %v3494
    %3581 = vmatprep.subr.mxu0 %v312
    %3582 = vmatpush1.msra.mxu0 %v311
    %3583 = vmatprep.subr.mxu0 %v308
    %3584 = vmatpush1.msra.mxu0 %v307
    %3585 = vmatprep.subr.mxu0 %v304
    %3586 = vmatpush1.msra.mxu0 %v303
    %3587 = vmatprep.subr.mxu0 %v300
    %3588 = vmatpush1.msra.mxu0 %v299
    %3589 = vmatprep.subr.mxu0 %v296
    %3590 = vmatpush1.msra.mxu0 %v295
    %3591 = vmatprep.subr.mxu0 %v292
    %3592 = vmatpush1.msra.mxu0 %v291
    %3593 = vmatprep.subr.mxu0 %v288
    %3594 = vmatpush1.msra.mxu0 %v287
    %3595 = vmatprep.subr.mxu0 %v284
    %3596 = vmatpush1.msra.mxu0 %v283
    %3597 = vmatprep.subr.mxu0 %v280
    %3598 = vmatpush1.msra.mxu0 %v279
    %3599 = vmatprep.subr.mxu0 %v276
    %3600 = vmatpush1.msra.mxu0 %v275
    %3601 = vmatprep.subr.mxu0 %v272
    %3602 = vmatpush1.msra.mxu0 %v271
    %3603 = vmatprep.subr.mxu0 %v268
    %3604 = vmatpush1.msra.mxu0 %v267
    %3605 = vmatprep.subr.mxu0 %v264
    %3606 = vmatpush1.msra.mxu0 %v263
    %3607 = vmatprep.subr.mxu0 %v260
    %3608 = vmatpush1.msra.mxu0 %v259
    %3609 = vmatprep.subr.mxu0 %v256
    %3610 = vmatpush1.msra.mxu0 %v255
    %3611 = vmatprep.subr.mxu0 %v252
    %3612 = vmatpush1.msra.mxu0 %v251
    %3613 = vmatprep.subr.mxu0 0.0
    %3614 = vmatpush2.msra.mxu0 0.0
    %3615 = vmatprep.subr.mxu0 0.0
    %3616 = vmatpush2.msra.mxu0 0.0
    %3617 = vmatprep.subr.mxu0 0.0
    %3618 = vmatpush2.msra.mxu0 0.0
    %3619 = vmatprep.subr.mxu0 0.0
    %3620 = vmatpush2.msra.mxu0 0.0
    %3621 = vmatprep.subr.mxu0 0.0
    %3622 = vmatpush2.msra.mxu0 0.0
    %3623 = vmatprep.subr.mxu0 0.0
    %3624 = vmatpush2.msra.mxu0 0.0
    %3625 = vmatprep.subr.mxu0 0.0
    %3626 = vmatpush2.msra.mxu0 0.0
    %3627 = vmatprep.subr.mxu0 0.0
    %3628 = vmatpush2.msra.mxu0 0.0
    %3629 = vmatprep.subr.mxu0 0.0
    %3630 = vmatpush2.msra.mxu0 0.0
    %3631 = vmatprep.subr.mxu0 0.0
    %3632 = vmatpush2.msra.mxu0 0.0
    %3633 = vmatprep.subr.mxu0 0.0
    %3634 = vmatpush2.msra.mxu0 0.0
    %3635 = vmatprep.subr.mxu0 0.0
    %3636 = vmatpush2.msra.mxu0 0.0
    %3637 = vmatprep.subr.mxu0 0.0
    %3638 = vmatpush2.msra.mxu0 0.0
    %3639 = vmatprep.subr.mxu0 0.0
    %3640 = vmatpush2.msra.mxu0 0.0
    %3641 = vmatprep.subr.mxu0 0.0
    %3642 = vmatpush2.msra.mxu0 0.0
    %3643 = vmatprep.subr.mxu0 0.0
    %3644 = vmatpush2.msra.mxu0 0.0
    %3645 = vmatprep.mubr.f32.mxu0 0.0
    %3646 = vmatmul.mubr.f32.gmra.mxu0 %v3574
    %v3647 = vpop.f32.mrf.mxu0
    %v3648 = vadd.f32 0.0, %v3647
    %v3649 = vpop.f32.mrf.mxu0
    %v3650 = vadd.f32 0.0, %v3649
    %3651 = vdwg.mxu0
    %3652 = vmatprep.subr.mxu0 %v314
    %3653 = vmatpush1.msra.mxu0 %v313
    %3654 = vmatprep.subr.mxu0 %v310
    %3655 = vmatpush1.msra.mxu0 %v309
    %3656 = vmatprep.subr.mxu0 %v306
    %3657 = vmatpush1.msra.mxu0 %v305
    %3658 = vmatprep.subr.mxu0 %v302
    %3659 = vmatpush1.msra.mxu0 %v301
    %3660 = vmatprep.subr.mxu0 %v298
    %3661 = vmatpush1.msra.mxu0 %v297
    %3662 = vmatprep.subr.mxu0 %v294
    %3663 = vmatpush1.msra.mxu0 %v293
    %3664 = vmatprep.subr.mxu0 %v290
    %3665 = vmatpush1.msra.mxu0 %v289
    %3666 = vmatprep.subr.mxu0 %v286
    %3667 = vmatpush1.msra.mxu0 %v285
    %3668 = vmatprep.subr.mxu0 %v282
    %3669 = vmatpush1.msra.mxu0 %v281
    %3670 = vmatprep.subr.mxu0 %v278
    %3671 = vmatpush1.msra.mxu0 %v277
    %3672 = vmatprep.subr.mxu0 %v274
    %3673 = vmatpush1.msra.mxu0 %v273
    %3674 = vmatprep.subr.mxu0 %v270
    %3675 = vmatpush1.msra.mxu0 %v269
    %3676 = vmatprep.subr.mxu0 %v266
    %3677 = vmatpush1.msra.mxu0 %v265
    %3678 = vmatprep.subr.mxu0 %v262
    %3679 = vmatpush1.msra.mxu0 %v261
    %3680 = vmatprep.subr.mxu0 %v258
    %3681 = vmatpush1.msra.mxu0 %v257
    %3682 = vmatprep.subr.mxu0 %v254
    %3683 = vmatpush1.msra.mxu0 %v253
    %3684 = vmatprep.subr.mxu0 0.0
    %3685 = vmatpush2.msra.mxu0 0.0
    %3686 = vmatprep.subr.mxu0 0.0
    %3687 = vmatpush2.msra.mxu0 0.0
    %3688 = vmatprep.subr.mxu0 0.0
    %3689 = vmatpush2.msra.mxu0 0.0
    %3690 = vmatprep.subr.mxu0 0.0
    %3691 = vmatpush2.msra.mxu0 0.0
    %3692 = vmatprep.subr.mxu0 0.0
    %3693 = vmatpush2.msra.mxu0 0.0
    %3694 = vmatprep.subr.mxu0 0.0
    %3695 = vmatpush2.msra.mxu0 0.0
    %3696 = vmatprep.subr.mxu0 0.0
    %3697 = vmatpush2.msra.mxu0 0.0
    %3698 = vmatprep.subr.mxu0 0.0
    %3699 = vmatpush2.msra.mxu0 0.0
    %3700 = vmatprep.subr.mxu0 0.0
    %3701 = vmatpush2.msra.mxu0 0.0
    %3702 = vmatprep.subr.mxu0 0.0
    %3703 = vmatpush2.msra.mxu0 0.0
    %3704 = vmatprep.subr.mxu0 0.0
    %3705 = vmatpush2.msra.mxu0 0.0
    %3706 = vmatprep.subr.mxu0 0.0
    %3707 = vmatpush2.msra.mxu0 0.0
    %3708 = vmatprep.subr.mxu0 0.0
    %3709 = vmatpush2.msra.mxu0 0.0
    %3710 = vmatprep.subr.mxu0 0.0
    %3711 = vmatpush2.msra.mxu0 0.0
    %3712 = vmatprep.subr.mxu0 0.0
    %3713 = vmatpush2.msra.mxu0 0.0
    %3714 = vmatprep.subr.mxu0 0.0
    %3715 = vmatpush2.msra.mxu0 0.0
    %3716 = vmatprep.mubr.f32.mxu0 0.0
    %3717 = vmatmul.mubr.f32.gmra.mxu0 %v3574
    %v3718 = vpop.f32.mrf.mxu0
    %v3719 = vadd.f32 0.0, %v3718
    %v3720 = vpop.f32.mrf.mxu0
    %v3721 = vadd.f32 0.0, %v3720
    %3722 = vdwg.mxu0
    %v3723 = vadd.f32 %v3577, %v3648
    %v3724 = vadd.f32 %v3578, %v3650
    %v3725 = vadd.f32 %v3579, %v3719
    %v3726 = vadd.f32 %v3580, %v3721
    %v3727 = vxor.u32 %v3723, 2147483648
    %v3728 = vmul.f32 %v3727, 1.442695
    %v3729 = vpow.pop %v3728
    %v3730 = vadd.f32 %v3729, 1.0
    %v3731 = vrcp.pop %v3730
    %v3732 = vmul.f32 1.0, %v3731
    %v3733 = vxor.u32 %v3724, 2147483648
    %v3734 = vmul.f32 %v3733, 1.442695
    %v3735 = vpow.pop %v3734
    %v3736 = vadd.f32 %v3735, 1.0
    %v3737 = vrcp.pop %v3736
    %v3738 = vmul.f32 1.0, %v3737
    %v3739 = vtanh.pop %v3725
    %v3740 = vxor.u32 %v3726, 2147483648
    %v3741 = vmul.f32 %v3740, 1.442695
    %v3742 = vpow.pop %v3741
    %v3743 = vadd.f32 %v3742, 1.0
    %v3744 = vrcp.pop %v3743
    %v3745 = vmul.f32 1.0, %v3744
    %v3746 = vmul.f32 %v3738, %v3281
    %v3747 = vmul.f32 %v3732, %v3739
    %v3748 = vadd.f32 %v3746, %v3747
    %v3749 = vtanh.pop %v3748
    %v3750 = vmul.f32 %v3745, %v3749
    %v3751 = vadd.f32 %v3750, %v90
    %3752 = vmatprep.subr.mxu0 %v183
    %3753 = vmatpush1.msra.mxu0 %v182
    %3754 = vmatprep.subr.mxu0 %v178
    %3755 = vmatpush1.msra.mxu0 %v177
    %3756 = vmatprep.subr.mxu0 %v173
    %3757 = vmatpush1.msra.mxu0 %v172
    %3758 = vmatprep.subr.mxu0 %v168
    %3759 = vmatpush1.msra.mxu0 %v167
    %3760 = vmatprep.subr.mxu0 %v163
    %3761 = vmatpush1.msra.mxu0 %v162
    %3762 = vmatprep.subr.mxu0 %v158
    %3763 = vmatpush1.msra.mxu0 %v157
    %3764 = vmatprep.subr.mxu0 %v153
    %3765 = vmatpush1.msra.mxu0 %v152
    %3766 = vmatprep.subr.mxu0 %v148
    %3767 = vmatpush1.msra.mxu0 %v147
    %3768 = vmatprep.subr.mxu0 %v143
    %3769 = vmatpush1.msra.mxu0 %v142
    %3770 = vmatprep.subr.mxu0 %v138
    %3771 = vmatpush1.msra.mxu0 %v137
    %3772 = vmatprep.subr.mxu0 %v133
    %3773 = vmatpush1.msra.mxu0 %v132
    %3774 = vmatprep.subr.mxu0 %v128
    %3775 = vmatpush1.msra.mxu0 %v127
    %3776 = vmatprep.subr.mxu0 %v123
    %3777 = vmatpush1.msra.mxu0 %v122
    %3778 = vmatprep.subr.mxu0 %v118
    %3779 = vmatpush1.msra.mxu0 %v117
    %3780 = vmatprep.subr.mxu0 %v113
    %3781 = vmatpush1.msra.mxu0 %v112
    %3782 = vmatprep.subr.mxu0 %v108
    %3783 = vmatpush1.msra.mxu0 %v107
    %3784 = vmatprep.subr.mxu0 0.0
    %3785 = vmatpush2.msra.mxu0 0.0
    %3786 = vmatprep.subr.mxu0 0.0
    %3787 = vmatpush2.msra.mxu0 0.0
    %3788 = vmatprep.subr.mxu0 0.0
    %3789 = vmatpush2.msra.mxu0 0.0
    %3790 = vmatprep.subr.mxu0 0.0
    %3791 = vmatpush2.msra.mxu0 0.0
    %3792 = vmatprep.subr.mxu0 0.0
    %3793 = vmatpush2.msra.mxu0 0.0
    %3794 = vmatprep.subr.mxu0 0.0
    %3795 = vmatpush2.msra.mxu0 0.0
    %3796 = vmatprep.subr.mxu0 0.0
    %3797 = vmatpush2.msra.mxu0 0.0
    %3798 = vmatprep.subr.mxu0 0.0
    %3799 = vmatpush2.msra.mxu0 0.0
    %3800 = vmatprep.subr.mxu0 0.0
    %3801 = vmatpush2.msra.mxu0 0.0
    %3802 = vmatprep.subr.mxu0 0.0
    %3803 = vmatpush2.msra.mxu0 0.0
    %3804 = vmatprep.subr.mxu0 0.0
    %3805 = vmatpush2.msra.mxu0 0.0
    %3806 = vmatprep.subr.mxu0 0.0
    %3807 = vmatpush2.msra.mxu0 0.0
    %3808 = vmatprep.subr.mxu0 0.0
    %3809 = vmatpush2.msra.mxu0 0.0
    %3810 = vmatprep.subr.mxu0 0.0
    %3811 = vmatpush2.msra.mxu0 0.0
    %3812 = vmatprep.subr.mxu0 0.0
    %3813 = vmatpush2.msra.mxu0 0.0
    %3814 = vmatprep.subr.mxu0 0.0
    %3815 = vmatpush2.msra.mxu0 0.0
    %3816 = vmatprep.mubr.f32.mxu0 0.0
    %3817 = vmatmul.mubr.f32.gmra.mxu0 %v3751
    %v3818 = vpop.f32.mrf.mxu0
    %v3819 = vadd.f32 0.0, %v3818
    %v3820 = vpop.f32.mrf.mxu0
    %v3821 = vadd.f32 0.0, %v3820
    %3822 = vdwg.mxu0
    %3823 = vmatprep.subr.mxu0 %v185
    %3824 = vmatpush1.msra.mxu0 %v184
    %3825 = vmatprep.subr.mxu0 %v180
    %3826 = vmatpush1.msra.mxu0 %v179
    %3827 = vmatprep.subr.mxu0 %v175
    %3828 = vmatpush1.msra.mxu0 %v174
    %3829 = vmatprep.subr.mxu0 %v170
    %3830 = vmatpush1.msra.mxu0 %v169
    %3831 = vmatprep.subr.mxu0 %v165
    %3832 = vmatpush1.msra.mxu0 %v164
    %3833 = vmatprep.subr.mxu0 %v160
    %3834 = vmatpush1.msra.mxu0 %v159
    %3835 = vmatprep.subr.mxu0 %v155
    %3836 = vmatpush1.msra.mxu0 %v154
    %3837 = vmatprep.subr.mxu0 %v150
    %3838 = vmatpush1.msra.mxu0 %v149
    %3839 = vmatprep.subr.mxu0 %v145
    %3840 = vmatpush1.msra.mxu0 %v144
    %3841 = vmatprep.subr.mxu0 %v140
    %3842 = vmatpush1.msra.mxu0 %v139
    %3843 = vmatprep.subr.mxu0 %v135
    %3844 = vmatpush1.msra.mxu0 %v134
    %3845 = vmatprep.subr.mxu0 %v130
    %3846 = vmatpush1.msra.mxu0 %v129
    %3847 = vmatprep.subr.mxu0 %v125
    %3848 = vmatpush1.msra.mxu0 %v124
    %3849 = vmatprep.subr.mxu0 %v120
    %3850 = vmatpush1.msra.mxu0 %v119
    %3851 = vmatprep.subr.mxu0 %v115
    %3852 = vmatpush1.msra.mxu0 %v114
    %3853 = vmatprep.subr.mxu0 %v110
    %3854 = vmatpush1.msra.mxu0 %v109
    %3855 = vmatprep.subr.mxu0 0.0
    %3856 = vmatpush2.msra.mxu0 0.0
    %3857 = vmatprep.subr.mxu0 0.0
    %3858 = vmatpush2.msra.mxu0 0.0
    %3859 = vmatprep.subr.mxu0 0.0
    %3860 = vmatpush2.msra.mxu0 0.0
    %3861 = vmatprep.subr.mxu0 0.0
    %3862 = vmatpush2.msra.mxu0 0.0
    %3863 = vmatprep.subr.mxu0 0.0
    %3864 = vmatpush2.msra.mxu0 0.0
    %3865 = vmatprep.subr.mxu0 0.0
    %3866 = vmatpush2.msra.mxu0 0.0
    %3867 = vmatprep.subr.mxu0 0.0
    %3868 = vmatpush2.msra.mxu0 0.0
    %3869 = vmatprep.subr.mxu0 0.0
    %3870 = vmatpush2.msra.mxu0 0.0
    %3871 = vmatprep.subr.mxu0 0.0
    %3872 = vmatpush2.msra.mxu0 0.0
    %3873 = vmatprep.subr.mxu0 0.0
    %3874 = vmatpush2.msra.mxu0 0.0
    %3875 = vmatprep.subr.mxu0 0.0
    %3876 = vmatpush2.msra.mxu0 0.0
    %3877 = vmatprep.subr.mxu0 0.0
    %3878 = vmatpush2.msra.mxu0 0.0
    %3879 = vmatprep.subr.mxu0 0.0
    %3880 = vmatpush2.msra.mxu0 0.0
    %3881 = vmatprep.subr.mxu0 0.0
    %3882 = vmatpush2.msra.mxu0 0.0
    %3883 = vmatprep.subr.mxu0 0.0
    %3884 = vmatpush2.msra.mxu0 0.0
    %3885 = vmatprep.subr.mxu0 0.0
    %3886 = vmatpush2.msra.mxu0 0.0
    %3887 = vmatprep.mubr.f32.mxu0 0.0
    %3888 = vmatmul.mubr.f32.gmra.mxu0 %v3751
    %v3889 = vpop.f32.mrf.mxu0
    %v3890 = vadd.f32 0.0, %v3889
    %v3891 = vpop.f32.mrf.mxu0
    %v3892 = vadd.f32 0.0, %v3891
    %3893 = vdwg.mxu0
    %3894 = vmatprep.subr.mxu0 0.0
    %3895 = vmatpush1.msra.mxu0 %v186
    %3896 = vmatprep.subr.mxu0 0.0
    %3897 = vmatpush1.msra.mxu0 %v181
    %3898 = vmatprep.subr.mxu0 0.0
    %3899 = vmatpush1.msra.mxu0 %v176
    %3900 = vmatprep.subr.mxu0 0.0
    %3901 = vmatpush1.msra.mxu0 %v171
    %3902 = vmatprep.subr.mxu0 0.0
    %3903 = vmatpush1.msra.mxu0 %v166
    %3904 = vmatprep.subr.mxu0 0.0
    %3905 = vmatpush1.msra.mxu0 %v161
    %3906 = vmatprep.subr.mxu0 0.0
    %3907 = vmatpush1.msra.mxu0 %v156
    %3908 = vmatprep.subr.mxu0 0.0
    %3909 = vmatpush1.msra.mxu0 %v151
    %3910 = vmatprep.subr.mxu0 0.0
    %3911 = vmatpush1.msra.mxu0 %v146
    %3912 = vmatprep.subr.mxu0 0.0
    %3913 = vmatpush1.msra.mxu0 %v141
    %3914 = vmatprep.subr.mxu0 0.0
    %3915 = vmatpush1.msra.mxu0 %v136
    %3916 = vmatprep.subr.mxu0 0.0
    %3917 = vmatpush1.msra.mxu0 %v131
    %3918 = vmatprep.subr.mxu0 0.0
    %3919 = vmatpush1.msra.mxu0 %v126
    %3920 = vmatprep.subr.mxu0 0.0
    %3921 = vmatpush1.msra.mxu0 %v121
    %3922 = vmatprep.subr.mxu0 0.0
    %3923 = vmatpush1.msra.mxu0 %v116
    %3924 = vmatprep.subr.mxu0 0.0
    %3925 = vmatpush1.msra.mxu0 %v111
    %3926 = vmatprep.subr.mxu0 0.0
    %3927 = vmatpush2.msra.mxu0 0.0
    %3928 = vmatprep.subr.mxu0 0.0
    %3929 = vmatpush2.msra.mxu0 0.0
    %3930 = vmatprep.subr.mxu0 0.0
    %3931 = vmatpush2.msra.mxu0 0.0
    %3932 = vmatprep.subr.mxu0 0.0
    %3933 = vmatpush2.msra.mxu0 0.0
    %3934 = vmatprep.subr.mxu0 0.0
    %3935 = vmatpush2.msra.mxu0 0.0
    %3936 = vmatprep.subr.mxu0 0.0
    %3937 = vmatpush2.msra.mxu0 0.0
    %3938 = vmatprep.subr.mxu0 0.0
    %3939 = vmatpush2.msra.mxu0 0.0
    %3940 = vmatprep.subr.mxu0 0.0
    %3941 = vmatpush2.msra.mxu0 0.0
    %3942 = vmatprep.subr.mxu0 0.0
    %3943 = vmatpush2.msra.mxu0 0.0
    %3944 = vmatprep.subr.mxu0 0.0
    %3945 = vmatpush2.msra.mxu0 0.0
    %3946 = vmatprep.subr.mxu0 0.0
    %3947 = vmatpush2.msra.mxu0 0.0
    %3948 = vmatprep.subr.mxu0 0.0
    %3949 = vmatpush2.msra.mxu0 0.0
    %3950 = vmatprep.subr.mxu0 0.0
    %3951 = vmatpush2.msra.mxu0 0.0
    %3952 = vmatprep.subr.mxu0 0.0
    %3953 = vmatpush2.msra.mxu0 0.0
    %3954 = vmatprep.subr.mxu0 0.0
    %3955 = vmatpush2.msra.mxu0 0.0
    %3956 = vmatprep.subr.mxu0 0.0
    %3957 = vmatpush2.msra.mxu0 0.0
    %3958 = vmatprep.mubr.f32.mxu0 0.0
    %3959 = vmatmul.mubr.f32.gmra.mxu0 %v3751
    %v3960 = vpop.f32.mrf.mxu0
    %v3961 = vadd.f32 0.0, %v3960
    %v3962 = vpop.f32.mrf.mxu0
    %3963 = vdwg.mxu0
    %v3964 = vadd.f32 %v3819, %v482
    %3965 = vmax.xlane.f32.xlu0 %v3964
    %v3966 = vpop.xlane.xlu0 %3965
    %v3967 = vsub.f32 %v3964, %v3966
    %v3968 = vmul.f32 %v3967, 1.442695
    %v3969 = vpow.pop %v3968
    %3970 = vadd.xlane.f32.xlu0 %v3969
    %v3971 = vpop.xlane.xlu0 %3970
    %v3972 = vrcp.pop %v3971
    %v3973 = vmul.f32 %v3969, %v3972
    %3974 = vmatprep.subr.mxu0 0.0
    %3975 = vmatpush1.msra.mxu0 %v106
    %3976 = vmatprep.subr.mxu0 0.0
    %3977 = vmatpush1.msra.mxu0 %v105
    %3978 = vmatprep.subr.mxu0 0.0
    %3979 = vmatpush1.msra.mxu0 %v104
    %3980 = vmatprep.subr.mxu0 0.0
    %3981 = vmatpush1.msra.mxu0 %v103
    %3982 = vmatprep.subr.mxu0 0.0
    %3983 = vmatpush1.msra.mxu0 %v102
    %3984 = vmatprep.subr.mxu0 0.0
    %3985 = vmatpush1.msra.mxu0 %v101
    %3986 = vmatprep.subr.mxu0 0.0
    %3987 = vmatpush1.msra.mxu0 %v100
    %3988 = vmatprep.subr.mxu0 0.0
    %3989 = vmatpush1.msra.mxu0 %v99
    %3990 = vmatprep.subr.mxu0 0.0
    %3991 = vmatpush1.msra.mxu0 %v98
    %3992 = vmatprep.subr.mxu0 0.0
    %3993 = vmatpush1.msra.mxu0 %v97
    %3994 = vmatprep.subr.mxu0 0.0
    %3995 = vmatpush1.msra.mxu0 %v96
    %3996 = vmatprep.subr.mxu0 0.0
    %3997 = vmatpush1.msra.mxu0 %v95
    %3998 = vmatprep.subr.mxu0 0.0
    %3999 = vmatpush1.msra.mxu0 %v94
    %4000 = vmatprep.subr.mxu0 0.0
    %4001 = vmatpush1.msra.mxu0 %v93
    %4002 = vmatprep.subr.mxu0 0.0
    %4003 = vmatpush1.msra.mxu0 %v92
    %4004 = vmatprep.subr.mxu0 0.0
    %4005 = vmatpush1.msra.mxu0 %v91
    %4006 = vmatprep.subr.mxu0 0.0
    %4007 = vmatpush2.msra.mxu0 0.0
    %4008 = vmatprep.subr.mxu0 0.0
    %4009 = vmatpush2.msra.mxu0 0.0
    %4010 = vmatprep.subr.mxu0 0.0
    %4011 = vmatpush2.msra.mxu0 0.0
    %4012 = vmatprep.subr.mxu0 0.0
    %4013 = vmatpush2.msra.mxu0 0.0
    %4014 = vmatprep.subr.mxu0 0.0
    %4015 = vmatpush2.msra.mxu0 0.0
    %4016 = vmatprep.subr.mxu0 0.0
    %4017 = vmatpush2.msra.mxu0 0.0
    %4018 = vmatprep.subr.mxu0 0.0
    %4019 = vmatpush2.msra.mxu0 0.0
    %4020 = vmatprep.subr.mxu0 0.0
    %4021 = vmatpush2.msra.mxu0 0.0
    %4022 = vmatprep.subr.mxu0 0.0
    %4023 = vmatpush2.msra.mxu0 0.0
    %4024 = vmatprep.subr.mxu0 0.0
    %4025 = vmatpush2.msra.mxu0 0.0
    %4026 = vmatprep.subr.mxu0 0.0
    %4027 = vmatpush2.msra.mxu0 0.0
    %4028 = vmatprep.subr.mxu0 0.0
    %4029 = vmatpush2.msra.mxu0 0.0
    %4030 = vmatprep.subr.mxu0 0.0
    %4031 = vmatpush2.msra.mxu0 0.0
    %4032 = vmatprep.subr.mxu0 0.0
    %4033 = vmatpush2.msra.mxu0 0.0
    %4034 = vmatprep.subr.mxu0 0.0
    %4035 = vmatpush2.msra.mxu0 0.0
    %4036 = vmatprep.subr.mxu0 0.0
    %4037 = vmatpush2.msra.mxu0 0.0
    %4038 = vmatprep.mubr.f32.mxu0 0.0
    %4039 = vmatmul.mubr.f32.gmra.mxu0 %v3973
    %v4040 = vpop.f32.mrf.mxu0
    %v4041 = vadd.f32 0.0, %v4040
    %v4042 = vpop.f32.mrf.mxu0
    %4043 = vdwg.mxu0
    %v4044 = vadd.f32 %v404, %v3821
    %v4045 = vadd.f32 %v406, %v3890
    %v4046 = vadd.f32 %v475, %v3892
    %v4047 = vadd.f32 %v477, %v3961
    %4048 = vmatprep.subr.mxu0 %v312
    %4049 = vmatpush1.msra.mxu0 %v311
    %4050 = vmatprep.subr.mxu0 %v308
    %4051 = vmatpush1.msra.mxu0 %v307
    %4052 = vmatprep.subr.mxu0 %v304
    %4053 = vmatpush1.msra.mxu0 %v303
    %4054 = vmatprep.subr.mxu0 %v300
    %4055 = vmatpush1.msra.mxu0 %v299
    %4056 = vmatprep.subr.mxu0 %v296
    %4057 = vmatpush1.msra.mxu0 %v295
    %4058 = vmatprep.subr.mxu0 %v292
    %4059 = vmatpush1.msra.mxu0 %v291
    %4060 = vmatprep.subr.mxu0 %v288
    %4061 = vmatpush1.msra.mxu0 %v287
    %4062 = vmatprep.subr.mxu0 %v284
    %4063 = vmatpush1.msra.mxu0 %v283
    %4064 = vmatprep.subr.mxu0 %v280
    %4065 = vmatpush1.msra.mxu0 %v279
    %4066 = vmatprep.subr.mxu0 %v276
    %4067 = vmatpush1.msra.mxu0 %v275
    %4068 = vmatprep.subr.mxu0 %v272
    %4069 = vmatpush1.msra.mxu0 %v271
    %4070 = vmatprep.subr.mxu0 %v268
    %4071 = vmatpush1.msra.mxu0 %v267
    %4072 = vmatprep.subr.mxu0 %v264
    %4073 = vmatpush1.msra.mxu0 %v263
    %4074 = vmatprep.subr.mxu0 %v260
    %4075 = vmatpush1.msra.mxu0 %v259
    %4076 = vmatprep.subr.mxu0 %v256
    %4077 = vmatpush1.msra.mxu0 %v255
    %4078 = vmatprep.subr.mxu0 %v252
    %4079 = vmatpush1.msra.mxu0 %v251
    %4080 = vmatprep.subr.mxu0 0.0
    %4081 = vmatpush2.msra.mxu0 0.0
    %4082 = vmatprep.subr.mxu0 0.0
    %4083 = vmatpush2.msra.mxu0 0.0
    %4084 = vmatprep.subr.mxu0 0.0
    %4085 = vmatpush2.msra.mxu0 0.0
    %4086 = vmatprep.subr.mxu0 0.0
    %4087 = vmatpush2.msra.mxu0 0.0
    %4088 = vmatprep.subr.mxu0 0.0
    %4089 = vmatpush2.msra.mxu0 0.0
    %4090 = vmatprep.subr.mxu0 0.0
    %4091 = vmatpush2.msra.mxu0 0.0
    %4092 = vmatprep.subr.mxu0 0.0
    %4093 = vmatpush2.msra.mxu0 0.0
    %4094 = vmatprep.subr.mxu0 0.0
    %4095 = vmatpush2.msra.mxu0 0.0
    %4096 = vmatprep.subr.mxu0 0.0
    %4097 = vmatpush2.msra.mxu0 0.0
    %4098 = vmatprep.subr.mxu0 0.0
    %4099 = vmatpush2.msra.mxu0 0.0
    %4100 = vmatprep.subr.mxu0 0.0
    %4101 = vmatpush2.msra.mxu0 0.0
    %4102 = vmatprep.subr.mxu0 0.0
    %4103 = vmatpush2.msra.mxu0 0.0
    %4104 = vmatprep.subr.mxu0 0.0
    %4105 = vmatpush2.msra.mxu0 0.0
    %4106 = vmatprep.subr.mxu0 0.0
    %4107 = vmatpush2.msra.mxu0 0.0
    %4108 = vmatprep.subr.mxu0 0.0
    %4109 = vmatpush2.msra.mxu0 0.0
    %4110 = vmatprep.subr.mxu0 0.0
    %4111 = vmatpush2.msra.mxu0 0.0
    %4112 = vmatprep.mubr.f32.mxu0 0.0
    %4113 = vmatmul.mubr.f32.gmra.mxu0 %v4041
    %v4114 = vpop.f32.mrf.mxu0
    %v4115 = vadd.f32 0.0, %v4114
    %v4116 = vpop.f32.mrf.mxu0
    %v4117 = vadd.f32 0.0, %v4116
    %4118 = vdwg.mxu0
    %4119 = vmatprep.subr.mxu0 %v314
    %4120 = vmatpush1.msra.mxu0 %v313
    %4121 = vmatprep.subr.mxu0 %v310
    %4122 = vmatpush1.msra.mxu0 %v309
    %4123 = vmatprep.subr.mxu0 %v306
    %4124 = vmatpush1.msra.mxu0 %v305
    %4125 = vmatprep.subr.mxu0 %v302
    %4126 = vmatpush1.msra.mxu0 %v301
    %4127 = vmatprep.subr.mxu0 %v298
    %4128 = vmatpush1.msra.mxu0 %v297
    %4129 = vmatprep.subr.mxu0 %v294
    %4130 = vmatpush1.msra.mxu0 %v293
    %4131 = vmatprep.subr.mxu0 %v290
    %4132 = vmatpush1.msra.mxu0 %v289
    %4133 = vmatprep.subr.mxu0 %v286
    %4134 = vmatpush1.msra.mxu0 %v285
    %4135 = vmatprep.subr.mxu0 %v282
    %4136 = vmatpush1.msra.mxu0 %v281
    %4137 = vmatprep.subr.mxu0 %v278
    %4138 = vmatpush1.msra.mxu0 %v277
    %4139 = vmatprep.subr.mxu0 %v274
    %4140 = vmatpush1.msra.mxu0 %v273
    %4141 = vmatprep.subr.mxu0 %v270
    %4142 = vmatpush1.msra.mxu0 %v269
    %4143 = vmatprep.subr.mxu0 %v266
    %4144 = vmatpush1.msra.mxu0 %v265
    %4145 = vmatprep.subr.mxu0 %v262
    %4146 = vmatpush1.msra.mxu0 %v261
    %4147 = vmatprep.subr.mxu0 %v258
    %4148 = vmatpush1.msra.mxu0 %v257
    %4149 = vmatprep.subr.mxu0 %v254
    %4150 = vmatpush1.msra.mxu0 %v253
    %4151 = vmatprep.subr.mxu0 0.0
    %4152 = vmatpush2.msra.mxu0 0.0
    %4153 = vmatprep.subr.mxu0 0.0
    %4154 = vmatpush2.msra.mxu0 0.0
    %4155 = vmatprep.subr.mxu0 0.0
    %4156 = vmatpush2.msra.mxu0 0.0
    %4157 = vmatprep.subr.mxu0 0.0
    %4158 = vmatpush2.msra.mxu0 0.0
    %4159 = vmatprep.subr.mxu0 0.0
    %4160 = vmatpush2.msra.mxu0 0.0
    %4161 = vmatprep.subr.mxu0 0.0
    %4162 = vmatpush2.msra.mxu0 0.0
    %4163 = vmatprep.subr.mxu0 0.0
    %4164 = vmatpush2.msra.mxu0 0.0
    %4165 = vmatprep.subr.mxu0 0.0
    %4166 = vmatpush2.msra.mxu0 0.0
    %4167 = vmatprep.subr.mxu0 0.0
    %4168 = vmatpush2.msra.mxu0 0.0
    %4169 = vmatprep.subr.mxu0 0.0
    %4170 = vmatpush2.msra.mxu0 0.0
    %4171 = vmatprep.subr.mxu0 0.0
    %4172 = vmatpush2.msra.mxu0 0.0
    %4173 = vmatprep.subr.mxu0 0.0
    %4174 = vmatpush2.msra.mxu0 0.0
    %4175 = vmatprep.subr.mxu0 0.0
    %4176 = vmatpush2.msra.mxu0 0.0
    %4177 = vmatprep.subr.mxu0 0.0
    %4178 = vmatpush2.msra.mxu0 0.0
    %4179 = vmatprep.subr.mxu0 0.0
    %4180 = vmatpush2.msra.mxu0 0.0
    %4181 = vmatprep.subr.mxu0 0.0
    %4182 = vmatpush2.msra.mxu0 0.0
    %4183 = vmatprep.mubr.f32.mxu0 0.0
    %4184 = vmatmul.mubr.f32.gmra.mxu0 %v4041
    %v4185 = vpop.f32.mrf.mxu0
    %v4186 = vadd.f32 0.0, %v4185
    %v4187 = vpop.f32.mrf.mxu0
    %v4188 = vadd.f32 0.0, %v4187
    %4189 = vdwg.mxu0
    %v4190 = vadd.f32 %v4044, %v4115
    %v4191 = vadd.f32 %v4045, %v4117
    %v4192 = vadd.f32 %v4046, %v4186
    %v4193 = vadd.f32 %v4047, %v4188
    %v4194 = vxor.u32 %v4190, 2147483648
    %v4195 = vmul.f32 %v4194, 1.442695
    %v4196 = vpow.pop %v4195
    %v4197 = vadd.f32 %v4196, 1.0
    %v4198 = vrcp.pop %v4197
    %v4199 = vmul.f32 1.0, %v4198
    %v4200 = vxor.u32 %v4191, 2147483648
    %v4201 = vmul.f32 %v4200, 1.442695
    %v4202 = vpow.pop %v4201
    %v4203 = vadd.f32 %v4202, 1.0
    %v4204 = vrcp.pop %v4203
    %v4205 = vmul.f32 1.0, %v4204
    %v4206 = vtanh.pop %v4192
    %v4207 = vxor.u32 %v4193, 2147483648
    %v4208 = vmul.f32 %v4207, 1.442695
    %v4209 = vpow.pop %v4208
    %v4210 = vadd.f32 %v4209, 1.0
    %v4211 = vrcp.pop %v4210
    %v4212 = vmul.f32 1.0, %v4211
    %v4213 = vmul.f32 %v4205, %v3748
    %v4214 = vmul.f32 %v4199, %v4206
    %v4215 = vadd.f32 %v4213, %v4214
    %v4216 = vtanh.pop %v4215
    %v4217 = vmul.f32 %v4212, %v4216
    %v4218 = vadd.f32 %v4217, %v90
    %4219 = vst [vmem:[#allocation11] sm:$0xff] %v4218
    // Predicated region
    $region46: #{tpu_custom_call.1} parent=1 // pred_check
      _
    $region47: #{tpu_custom_call.1} parent=1 // pred_check_branch
      %4221 = sbr.rel (0) target = $region49
    $region48: #{tpu_custom_call.1} parent=1 // pred_region
      %s4223 = ssub.s32 128, 128
      %4224 = vsyncadd [#allocation4], %s4223
      %s4226 = sshll.u32 [#allocation11], 4
      %s4227 = int_to_ptr.vmem [resolvable:$true] %s4226
      %4229 = dma.vmem_to_hbm [thread:$0]  %s4227, 128, %s6, [#allocation4]
    $region49: #{tpu_custom_call.1} parent=1 // pred_fallthru
      _
    // Predicated region
    $region50: #{tpu_custom_call.1} parent=1 // pred_check
      _
    $region51: #{tpu_custom_call.1} parent=1 // pred_check_branch
      %4231 = sbr.rel (0) target = $region53
    $region52: #{tpu_custom_call.1} parent=1 // pred_region
      %4232 = dma.done [#allocation4], 128
    $region53: #{tpu_custom_call.1} parent=1 // pred_fallthru
      _
    %4233 = vsyncpa [#allocation3], 1
    %4234 = vsyncpa [#allocation6], 1
    %4235 = vsyncpa [#allocation9], 1
    %4236 = vsyncpa [#allocation4], 1

</llo_original>
